<compile_context>
chip_gen: v7x
topology: tpu7x:2x2x1
jax: 0.10.0
libtpu: 0.0.40
codegen_flags: <defaults>
</compile_context>

<pallas_src>
import functools

import jax
import jax.numpy as jnp
from jax import lax
from jax.experimental import pallas as pl
from jax.experimental.pallas import tpu as pltpu

NEG_INF = -1e30   # f32 additive mask (fine after max-subtraction; exp underflows to 0)
LN_EPS = 1e-5

VMEM_SPEC = pl.BlockSpec(memory_space=pltpu.MemorySpace.VMEM)


# --------------------------- in-kernel helpers --------------------------------

def _softmax_lastdim(e):
    e = e - jnp.max(e, axis=-1, keepdims=True)
    p = jnp.exp(e)
    # EUP approximate reciprocal (separate issue slot); rows sum to 1 to ~1e-3,
    # which is fine for inference.
    return p * pl.reciprocal(jnp.sum(p, axis=-1, keepdims=True), approx=True)


def _gat(h, w_aug, b, adj_bias, eye, sel_dst, sel_src, relu):
    # GATConv (heads=1).  w_aug = [W | W a_dst^T | W a_src^T]: one MXU push
    # produces the projected features and both per-node attention logits.
    h_dim = w_aug.shape[1] - 2
    zf = jnp.dot(h, w_aug, preferred_element_type=jnp.float32)          # [N, H+2]
    xw = zf[:, :h_dim]                                                  # prefix slice
    a_dst = jnp.sum(zf * sel_dst, axis=-1, keepdims=True)               # [N,1] lane reduce
    a_src_col = jnp.sum(zf * sel_src, axis=-1, keepdims=True)           # [N,1]
    # column -> row relayout via identity mask + sublane reduce (VPU/XLU, no MXU)
    a_src_row = jnp.sum(a_src_col * eye, axis=0, keepdims=True)         # [1,N]
    e = a_dst + a_src_row                                               # [N,N]
    e = jnp.where(e > 0, e, 0.2 * e)                                    # LeakyReLU(0.2)
    attn = _softmax_lastdim(e + adj_bias)                               # additive mask
    out = jnp.dot(attn, xw, preferred_element_type=jnp.float32) + b
    if relu:
        out = jnp.maximum(out, 0.0)
    return out


def _temporal_attention(h, w_scaled, b):
    # w_scaled already carries the 1/sqrt(H) factor (folded host-side).
    q = jnp.dot(h, w_scaled, preferred_element_type=jnp.float32)        # [N,H]
    s = lax.dot_general(q, h, (((1,), (1,)), ((), ())),                 # q @ h^T, no
                        preferred_element_type=jnp.float32)             # materialized h^T
    return jnp.dot(_softmax_lastdim(s), h,
                   preferred_element_type=jnp.float32) + b


def _residual_layernorm(h_new, h_res, g, b):
    y = h_new + h_res
    mean = jnp.mean(y, axis=-1, keepdims=True)
    var = jnp.mean((y - mean) ** 2, axis=-1, keepdims=True)
    return (y - mean) * lax.rsqrt(var + LN_EPS) * g + b


# --------------------------- fused forward kernel -----------------------------

def _stgnn_kernel(x_ref, adj_ref, mats_ref, vecs_ref, o_ref):
    f32 = jnp.float32
    n, in_dim = x_ref.shape
    h_dim = mats_ref.shape[1]
    num_layers = (mats_ref.shape[0] - 3) // 3
    out_dim = o_ref.shape[1]

    # Constants computed once and hoisted out of the unrolled layer loop.
    adj_bias = jnp.where(adj_ref[...] > 0.0, 0.0, NEG_INF)              # additive mask
    rows = lax.broadcasted_iota(jnp.int32, (n, n), 0)
    cols = lax.broadcasted_iota(jnp.int32, (n, n), 1)
    eye = jnp.where(rows == cols, 1.0, 0.0)                             # identity [N,N]
    lane = lax.broadcasted_iota(jnp.int32, (1, h_dim + 2), 1)
    sel_dst = jnp.where(lane == h_dim, 1.0, 0.0)                        # one-hot col H
    sel_src = jnp.where(lane == h_dim + 1, 1.0, 0.0)                    # one-hot col H+1

    def mat(i):          # [H, H+2]
        return mats_ref[i]

    def vec(i):          # [1, H]
        return vecs_ref[i]

    # input projection (in_w stored zero-padded to [H, H+2]; use the live block)
    w_in = mat(3 * num_layers)[:in_dim, :h_dim]
    h = jnp.dot(x_ref[...], w_in, preferred_element_type=f32) + vec(5 * num_layers)

    # spatio-temporal blocks (static unroll; h never leaves VMEM/vregs)
    for l in range(num_layers):
        m0, v0 = 3 * l, 5 * l
        h1 = _gat(h, mat(m0), vec(v0), adj_bias, eye, sel_dst, sel_src,
                  relu=True)                      # conv1 + ReLU (dropout = identity)
        h2 = _gat(h1, mat(m0 + 1), vec(v0 + 1), adj_bias, eye, sel_dst, sel_src,
                  relu=False)                     # conv2
        h2 = _temporal_attention(h2, mat(m0 + 2)[:, :h_dim], vec(v0 + 2))
        h = _residual_layernorm(h2, h, vec(v0 + 3), vec(v0 + 4))

    # global mean pool + pred head (Linear -> ReLU -> Dropout(eval) -> Linear)
    pooled = jnp.mean(h, axis=0, keepdims=True)                         # [1,H]
    z = jnp.dot(pooled, mat(3 * num_layers + 1)[:, :h_dim],
                preferred_element_type=f32) + vec(5 * num_layers + 1)
    z = jnp.maximum(z, 0.0)
    o_ref[...] = (jnp.dot(z, mat(3 * num_layers + 2)[:, :out_dim],
                          preferred_element_type=f32)
                  + vec(5 * num_layers + 2)[:, :out_dim])


def _forward_impl(x, adj, mats, vecs, *, output_dim):
    return pl.pallas_call(
        _stgnn_kernel,
        out_shape=jax.ShapeDtypeStruct((1, output_dim), jnp.float32),
        in_specs=[VMEM_SPEC] * 4,
        out_specs=VMEM_SPEC,
    )(x, adj, mats, vecs)


stgnn_forward = jax.jit(_forward_impl, static_argnames=("output_dim",))


# --------------------------- parameter setup / packing ------------------------

def _xavier(key, shape):
    fan_in, fan_out = shape[0], shape[1]
    limit = (6.0 / (fan_in + fan_out)) ** 0.5
    return jax.random.uniform(key, shape, jnp.float32, -limit, limit)


def init_params(key, input_dim=8, hidden_dim=32, output_dim=3, num_layers=3):
    keys = iter(jax.random.split(key, 8 * num_layers + 8))

    def stack(shape):
        return jnp.stack([_xavier(next(keys), shape) for _ in range(num_layers)])

    zeros_blk = jnp.zeros((num_layers, 1, hidden_dim), jnp.float32)
    return {
        "in_w": _xavier(next(keys), (input_dim, hidden_dim)),
        "in_b": jnp.zeros((1, hidden_dim), jnp.float32),
        "c1_w": stack((hidden_dim, hidden_dim)),
        "c1_asrc": stack((1, hidden_dim)),
        "c1_adst": stack((1, hidden_dim)),
        "c1_b": zeros_blk,
        "c2_w": stack((hidden_dim, hidden_dim)),
        "c2_asrc": stack((1, hidden_dim)),
        "c2_adst": stack((1, hidden_dim)),
        "c2_b": zeros_blk,
        "ta_w": stack((hidden_dim, hidden_dim)),
        "ta_b": zeros_blk,
        "ln_g": jnp.ones((num_layers, 1, hidden_dim), jnp.float32),
        "ln_b": zeros_blk,
        "p1_w": _xavier(next(keys), (hidden_dim, hidden_dim)),
        "p1_b": jnp.zeros((1, hidden_dim), jnp.float32),
        "p2_w": _xavier(next(keys), (hidden_dim, output_dim)),
        "p2_b": jnp.zeros((1, output_dim), jnp.float32),
    }


def pack_params(p):
    """Host-side (setup-time) packing into two VMEM slabs."""
    num_layers, hidden, _ = p["c1_w"].shape
    in_dim = p["in_w"].shape[0]
    out_dim = p["p2_w"].shape[1]

    def aug(w, asrc, adst):
        # [W | W a_dst^T | W a_src^T] -> one MXU push yields xw and both logits.
        return jnp.concatenate([w, w @ adst.T, w @ asrc.T], axis=1)

    mats, vecs = [], []
    for l in range(num_layers):
        mats += [aug(p["c1_w"][l], p["c1_asrc"][l], p["c1_adst"][l]),
                 aug(p["c2_w"][l], p["c2_asrc"][l], p["c2_adst"][l]),
                 jnp.pad(p["ta_w"][l] * (float(hidden) ** -0.5), ((0, 0), (0, 2)))]
        vecs += [p["c1_b"][l], p["c2_b"][l], p["ta_b"][l],
                 p["ln_g"][l], p["ln_b"][l]]
    mats += [jnp.pad(p["in_w"], ((0, hidden - in_dim), (0, 2))),
             jnp.pad(p["p1_w"], ((0, 0), (0, 2))),
             jnp.pad(p["p2_w"], ((0, 0), (0, hidden + 2 - out_dim)))]
    vecs += [p["in_b"], p["p1_b"],
             jnp.pad(p["p2_b"], ((0, 0), (0, hidden - out_dim)))]
    return jnp.stack(mats), jnp.stack(vecs)   # [3L+3,H,H+2], [5L+3,1,H]


# --------------------------- main ----------------------------------------------

if __name__ == "__main__":
    N, INPUT_DIM, HIDDEN_DIM, OUTPUT_DIM, NUM_LAYERS = 16, 8, 32, 3, 3

    key = jax.random.PRNGKey(0)
    k_x, k_p = jax.random.split(key)

    x = jax.random.normal(k_x, (N, INPUT_DIM), jnp.float32)

    # Deterministic ring graph: edges i->(i+1)%N and back, plus self-loops
    # (GATConv default add_self_loops=True). adj[dst, src] = 1.
    # Every row has at least the self-loop, so the masked softmax never sees an
    # all-masked row (precondition of the kernel).
    src = jnp.arange(N)
    dst = (src + 1) % N
    edge_src = jnp.concatenate([src, dst])
    edge_dst = jnp.concatenate([dst, src])
    adj = jnp.zeros((N, N), jnp.float32).at[edge_dst, edge_src].set(1.0)
    adj = jnp.minimum(adj + jnp.eye(N, dtype=jnp.float32), 1.0)

    params = init_params(k_p, INPUT_DIM, HIDDEN_DIM, OUTPUT_DIM, NUM_LAYERS)
    mats, vecs = pack_params(params)          # packed once, host-side

    pred = stgnn_forward(x, adj, mats, vecs, output_dim=OUTPUT_DIM)
    pred = jax.block_until_ready(pred)
    assert pred.shape == (1, OUTPUT_DIM)
    assert bool(jnp.all(jnp.isfinite(pred)))
    print("KERNEL_OK")
</pallas_src>

<mosaic_0001>
module attributes {stable_mosaic.version = 11 : i64} {
  func.func @_stgnn_kernel(%arg0: memref<16x8xf32, #tpu.memory_space<vmem>>, %arg1: memref<16x16xf32, #tpu.memory_space<vmem>>, %arg2: memref<12x32x34xf32, #tpu.memory_space<vmem>>, %arg3: memref<18x1x32xf32, #tpu.memory_space<vmem>>, %arg4: memref<1x3xf32, #tpu.memory_space<vmem>>) attributes {dimension_semantics = [], scalar_prefetch = 0 : i64, scratch_operands = 0 : i64, tpu.core_type = #tpu.core_type<tc>} {
    %c0 = arith.constant 0 : index
    %c0_0 = arith.constant 0 : index
    %0 = vector.load %arg1[%c0, %c0_0] : memref<16x16xf32, #tpu.memory_space<vmem>>, vector<16x16xf32>
    %cst = arith.constant 0.000000e+00 : f32
    %1 = vector.broadcast %cst : f32 to vector<16x16xf32>
    %2 = arith.cmpf ogt, %0, %1 : vector<16x16xf32>
    %cst_1 = arith.constant 0.000000e+00 : f32
    %cst_2 = arith.constant -1.000000e+30 : f32
    %3 = vector.broadcast %cst_1 : f32 to vector<16x16xf32>
    %4 = vector.broadcast %cst_2 : f32 to vector<16x16xf32>
    %5 = arith.select %2, %3, %4 : vector<16x16xi1>, vector<16x16xf32>
    %6 = tpu.iota {dimensions = array<i32: 0>} : vector<16x16xi32>
    %7 = tpu.iota {dimensions = array<i32: 1>} : vector<16x16xi32>
    %8 = arith.cmpi eq, %6, %7 : vector<16x16xi32>
    %cst_3 = arith.constant 1.000000e+00 : f32
    %cst_4 = arith.constant 0.000000e+00 : f32
    %9 = vector.broadcast %cst_3 : f32 to vector<16x16xf32>
    %10 = vector.broadcast %cst_4 : f32 to vector<16x16xf32>
    %11 = arith.select %8, %9, %10 : vector<16x16xi1>, vector<16x16xf32>
    %12 = tpu.iota {dimensions = array<i32: 1>} : vector<1x34xi32>
    %c32_i32 = arith.constant 32 : i32
    %13 = vector.broadcast %c32_i32 : i32 to vector<1x34xi32>
    %14 = arith.cmpi eq, %12, %13 : vector<1x34xi32>
    %cst_5 = arith.constant 1.000000e+00 : f32
    %cst_6 = arith.constant 0.000000e+00 : f32
    %15 = vector.broadcast %cst_5 : f32 to vector<1x34xf32>
    %16 = vector.broadcast %cst_6 : f32 to vector<1x34xf32>
    %17 = arith.select %14, %15, %16 : vector<1x34xi1>, vector<1x34xf32>
    %c33_i32 = arith.constant 33 : i32
    %18 = vector.broadcast %c33_i32 : i32 to vector<1x34xi32>
    %19 = arith.cmpi eq, %12, %18 : vector<1x34xi32>
    %cst_7 = arith.constant 1.000000e+00 : f32
    %cst_8 = arith.constant 0.000000e+00 : f32
    %20 = vector.broadcast %cst_7 : f32 to vector<1x34xf32>
    %21 = vector.broadcast %cst_8 : f32 to vector<1x34xf32>
    %22 = arith.select %19, %20, %21 : vector<1x34xi1>, vector<1x34xf32>
    %c9 = arith.constant 9 : index
    %c0_9 = arith.constant 0 : index
    %c0_10 = arith.constant 0 : index
    %23 = vector.load %arg2[%c9, %c0_9, %c0_10] : memref<12x32x34xf32, #tpu.memory_space<vmem>>, vector<1x32x34xf32>
    %24 = vector.shape_cast %23 : vector<1x32x34xf32> to vector<32x34xf32>
    %25 = vector.extract_strided_slice %24 {offsets = [0, 0], sizes = [8, 32], strides = [1, 1]} : vector<32x34xf32> to vector<8x32xf32>
    %c0_11 = arith.constant 0 : index
    %c0_12 = arith.constant 0 : index
    %26 = vector.load %arg0[%c0_11, %c0_12] : memref<16x8xf32, #tpu.memory_space<vmem>>, vector<16x8xf32>
    %cst_13 = arith.constant dense<0.000000e+00> : vector<16x32xf32>
    %27 = tpu.matmul %26, %25, %cst_13 {dimension_numbers = #tpu.dot_dimension_numbers<[1], [0], [0], [1], [0, 0, 1, 1], [], []>} : vector<16x8xf32>, vector<8x32xf32>, vector<16x32xf32> -> vector<16x32xf32>
    %c15 = arith.constant 15 : index
    %c0_14 = arith.constant 0 : index
    %c0_15 = arith.constant 0 : index
    %28 = vector.load %arg3[%c15, %c0_14, %c0_15] : memref<18x1x32xf32, #tpu.memory_space<vmem>>, vector<1x1x32xf32>
    %29 = vector.shape_cast %28 : vector<1x1x32xf32> to vector<1x32xf32>
    %30 = vector.broadcast %29 : vector<1x32xf32> to vector<16x32xf32>
    %31 = arith.addf %27, %30 : vector<16x32xf32>
    %c0_16 = arith.constant 0 : index
    %c0_17 = arith.constant 0 : index
    %c0_18 = arith.constant 0 : index
    %32 = vector.load %arg2[%c0_16, %c0_17, %c0_18] : memref<12x32x34xf32, #tpu.memory_space<vmem>>, vector<1x32x34xf32>
    %33 = vector.shape_cast %32 : vector<1x32x34xf32> to vector<32x34xf32>
    %c0_19 = arith.constant 0 : index
    %c0_20 = arith.constant 0 : index
    %c0_21 = arith.constant 0 : index
    %34 = vector.load %arg3[%c0_19, %c0_20, %c0_21] : memref<18x1x32xf32, #tpu.memory_space<vmem>>, vector<1x1x32xf32>
    %35 = vector.shape_cast %34 : vector<1x1x32xf32> to vector<1x32xf32>
    %cst_22 = arith.constant dense<0.000000e+00> : vector<16x34xf32>
    %36 = tpu.matmul %31, %33, %cst_22 {dimension_numbers = #tpu.dot_dimension_numbers<[1], [0], [0], [1], [0, 0, 1, 1], [], []>} : vector<16x32xf32>, vector<32x34xf32>, vector<16x34xf32> -> vector<16x34xf32>
    %37 = vector.extract_strided_slice %36 {offsets = [0, 0], sizes = [16, 32], strides = [1, 1]} : vector<16x34xf32> to vector<16x32xf32>
    %38 = vector.broadcast %17 : vector<1x34xf32> to vector<16x34xf32>
    %39 = arith.mulf %36, %38 : vector<16x34xf32>
    %cst_23 = arith.constant dense<0.000000e+00> : vector<16xf32>
    %40 = vector.multi_reduction <add>, %39, %cst_23 [1] : vector<16x34xf32> to vector<16xf32>
    %41 = vector.shape_cast %40 : vector<16xf32> to vector<16x1xf32>
    %42 = vector.broadcast %22 : vector<1x34xf32> to vector<16x34xf32>
    %43 = arith.mulf %36, %42 : vector<16x34xf32>
    %cst_24 = arith.constant dense<0.000000e+00> : vector<16xf32>
    %44 = vector.multi_reduction <add>, %43, %cst_24 [1] : vector<16x34xf32> to vector<16xf32>
    %45 = vector.shape_cast %44 : vector<16xf32> to vector<16x1xf32>
    %46 = vector.broadcast %45 : vector<16x1xf32> to vector<16x16xf32>
    %47 = arith.mulf %46, %11 : vector<16x16xf32>
    %cst_25 = arith.constant dense<0.000000e+00> : vector<16xf32>
    %48 = vector.multi_reduction <add>, %47, %cst_25 [0] : vector<16x16xf32> to vector<16xf32>
    %49 = vector.shape_cast %48 : vector<16xf32> to vector<1x16xf32>
    %50 = vector.broadcast %41 : vector<16x1xf32> to vector<16x16xf32>
    %51 = vector.broadcast %49 : vector<1x16xf32> to vector<16x16xf32>
    %52 = arith.addf %50, %51 : vector<16x16xf32>
    %cst_26 = arith.constant 0.000000e+00 : f32
    %53 = vector.broadcast %cst_26 : f32 to vector<16x16xf32>
    %54 = arith.cmpf ogt, %52, %53 : vector<16x16xf32>
    %cst_27 = arith.constant 2.000000e-01 : f32
    %55 = vector.broadcast %cst_27 : f32 to vector<16x16xf32>
    %56 = arith.mulf %55, %52 : vector<16x16xf32>
    %57 = arith.select %54, %52, %56 : vector<16x16xi1>, vector<16x16xf32>
    %58 = arith.addf %57, %5 : vector<16x16xf32>
    %cst_28 = arith.constant dense<0xFF800000> : vector<16xf32>
    %59 = vector.multi_reduction <maximumf>, %58, %cst_28 [1] : vector<16x16xf32> to vector<16xf32>
    %60 = vector.shape_cast %59 : vector<16xf32> to vector<16x1xf32>
    %61 = vector.broadcast %60 : vector<16x1xf32> to vector<16x16xf32>
    %62 = arith.subf %58, %61 : vector<16x16xf32>
    %63 = math.exp %62 : vector<16x16xf32>
    %cst_29 = arith.constant dense<0.000000e+00> : vector<16xf32>
    %64 = vector.multi_reduction <add>, %63, %cst_29 [1] : vector<16x16xf32> to vector<16xf32>
    %65 = vector.shape_cast %64 : vector<16xf32> to vector<16x1xf32>
    %66 = tpu.reciprocal %65 {approx = true} : vector<16x1xf32> -> vector<16x1xf32>
    %67 = vector.broadcast %66 : vector<16x1xf32> to vector<16x16xf32>
    %68 = arith.mulf %63, %67 : vector<16x16xf32>
    %cst_30 = arith.constant dense<0.000000e+00> : vector<16x32xf32>
    %69 = tpu.matmul %68, %37, %cst_30 {dimension_numbers = #tpu.dot_dimension_numbers<[1], [0], [0], [1], [0, 0, 1, 1], [], []>} : vector<16x16xf32>, vector<16x32xf32>, vector<16x32xf32> -> vector<16x32xf32>
    %70 = vector.broadcast %35 : vector<1x32xf32> to vector<16x32xf32>
    %71 = arith.addf %69, %70 : vector<16x32xf32>
    %cst_31 = arith.constant 0.000000e+00 : f32
    %72 = vector.broadcast %cst_31 : f32 to vector<16x32xf32>
    %73 = arith.maximumf %71, %72 : vector<16x32xf32>
    %c1 = arith.constant 1 : index
    %c0_32 = arith.constant 0 : index
    %c0_33 = arith.constant 0 : index
    %74 = vector.load %arg2[%c1, %c0_32, %c0_33] : memref<12x32x34xf32, #tpu.memory_space<vmem>>, vector<1x32x34xf32>
    %75 = vector.shape_cast %74 : vector<1x32x34xf32> to vector<32x34xf32>
    %c1_34 = arith.constant 1 : index
    %c0_35 = arith.constant 0 : index
    %c0_36 = arith.constant 0 : index
    %76 = vector.load %arg3[%c1_34, %c0_35, %c0_36] : memref<18x1x32xf32, #tpu.memory_space<vmem>>, vector<1x1x32xf32>
    %77 = vector.shape_cast %76 : vector<1x1x32xf32> to vector<1x32xf32>
    %cst_37 = arith.constant dense<0.000000e+00> : vector<16x34xf32>
    %78 = tpu.matmul %73, %75, %cst_37 {dimension_numbers = #tpu.dot_dimension_numbers<[1], [0], [0], [1], [0, 0, 1, 1], [], []>} : vector<16x32xf32>, vector<32x34xf32>, vector<16x34xf32> -> vector<16x34xf32>
    %79 = vector.extract_strided_slice %78 {offsets = [0, 0], sizes = [16, 32], strides = [1, 1]} : vector<16x34xf32> to vector<16x32xf32>
    %80 = vector.broadcast %17 : vector<1x34xf32> to vector<16x34xf32>
    %81 = arith.mulf %78, %80 : vector<16x34xf32>
    %cst_38 = arith.constant dense<0.000000e+00> : vector<16xf32>
    %82 = vector.multi_reduction <add>, %81, %cst_38 [1] : vector<16x34xf32> to vector<16xf32>
    %83 = vector.shape_cast %82 : vector<16xf32> to vector<16x1xf32>
    %84 = vector.broadcast %22 : vector<1x34xf32> to vector<16x34xf32>
    %85 = arith.mulf %78, %84 : vector<16x34xf32>
    %cst_39 = arith.constant dense<0.000000e+00> : vector<16xf32>
    %86 = vector.multi_reduction <add>, %85, %cst_39 [1] : vector<16x34xf32> to vector<16xf32>
    %87 = vector.shape_cast %86 : vector<16xf32> to vector<16x1xf32>
    %88 = vector.broadcast %87 : vector<16x1xf32> to vector<16x16xf32>
    %89 = arith.mulf %88, %11 : vector<16x16xf32>
    %cst_40 = arith.constant dense<0.000000e+00> : vector<16xf32>
    %90 = vector.multi_reduction <add>, %89, %cst_40 [0] : vector<16x16xf32> to vector<16xf32>
    %91 = vector.shape_cast %90 : vector<16xf32> to vector<1x16xf32>
    %92 = vector.broadcast %83 : vector<16x1xf32> to vector<16x16xf32>
    %93 = vector.broadcast %91 : vector<1x16xf32> to vector<16x16xf32>
    %94 = arith.addf %92, %93 : vector<16x16xf32>
    %cst_41 = arith.constant 0.000000e+00 : f32
    %95 = vector.broadcast %cst_41 : f32 to vector<16x16xf32>
    %96 = arith.cmpf ogt, %94, %95 : vector<16x16xf32>
    %cst_42 = arith.constant 2.000000e-01 : f32
    %97 = vector.broadcast %cst_42 : f32 to vector<16x16xf32>
    %98 = arith.mulf %97, %94 : vector<16x16xf32>
    %99 = arith.select %96, %94, %98 : vector<16x16xi1>, vector<16x16xf32>
    %100 = arith.addf %99, %5 : vector<16x16xf32>
    %cst_43 = arith.constant dense<0xFF800000> : vector<16xf32>
    %101 = vector.multi_reduction <maximumf>, %100, %cst_43 [1] : vector<16x16xf32> to vector<16xf32>
    %102 = vector.shape_cast %101 : vector<16xf32> to vector<16x1xf32>
    %103 = vector.broadcast %102 : vector<16x1xf32> to vector<16x16xf32>
    %104 = arith.subf %100, %103 : vector<16x16xf32>
    %105 = math.exp %104 : vector<16x16xf32>
    %cst_44 = arith.constant dense<0.000000e+00> : vector<16xf32>
    %106 = vector.multi_reduction <add>, %105, %cst_44 [1] : vector<16x16xf32> to vector<16xf32>
    %107 = vector.shape_cast %106 : vector<16xf32> to vector<16x1xf32>
    %108 = tpu.reciprocal %107 {approx = true} : vector<16x1xf32> -> vector<16x1xf32>
    %109 = vector.broadcast %108 : vector<16x1xf32> to vector<16x16xf32>
    %110 = arith.mulf %105, %109 : vector<16x16xf32>
    %cst_45 = arith.constant dense<0.000000e+00> : vector<16x32xf32>
    %111 = tpu.matmul %110, %79, %cst_45 {dimension_numbers = #tpu.dot_dimension_numbers<[1], [0], [0], [1], [0, 0, 1, 1], [], []>} : vector<16x16xf32>, vector<16x32xf32>, vector<16x32xf32> -> vector<16x32xf32>
    %112 = vector.broadcast %77 : vector<1x32xf32> to vector<16x32xf32>
    %113 = arith.addf %111, %112 : vector<16x32xf32>
    %c2 = arith.constant 2 : index
    %c0_46 = arith.constant 0 : index
    %c0_47 = arith.constant 0 : index
    %114 = vector.load %arg2[%c2, %c0_46, %c0_47] : memref<12x32x34xf32, #tpu.memory_space<vmem>>, vector<1x32x34xf32>
    %115 = vector.shape_cast %114 : vector<1x32x34xf32> to vector<32x34xf32>
    %116 = vector.extract_strided_slice %115 {offsets = [0, 0], sizes = [32, 32], strides = [1, 1]} : vector<32x34xf32> to vector<32x32xf32>
    %c2_48 = arith.constant 2 : index
    %c0_49 = arith.constant 0 : index
    %c0_50 = arith.constant 0 : index
    %117 = vector.load %arg3[%c2_48, %c0_49, %c0_50] : memref<18x1x32xf32, #tpu.memory_space<vmem>>, vector<1x1x32xf32>
    %118 = vector.shape_cast %117 : vector<1x1x32xf32> to vector<1x32xf32>
    %cst_51 = arith.constant dense<0.000000e+00> : vector<16x32xf32>
    %119 = tpu.matmul %113, %116, %cst_51 {dimension_numbers = #tpu.dot_dimension_numbers<[1], [0], [0], [1], [0, 0, 1, 1], [], []>} : vector<16x32xf32>, vector<32x32xf32>, vector<16x32xf32> -> vector<16x32xf32>
    %cst_52 = arith.constant dense<0.000000e+00> : vector<16x16xf32>
    %120 = tpu.matmul %119, %113, %cst_52 {dimension_numbers = #tpu.dot_dimension_numbers<[1], [1], [0], [0], [0, 0, 1, 0], [], []>} : vector<16x32xf32>, vector<16x32xf32>, vector<16x16xf32> -> vector<16x16xf32>
    %cst_53 = arith.constant dense<0xFF800000> : vector<16xf32>
    %121 = vector.multi_reduction <maximumf>, %120, %cst_53 [1] : vector<16x16xf32> to vector<16xf32>
    %122 = vector.shape_cast %121 : vector<16xf32> to vector<16x1xf32>
    %123 = vector.broadcast %122 : vector<16x1xf32> to vector<16x16xf32>
    %124 = arith.subf %120, %123 : vector<16x16xf32>
    %125 = math.exp %124 : vector<16x16xf32>
    %cst_54 = arith.constant dense<0.000000e+00> : vector<16xf32>
    %126 = vector.multi_reduction <add>, %125, %cst_54 [1] : vector<16x16xf32> to vector<16xf32>
    %127 = vector.shape_cast %126 : vector<16xf32> to vector<16x1xf32>
    %128 = tpu.reciprocal %127 {approx = true} : vector<16x1xf32> -> vector<16x1xf32>
    %129 = vector.broadcast %128 : vector<16x1xf32> to vector<16x16xf32>
    %130 = arith.mulf %125, %129 : vector<16x16xf32>
    %cst_55 = arith.constant dense<0.000000e+00> : vector<16x32xf32>
    %131 = tpu.matmul %130, %113, %cst_55 {dimension_numbers = #tpu.dot_dimension_numbers<[1], [0], [0], [1], [0, 0, 1, 1], [], []>} : vector<16x16xf32>, vector<16x32xf32>, vector<16x32xf32> -> vector<16x32xf32>
    %132 = vector.broadcast %118 : vector<1x32xf32> to vector<16x32xf32>
    %133 = arith.addf %131, %132 : vector<16x32xf32>
    %c3 = arith.constant 3 : index
    %c0_56 = arith.constant 0 : index
    %c0_57 = arith.constant 0 : index
    %134 = vector.load %arg3[%c3, %c0_56, %c0_57] : memref<18x1x32xf32, #tpu.memory_space<vmem>>, vector<1x1x32xf32>
    %135 = vector.shape_cast %134 : vector<1x1x32xf32> to vector<1x32xf32>
    %c4 = arith.constant 4 : index
    %c0_58 = arith.constant 0 : index
    %c0_59 = arith.constant 0 : index
    %136 = vector.load %arg3[%c4, %c0_58, %c0_59] : memref<18x1x32xf32, #tpu.memory_space<vmem>>, vector<1x1x32xf32>
    %137 = vector.shape_cast %136 : vector<1x1x32xf32> to vector<1x32xf32>
    %138 = arith.addf %133, %31 : vector<16x32xf32>
    %cst_60 = arith.constant dense<0.000000e+00> : vector<16xf32>
    %139 = vector.multi_reduction <add>, %138, %cst_60 [1] : vector<16x32xf32> to vector<16xf32>
    %140 = vector.shape_cast %139 : vector<16xf32> to vector<16x1xf32>
    %cst_61 = arith.constant 3.200000e+01 : f32
    %141 = vector.broadcast %cst_61 : f32 to vector<16x1xf32>
    %142 = arith.divf %140, %141 : vector<16x1xf32>
    %143 = vector.broadcast %142 : vector<16x1xf32> to vector<16x32xf32>
    %144 = arith.subf %138, %143 : vector<16x32xf32>
    %145 = arith.mulf %144, %144 : vector<16x32xf32>
    %cst_62 = arith.constant dense<0.000000e+00> : vector<16xf32>
    %146 = vector.multi_reduction <add>, %145, %cst_62 [1] : vector<16x32xf32> to vector<16xf32>
    %147 = vector.shape_cast %146 : vector<16xf32> to vector<16x1xf32>
    %cst_63 = arith.constant 3.200000e+01 : f32
    %148 = vector.broadcast %cst_63 : f32 to vector<16x1xf32>
    %149 = arith.divf %147, %148 : vector<16x1xf32>
    %150 = vector.broadcast %142 : vector<16x1xf32> to vector<16x32xf32>
    %151 = arith.subf %138, %150 : vector<16x32xf32>
    %cst_64 = arith.constant 9.99999974E-6 : f32
    %152 = vector.broadcast %cst_64 : f32 to vector<16x1xf32>
    %153 = arith.addf %149, %152 : vector<16x1xf32>
    %154 = math.rsqrt %153 : vector<16x1xf32>
    %155 = vector.broadcast %154 : vector<16x1xf32> to vector<16x32xf32>
    %156 = arith.mulf %151, %155 : vector<16x32xf32>
    %157 = vector.broadcast %135 : vector<1x32xf32> to vector<16x32xf32>
    %158 = arith.mulf %156, %157 : vector<16x32xf32>
    %159 = vector.broadcast %137 : vector<1x32xf32> to vector<16x32xf32>
    %160 = arith.addf %158, %159 : vector<16x32xf32>
    %c3_65 = arith.constant 3 : index
    %c0_66 = arith.constant 0 : index
    %c0_67 = arith.constant 0 : index
    %161 = vector.load %arg2[%c3_65, %c0_66, %c0_67] : memref<12x32x34xf32, #tpu.memory_space<vmem>>, vector<1x32x34xf32>
    %162 = vector.shape_cast %161 : vector<1x32x34xf32> to vector<32x34xf32>
    %c5 = arith.constant 5 : index
    %c0_68 = arith.constant 0 : index
    %c0_69 = arith.constant 0 : index
    %163 = vector.load %arg3[%c5, %c0_68, %c0_69] : memref<18x1x32xf32, #tpu.memory_space<vmem>>, vector<1x1x32xf32>
    %164 = vector.shape_cast %163 : vector<1x1x32xf32> to vector<1x32xf32>
    %cst_70 = arith.constant dense<0.000000e+00> : vector<16x34xf32>
    %165 = tpu.matmul %160, %162, %cst_70 {dimension_numbers = #tpu.dot_dimension_numbers<[1], [0], [0], [1], [0, 0, 1, 1], [], []>} : vector<16x32xf32>, vector<32x34xf32>, vector<16x34xf32> -> vector<16x34xf32>
    %166 = vector.extract_strided_slice %165 {offsets = [0, 0], sizes = [16, 32], strides = [1, 1]} : vector<16x34xf32> to vector<16x32xf32>
    %167 = vector.broadcast %17 : vector<1x34xf32> to vector<16x34xf32>
    %168 = arith.mulf %165, %167 : vector<16x34xf32>
    %cst_71 = arith.constant dense<0.000000e+00> : vector<16xf32>
    %169 = vector.multi_reduction <add>, %168, %cst_71 [1] : vector<16x34xf32> to vector<16xf32>
    %170 = vector.shape_cast %169 : vector<16xf32> to vector<16x1xf32>
    %171 = vector.broadcast %22 : vector<1x34xf32> to vector<16x34xf32>
    %172 = arith.mulf %165, %171 : vector<16x34xf32>
    %cst_72 = arith.constant dense<0.000000e+00> : vector<16xf32>
    %173 = vector.multi_reduction <add>, %172, %cst_72 [1] : vector<16x34xf32> to vector<16xf32>
    %174 = vector.shape_cast %173 : vector<16xf32> to vector<16x1xf32>
    %175 = vector.broadcast %174 : vector<16x1xf32> to vector<16x16xf32>
    %176 = arith.mulf %175, %11 : vector<16x16xf32>
    %cst_73 = arith.constant dense<0.000000e+00> : vector<16xf32>
    %177 = vector.multi_reduction <add>, %176, %cst_73 [0] : vector<16x16xf32> to vector<16xf32>
    %178 = vector.shape_cast %177 : vector<16xf32> to vector<1x16xf32>
    %179 = vector.broadcast %170 : vector<16x1xf32> to vector<16x16xf32>
    %180 = vector.broadcast %178 : vector<1x16xf32> to vector<16x16xf32>
    %181 = arith.addf %179, %180 : vector<16x16xf32>
    %cst_74 = arith.constant 0.000000e+00 : f32
    %182 = vector.broadcast %cst_74 : f32 to vector<16x16xf32>
    %183 = arith.cmpf ogt, %181, %182 : vector<16x16xf32>
    %cst_75 = arith.constant 2.000000e-01 : f32
    %184 = vector.broadcast %cst_75 : f32 to vector<16x16xf32>
    %185 = arith.mulf %184, %181 : vector<16x16xf32>
    %186 = arith.select %183, %181, %185 : vector<16x16xi1>, vector<16x16xf32>
    %187 = arith.addf %186, %5 : vector<16x16xf32>
    %cst_76 = arith.constant dense<0xFF800000> : vector<16xf32>
    %188 = vector.multi_reduction <maximumf>, %187, %cst_76 [1] : vector<16x16xf32> to vector<16xf32>
    %189 = vector.shape_cast %188 : vector<16xf32> to vector<16x1xf32>
    %190 = vector.broadcast %189 : vector<16x1xf32> to vector<16x16xf32>
    %191 = arith.subf %187, %190 : vector<16x16xf32>
    %192 = math.exp %191 : vector<16x16xf32>
    %cst_77 = arith.constant dense<0.000000e+00> : vector<16xf32>
    %193 = vector.multi_reduction <add>, %192, %cst_77 [1] : vector<16x16xf32> to vector<16xf32>
    %194 = vector.shape_cast %193 : vector<16xf32> to vector<16x1xf32>
    %195 = tpu.reciprocal %194 {approx = true} : vector<16x1xf32> -> vector<16x1xf32>
    %196 = vector.broadcast %195 : vector<16x1xf32> to vector<16x16xf32>
    %197 = arith.mulf %192, %196 : vector<16x16xf32>
    %cst_78 = arith.constant dense<0.000000e+00> : vector<16x32xf32>
    %198 = tpu.matmul %197, %166, %cst_78 {dimension_numbers = #tpu.dot_dimension_numbers<[1], [0], [0], [1], [0, 0, 1, 1], [], []>} : vector<16x16xf32>, vector<16x32xf32>, vector<16x32xf32> -> vector<16x32xf32>
    %199 = vector.broadcast %164 : vector<1x32xf32> to vector<16x32xf32>
    %200 = arith.addf %198, %199 : vector<16x32xf32>
    %cst_79 = arith.constant 0.000000e+00 : f32
    %201 = vector.broadcast %cst_79 : f32 to vector<16x32xf32>
    %202 = arith.maximumf %200, %201 : vector<16x32xf32>
    %c4_80 = arith.constant 4 : index
    %c0_81 = arith.constant 0 : index
    %c0_82 = arith.constant 0 : index
    %203 = vector.load %arg2[%c4_80, %c0_81, %c0_82] : memref<12x32x34xf32, #tpu.memory_space<vmem>>, vector<1x32x34xf32>
    %204 = vector.shape_cast %203 : vector<1x32x34xf32> to vector<32x34xf32>
    %c6 = arith.constant 6 : index
    %c0_83 = arith.constant 0 : index
    %c0_84 = arith.constant 0 : index
    %205 = vector.load %arg3[%c6, %c0_83, %c0_84] : memref<18x1x32xf32, #tpu.memory_space<vmem>>, vector<1x1x32xf32>
    %206 = vector.shape_cast %205 : vector<1x1x32xf32> to vector<1x32xf32>
    %cst_85 = arith.constant dense<0.000000e+00> : vector<16x34xf32>
    %207 = tpu.matmul %202, %204, %cst_85 {dimension_numbers = #tpu.dot_dimension_numbers<[1], [0], [0], [1], [0, 0, 1, 1], [], []>} : vector<16x32xf32>, vector<32x34xf32>, vector<16x34xf32> -> vector<16x34xf32>
    %208 = vector.extract_strided_slice %207 {offsets = [0, 0], sizes = [16, 32], strides = [1, 1]} : vector<16x34xf32> to vector<16x32xf32>
    %209 = vector.broadcast %17 : vector<1x34xf32> to vector<16x34xf32>
    %210 = arith.mulf %207, %209 : vector<16x34xf32>
    %cst_86 = arith.constant dense<0.000000e+00> : vector<16xf32>
    %211 = vector.multi_reduction <add>, %210, %cst_86 [1] : vector<16x34xf32> to vector<16xf32>
    %212 = vector.shape_cast %211 : vector<16xf32> to vector<16x1xf32>
    %213 = vector.broadcast %22 : vector<1x34xf32> to vector<16x34xf32>
    %214 = arith.mulf %207, %213 : vector<16x34xf32>
    %cst_87 = arith.constant dense<0.000000e+00> : vector<16xf32>
    %215 = vector.multi_reduction <add>, %214, %cst_87 [1] : vector<16x34xf32> to vector<16xf32>
    %216 = vector.shape_cast %215 : vector<16xf32> to vector<16x1xf32>
    %217 = vector.broadcast %216 : vector<16x1xf32> to vector<16x16xf32>
    %218 = arith.mulf %217, %11 : vector<16x16xf32>
    %cst_88 = arith.constant dense<0.000000e+00> : vector<16xf32>
    %219 = vector.multi_reduction <add>, %218, %cst_88 [0] : vector<16x16xf32> to vector<16xf32>
    %220 = vector.shape_cast %219 : vector<16xf32> to vector<1x16xf32>
    %221 = vector.broadcast %212 : vector<16x1xf32> to vector<16x16xf32>
    %222 = vector.broadcast %220 : vector<1x16xf32> to vector<16x16xf32>
    %223 = arith.addf %221, %222 : vector<16x16xf32>
    %cst_89 = arith.constant 0.000000e+00 : f32
    %224 = vector.broadcast %cst_89 : f32 to vector<16x16xf32>
    %225 = arith.cmpf ogt, %223, %224 : vector<16x16xf32>
    %cst_90 = arith.constant 2.000000e-01 : f32
    %226 = vector.broadcast %cst_90 : f32 to vector<16x16xf32>
    %227 = arith.mulf %226, %223 : vector<16x16xf32>
    %228 = arith.select %225, %223, %227 : vector<16x16xi1>, vector<16x16xf32>
    %229 = arith.addf %228, %5 : vector<16x16xf32>
    %cst_91 = arith.constant dense<0xFF800000> : vector<16xf32>
    %230 = vector.multi_reduction <maximumf>, %229, %cst_91 [1] : vector<16x16xf32> to vector<16xf32>
    %231 = vector.shape_cast %230 : vector<16xf32> to vector<16x1xf32>
    %232 = vector.broadcast %231 : vector<16x1xf32> to vector<16x16xf32>
    %233 = arith.subf %229, %232 : vector<16x16xf32>
    %234 = math.exp %233 : vector<16x16xf32>
    %cst_92 = arith.constant dense<0.000000e+00> : vector<16xf32>
    %235 = vector.multi_reduction <add>, %234, %cst_92 [1] : vector<16x16xf32> to vector<16xf32>
    %236 = vector.shape_cast %235 : vector<16xf32> to vector<16x1xf32>
    %237 = tpu.reciprocal %236 {approx = true} : vector<16x1xf32> -> vector<16x1xf32>
    %238 = vector.broadcast %237 : vector<16x1xf32> to vector<16x16xf32>
    %239 = arith.mulf %234, %238 : vector<16x16xf32>
    %cst_93 = arith.constant dense<0.000000e+00> : vector<16x32xf32>
    %240 = tpu.matmul %239, %208, %cst_93 {dimension_numbers = #tpu.dot_dimension_numbers<[1], [0], [0], [1], [0, 0, 1, 1], [], []>} : vector<16x16xf32>, vector<16x32xf32>, vector<16x32xf32> -> vector<16x32xf32>
    %241 = vector.broadcast %206 : vector<1x32xf32> to vector<16x32xf32>
    %242 = arith.addf %240, %241 : vector<16x32xf32>
    %c5_94 = arith.constant 5 : index
    %c0_95 = arith.constant 0 : index
    %c0_96 = arith.constant 0 : index
    %243 = vector.load %arg2[%c5_94, %c0_95, %c0_96] : memref<12x32x34xf32, #tpu.memory_space<vmem>>, vector<1x32x34xf32>
    %244 = vector.shape_cast %243 : vector<1x32x34xf32> to vector<32x34xf32>
    %245 = vector.extract_strided_slice %244 {offsets = [0, 0], sizes = [32, 32], strides = [1, 1]} : vector<32x34xf32> to vector<32x32xf32>
    %c7 = arith.constant 7 : index
    %c0_97 = arith.constant 0 : index
    %c0_98 = arith.constant 0 : index
    %246 = vector.load %arg3[%c7, %c0_97, %c0_98] : memref<18x1x32xf32, #tpu.memory_space<vmem>>, vector<1x1x32xf32>
    %247 = vector.shape_cast %246 : vector<1x1x32xf32> to vector<1x32xf32>
    %cst_99 = arith.constant dense<0.000000e+00> : vector<16x32xf32>
    %248 = tpu.matmul %242, %245, %cst_99 {dimension_numbers = #tpu.dot_dimension_numbers<[1], [0], [0], [1], [0, 0, 1, 1], [], []>} : vector<16x32xf32>, vector<32x32xf32>, vector<16x32xf32> -> vector<16x32xf32>
    %cst_100 = arith.constant dense<0.000000e+00> : vector<16x16xf32>
    %249 = tpu.matmul %248, %242, %cst_100 {dimension_numbers = #tpu.dot_dimension_numbers<[1], [1], [0], [0], [0, 0, 1, 0], [], []>} : vector<16x32xf32>, vector<16x32xf32>, vector<16x16xf32> -> vector<16x16xf32>
    %cst_101 = arith.constant dense<0xFF800000> : vector<16xf32>
    %250 = vector.multi_reduction <maximumf>, %249, %cst_101 [1] : vector<16x16xf32> to vector<16xf32>
    %251 = vector.shape_cast %250 : vector<16xf32> to vector<16x1xf32>
    %252 = vector.broadcast %251 : vector<16x1xf32> to vector<16x16xf32>
    %253 = arith.subf %249, %252 : vector<16x16xf32>
    %254 = math.exp %253 : vector<16x16xf32>
    %cst_102 = arith.constant dense<0.000000e+00> : vector<16xf32>
    %255 = vector.multi_reduction <add>, %254, %cst_102 [1] : vector<16x16xf32> to vector<16xf32>
    %256 = vector.shape_cast %255 : vector<16xf32> to vector<16x1xf32>
    %257 = tpu.reciprocal %256 {approx = true} : vector<16x1xf32> -> vector<16x1xf32>
    %258 = vector.broadcast %257 : vector<16x1xf32> to vector<16x16xf32>
    %259 = arith.mulf %254, %258 : vector<16x16xf32>
    %cst_103 = arith.constant dense<0.000000e+00> : vector<16x32xf32>
    %260 = tpu.matmul %259, %242, %cst_103 {dimension_numbers = #tpu.dot_dimension_numbers<[1], [0], [0], [1], [0, 0, 1, 1], [], []>} : vector<16x16xf32>, vector<16x32xf32>, vector<16x32xf32> -> vector<16x32xf32>
    %261 = vector.broadcast %247 : vector<1x32xf32> to vector<16x32xf32>
    %262 = arith.addf %260, %261 : vector<16x32xf32>
    %c8 = arith.constant 8 : index
    %c0_104 = arith.constant 0 : index
    %c0_105 = arith.constant 0 : index
    %263 = vector.load %arg3[%c8, %c0_104, %c0_105] : memref<18x1x32xf32, #tpu.memory_space<vmem>>, vector<1x1x32xf32>
    %264 = vector.shape_cast %263 : vector<1x1x32xf32> to vector<1x32xf32>
    %c9_106 = arith.constant 9 : index
    %c0_107 = arith.constant 0 : index
    %c0_108 = arith.constant 0 : index
    %265 = vector.load %arg3[%c9_106, %c0_107, %c0_108] : memref<18x1x32xf32, #tpu.memory_space<vmem>>, vector<1x1x32xf32>
    %266 = vector.shape_cast %265 : vector<1x1x32xf32> to vector<1x32xf32>
    %267 = arith.addf %262, %160 : vector<16x32xf32>
    %cst_109 = arith.constant dense<0.000000e+00> : vector<16xf32>
    %268 = vector.multi_reduction <add>, %267, %cst_109 [1] : vector<16x32xf32> to vector<16xf32>
    %269 = vector.shape_cast %268 : vector<16xf32> to vector<16x1xf32>
    %cst_110 = arith.constant 3.200000e+01 : f32
    %270 = vector.broadcast %cst_110 : f32 to vector<16x1xf32>
    %271 = arith.divf %269, %270 : vector<16x1xf32>
    %272 = vector.broadcast %271 : vector<16x1xf32> to vector<16x32xf32>
    %273 = arith.subf %267, %272 : vector<16x32xf32>
    %274 = arith.mulf %273, %273 : vector<16x32xf32>
    %cst_111 = arith.constant dense<0.000000e+00> : vector<16xf32>
    %275 = vector.multi_reduction <add>, %274, %cst_111 [1] : vector<16x32xf32> to vector<16xf32>
    %276 = vector.shape_cast %275 : vector<16xf32> to vector<16x1xf32>
    %cst_112 = arith.constant 3.200000e+01 : f32
    %277 = vector.broadcast %cst_112 : f32 to vector<16x1xf32>
    %278 = arith.divf %276, %277 : vector<16x1xf32>
    %279 = vector.broadcast %271 : vector<16x1xf32> to vector<16x32xf32>
    %280 = arith.subf %267, %279 : vector<16x32xf32>
    %cst_113 = arith.constant 9.99999974E-6 : f32
    %281 = vector.broadcast %cst_113 : f32 to vector<16x1xf32>
    %282 = arith.addf %278, %281 : vector<16x1xf32>
    %283 = math.rsqrt %282 : vector<16x1xf32>
    %284 = vector.broadcast %283 : vector<16x1xf32> to vector<16x32xf32>
    %285 = arith.mulf %280, %284 : vector<16x32xf32>
    %286 = vector.broadcast %264 : vector<1x32xf32> to vector<16x32xf32>
    %287 = arith.mulf %285, %286 : vector<16x32xf32>
    %288 = vector.broadcast %266 : vector<1x32xf32> to vector<16x32xf32>
    %289 = arith.addf %287, %288 : vector<16x32xf32>
    %c6_114 = arith.constant 6 : index
    %c0_115 = arith.constant 0 : index
    %c0_116 = arith.constant 0 : index
    %290 = vector.load %arg2[%c6_114, %c0_115, %c0_116] : memref<12x32x34xf32, #tpu.memory_space<vmem>>, vector<1x32x34xf32>
    %291 = vector.shape_cast %290 : vector<1x32x34xf32> to vector<32x34xf32>
    %c10 = arith.constant 10 : index
    %c0_117 = arith.constant 0 : index
    %c0_118 = arith.constant 0 : index
    %292 = vector.load %arg3[%c10, %c0_117, %c0_118] : memref<18x1x32xf32, #tpu.memory_space<vmem>>, vector<1x1x32xf32>
    %293 = vector.shape_cast %292 : vector<1x1x32xf32> to vector<1x32xf32>
    %cst_119 = arith.constant dense<0.000000e+00> : vector<16x34xf32>
    %294 = tpu.matmul %289, %291, %cst_119 {dimension_numbers = #tpu.dot_dimension_numbers<[1], [0], [0], [1], [0, 0, 1, 1], [], []>} : vector<16x32xf32>, vector<32x34xf32>, vector<16x34xf32> -> vector<16x34xf32>
    %295 = vector.extract_strided_slice %294 {offsets = [0, 0], sizes = [16, 32], strides = [1, 1]} : vector<16x34xf32> to vector<16x32xf32>
    %296 = vector.broadcast %17 : vector<1x34xf32> to vector<16x34xf32>
    %297 = arith.mulf %294, %296 : vector<16x34xf32>
    %cst_120 = arith.constant dense<0.000000e+00> : vector<16xf32>
    %298 = vector.multi_reduction <add>, %297, %cst_120 [1] : vector<16x34xf32> to vector<16xf32>
    %299 = vector.shape_cast %298 : vector<16xf32> to vector<16x1xf32>
    %300 = vector.broadcast %22 : vector<1x34xf32> to vector<16x34xf32>
    %301 = arith.mulf %294, %300 : vector<16x34xf32>
    %cst_121 = arith.constant dense<0.000000e+00> : vector<16xf32>
    %302 = vector.multi_reduction <add>, %301, %cst_121 [1] : vector<16x34xf32> to vector<16xf32>
    %303 = vector.shape_cast %302 : vector<16xf32> to vector<16x1xf32>
    %304 = vector.broadcast %303 : vector<16x1xf32> to vector<16x16xf32>
    %305 = arith.mulf %304, %11 : vector<16x16xf32>
    %cst_122 = arith.constant dense<0.000000e+00> : vector<16xf32>
    %306 = vector.multi_reduction <add>, %305, %cst_122 [0] : vector<16x16xf32> to vector<16xf32>
    %307 = vector.shape_cast %306 : vector<16xf32> to vector<1x16xf32>
    %308 = vector.broadcast %299 : vector<16x1xf32> to vector<16x16xf32>
    %309 = vector.broadcast %307 : vector<1x16xf32> to vector<16x16xf32>
    %310 = arith.addf %308, %309 : vector<16x16xf32>
    %cst_123 = arith.constant 0.000000e+00 : f32
    %311 = vector.broadcast %cst_123 : f32 to vector<16x16xf32>
    %312 = arith.cmpf ogt, %310, %311 : vector<16x16xf32>
    %cst_124 = arith.constant 2.000000e-01 : f32
    %313 = vector.broadcast %cst_124 : f32 to vector<16x16xf32>
    %314 = arith.mulf %313, %310 : vector<16x16xf32>
    %315 = arith.select %312, %310, %314 : vector<16x16xi1>, vector<16x16xf32>
    %316 = arith.addf %315, %5 : vector<16x16xf32>
    %cst_125 = arith.constant dense<0xFF800000> : vector<16xf32>
    %317 = vector.multi_reduction <maximumf>, %316, %cst_125 [1] : vector<16x16xf32> to vector<16xf32>
    %318 = vector.shape_cast %317 : vector<16xf32> to vector<16x1xf32>
    %319 = vector.broadcast %318 : vector<16x1xf32> to vector<16x16xf32>
    %320 = arith.subf %316, %319 : vector<16x16xf32>
    %321 = math.exp %320 : vector<16x16xf32>
    %cst_126 = arith.constant dense<0.000000e+00> : vector<16xf32>
    %322 = vector.multi_reduction <add>, %321, %cst_126 [1] : vector<16x16xf32> to vector<16xf32>
    %323 = vector.shape_cast %322 : vector<16xf32> to vector<16x1xf32>
    %324 = tpu.reciprocal %323 {approx = true} : vector<16x1xf32> -> vector<16x1xf32>
    %325 = vector.broadcast %324 : vector<16x1xf32> to vector<16x16xf32>
    %326 = arith.mulf %321, %325 : vector<16x16xf32>
    %cst_127 = arith.constant dense<0.000000e+00> : vector<16x32xf32>
    %327 = tpu.matmul %326, %295, %cst_127 {dimension_numbers = #tpu.dot_dimension_numbers<[1], [0], [0], [1], [0, 0, 1, 1], [], []>} : vector<16x16xf32>, vector<16x32xf32>, vector<16x32xf32> -> vector<16x32xf32>
    %328 = vector.broadcast %293 : vector<1x32xf32> to vector<16x32xf32>
    %329 = arith.addf %327, %328 : vector<16x32xf32>
    %cst_128 = arith.constant 0.000000e+00 : f32
    %330 = vector.broadcast %cst_128 : f32 to vector<16x32xf32>
    %331 = arith.maximumf %329, %330 : vector<16x32xf32>
    %c7_129 = arith.constant 7 : index
    %c0_130 = arith.constant 0 : index
    %c0_131 = arith.constant 0 : index
    %332 = vector.load %arg2[%c7_129, %c0_130, %c0_131] : memref<12x32x34xf32, #tpu.memory_space<vmem>>, vector<1x32x34xf32>
    %333 = vector.shape_cast %332 : vector<1x32x34xf32> to vector<32x34xf32>
    %c11 = arith.constant 11 : index
    %c0_132 = arith.constant 0 : index
    %c0_133 = arith.constant 0 : index
    %334 = vector.load %arg3[%c11, %c0_132, %c0_133] : memref<18x1x32xf32, #tpu.memory_space<vmem>>, vector<1x1x32xf32>
    %335 = vector.shape_cast %334 : vector<1x1x32xf32> to vector<1x32xf32>
    %cst_134 = arith.constant dense<0.000000e+00> : vector<16x34xf32>
    %336 = tpu.matmul %331, %333, %cst_134 {dimension_numbers = #tpu.dot_dimension_numbers<[1], [0], [0], [1], [0, 0, 1, 1], [], []>} : vector<16x32xf32>, vector<32x34xf32>, vector<16x34xf32> -> vector<16x34xf32>
    %337 = vector.extract_strided_slice %336 {offsets = [0, 0], sizes = [16, 32], strides = [1, 1]} : vector<16x34xf32> to vector<16x32xf32>
    %338 = vector.broadcast %17 : vector<1x34xf32> to vector<16x34xf32>
    %339 = arith.mulf %336, %338 : vector<16x34xf32>
    %cst_135 = arith.constant dense<0.000000e+00> : vector<16xf32>
    %340 = vector.multi_reduction <add>, %339, %cst_135 [1] : vector<16x34xf32> to vector<16xf32>
    %341 = vector.shape_cast %340 : vector<16xf32> to vector<16x1xf32>
    %342 = vector.broadcast %22 : vector<1x34xf32> to vector<16x34xf32>
    %343 = arith.mulf %336, %342 : vector<16x34xf32>
    %cst_136 = arith.constant dense<0.000000e+00> : vector<16xf32>
    %344 = vector.multi_reduction <add>, %343, %cst_136 [1] : vector<16x34xf32> to vector<16xf32>
    %345 = vector.shape_cast %344 : vector<16xf32> to vector<16x1xf32>
    %346 = vector.broadcast %345 : vector<16x1xf32> to vector<16x16xf32>
    %347 = arith.mulf %346, %11 : vector<16x16xf32>
    %cst_137 = arith.constant dense<0.000000e+00> : vector<16xf32>
    %348 = vector.multi_reduction <add>, %347, %cst_137 [0] : vector<16x16xf32> to vector<16xf32>
    %349 = vector.shape_cast %348 : vector<16xf32> to vector<1x16xf32>
    %350 = vector.broadcast %341 : vector<16x1xf32> to vector<16x16xf32>
    %351 = vector.broadcast %349 : vector<1x16xf32> to vector<16x16xf32>
    %352 = arith.addf %350, %351 : vector<16x16xf32>
    %cst_138 = arith.constant 0.000000e+00 : f32
    %353 = vector.broadcast %cst_138 : f32 to vector<16x16xf32>
    %354 = arith.cmpf ogt, %352, %353 : vector<16x16xf32>
    %cst_139 = arith.constant 2.000000e-01 : f32
    %355 = vector.broadcast %cst_139 : f32 to vector<16x16xf32>
    %356 = arith.mulf %355, %352 : vector<16x16xf32>
    %357 = arith.select %354, %352, %356 : vector<16x16xi1>, vector<16x16xf32>
    %358 = arith.addf %357, %5 : vector<16x16xf32>
    %cst_140 = arith.constant dense<0xFF800000> : vector<16xf32>
    %359 = vector.multi_reduction <maximumf>, %358, %cst_140 [1] : vector<16x16xf32> to vector<16xf32>
    %360 = vector.shape_cast %359 : vector<16xf32> to vector<16x1xf32>
    %361 = vector.broadcast %360 : vector<16x1xf32> to vector<16x16xf32>
    %362 = arith.subf %358, %361 : vector<16x16xf32>
    %363 = math.exp %362 : vector<16x16xf32>
    %cst_141 = arith.constant dense<0.000000e+00> : vector<16xf32>
    %364 = vector.multi_reduction <add>, %363, %cst_141 [1] : vector<16x16xf32> to vector<16xf32>
    %365 = vector.shape_cast %364 : vector<16xf32> to vector<16x1xf32>
    %366 = tpu.reciprocal %365 {approx = true} : vector<16x1xf32> -> vector<16x1xf32>
    %367 = vector.broadcast %366 : vector<16x1xf32> to vector<16x16xf32>
    %368 = arith.mulf %363, %367 : vector<16x16xf32>
    %cst_142 = arith.constant dense<0.000000e+00> : vector<16x32xf32>
    %369 = tpu.matmul %368, %337, %cst_142 {dimension_numbers = #tpu.dot_dimension_numbers<[1], [0], [0], [1], [0, 0, 1, 1], [], []>} : vector<16x16xf32>, vector<16x32xf32>, vector<16x32xf32> -> vector<16x32xf32>
    %370 = vector.broadcast %335 : vector<1x32xf32> to vector<16x32xf32>
    %371 = arith.addf %369, %370 : vector<16x32xf32>
    %c8_143 = arith.constant 8 : index
    %c0_144 = arith.constant 0 : index
    %c0_145 = arith.constant 0 : index
    %372 = vector.load %arg2[%c8_143, %c0_144, %c0_145] : memref<12x32x34xf32, #tpu.memory_space<vmem>>, vector<1x32x34xf32>
    %373 = vector.shape_cast %372 : vector<1x32x34xf32> to vector<32x34xf32>
    %374 = vector.extract_strided_slice %373 {offsets = [0, 0], sizes = [32, 32], strides = [1, 1]} : vector<32x34xf32> to vector<32x32xf32>
    %c12 = arith.constant 12 : index
    %c0_146 = arith.constant 0 : index
    %c0_147 = arith.constant 0 : index
    %375 = vector.load %arg3[%c12, %c0_146, %c0_147] : memref<18x1x32xf32, #tpu.memory_space<vmem>>, vector<1x1x32xf32>
    %376 = vector.shape_cast %375 : vector<1x1x32xf32> to vector<1x32xf32>
    %cst_148 = arith.constant dense<0.000000e+00> : vector<16x32xf32>
    %377 = tpu.matmul %371, %374, %cst_148 {dimension_numbers = #tpu.dot_dimension_numbers<[1], [0], [0], [1], [0, 0, 1, 1], [], []>} : vector<16x32xf32>, vector<32x32xf32>, vector<16x32xf32> -> vector<16x32xf32>
    %cst_149 = arith.constant dense<0.000000e+00> : vector<16x16xf32>
    %378 = tpu.matmul %377, %371, %cst_149 {dimension_numbers = #tpu.dot_dimension_numbers<[1], [1], [0], [0], [0, 0, 1, 0], [], []>} : vector<16x32xf32>, vector<16x32xf32>, vector<16x16xf32> -> vector<16x16xf32>
    %cst_150 = arith.constant dense<0xFF800000> : vector<16xf32>
    %379 = vector.multi_reduction <maximumf>, %378, %cst_150 [1] : vector<16x16xf32> to vector<16xf32>
    %380 = vector.shape_cast %379 : vector<16xf32> to vector<16x1xf32>
    %381 = vector.broadcast %380 : vector<16x1xf32> to vector<16x16xf32>
    %382 = arith.subf %378, %381 : vector<16x16xf32>
    %383 = math.exp %382 : vector<16x16xf32>
    %cst_151 = arith.constant dense<0.000000e+00> : vector<16xf32>
    %384 = vector.multi_reduction <add>, %383, %cst_151 [1] : vector<16x16xf32> to vector<16xf32>
    %385 = vector.shape_cast %384 : vector<16xf32> to vector<16x1xf32>
    %386 = tpu.reciprocal %385 {approx = true} : vector<16x1xf32> -> vector<16x1xf32>
    %387 = vector.broadcast %386 : vector<16x1xf32> to vector<16x16xf32>
    %388 = arith.mulf %383, %387 : vector<16x16xf32>
    %cst_152 = arith.constant dense<0.000000e+00> : vector<16x32xf32>
    %389 = tpu.matmul %388, %371, %cst_152 {dimension_numbers = #tpu.dot_dimension_numbers<[1], [0], [0], [1], [0, 0, 1, 1], [], []>} : vector<16x16xf32>, vector<16x32xf32>, vector<16x32xf32> -> vector<16x32xf32>
    %390 = vector.broadcast %376 : vector<1x32xf32> to vector<16x32xf32>
    %391 = arith.addf %389, %390 : vector<16x32xf32>
    %c13 = arith.constant 13 : index
    %c0_153 = arith.constant 0 : index
    %c0_154 = arith.constant 0 : index
    %392 = vector.load %arg3[%c13, %c0_153, %c0_154] : memref<18x1x32xf32, #tpu.memory_space<vmem>>, vector<1x1x32xf32>
    %393 = vector.shape_cast %392 : vector<1x1x32xf32> to vector<1x32xf32>
    %c14 = arith.constant 14 : index
    %c0_155 = arith.constant 0 : index
    %c0_156 = arith.constant 0 : index
    %394 = vector.load %arg3[%c14, %c0_155, %c0_156] : memref<18x1x32xf32, #tpu.memory_space<vmem>>, vector<1x1x32xf32>
    %395 = vector.shape_cast %394 : vector<1x1x32xf32> to vector<1x32xf32>
    %396 = arith.addf %391, %289 : vector<16x32xf32>
    %cst_157 = arith.constant dense<0.000000e+00> : vector<16xf32>
    %397 = vector.multi_reduction <add>, %396, %cst_157 [1] : vector<16x32xf32> to vector<16xf32>
    %398 = vector.shape_cast %397 : vector<16xf32> to vector<16x1xf32>
    %cst_158 = arith.constant 3.200000e+01 : f32
    %399 = vector.broadcast %cst_158 : f32 to vector<16x1xf32>
    %400 = arith.divf %398, %399 : vector<16x1xf32>
    %401 = vector.broadcast %400 : vector<16x1xf32> to vector<16x32xf32>
    %402 = arith.subf %396, %401 : vector<16x32xf32>
    %403 = arith.mulf %402, %402 : vector<16x32xf32>
    %cst_159 = arith.constant dense<0.000000e+00> : vector<16xf32>
    %404 = vector.multi_reduction <add>, %403, %cst_159 [1] : vector<16x32xf32> to vector<16xf32>
    %405 = vector.shape_cast %404 : vector<16xf32> to vector<16x1xf32>
    %cst_160 = arith.constant 3.200000e+01 : f32
    %406 = vector.broadcast %cst_160 : f32 to vector<16x1xf32>
    %407 = arith.divf %405, %406 : vector<16x1xf32>
    %408 = vector.broadcast %400 : vector<16x1xf32> to vector<16x32xf32>
    %409 = arith.subf %396, %408 : vector<16x32xf32>
    %cst_161 = arith.constant 9.99999974E-6 : f32
    %410 = vector.broadcast %cst_161 : f32 to vector<16x1xf32>
    %411 = arith.addf %407, %410 : vector<16x1xf32>
    %412 = math.rsqrt %411 : vector<16x1xf32>
    %413 = vector.broadcast %412 : vector<16x1xf32> to vector<16x32xf32>
    %414 = arith.mulf %409, %413 : vector<16x32xf32>
    %415 = vector.broadcast %393 : vector<1x32xf32> to vector<16x32xf32>
    %416 = arith.mulf %414, %415 : vector<16x32xf32>
    %417 = vector.broadcast %395 : vector<1x32xf32> to vector<16x32xf32>
    %418 = arith.addf %416, %417 : vector<16x32xf32>
    %cst_162 = arith.constant dense<0.000000e+00> : vector<32xf32>
    %419 = vector.multi_reduction <add>, %418, %cst_162 [0] : vector<16x32xf32> to vector<32xf32>
    %420 = vector.shape_cast %419 : vector<32xf32> to vector<1x32xf32>
    %cst_163 = arith.constant 1.600000e+01 : f32
    %421 = vector.broadcast %cst_163 : f32 to vector<1x32xf32>
    %422 = arith.divf %420, %421 : vector<1x32xf32>
    %c10_164 = arith.constant 10 : index
    %c0_165 = arith.constant 0 : index
    %c0_166 = arith.constant 0 : index
    %423 = vector.load %arg2[%c10_164, %c0_165, %c0_166] : memref<12x32x34xf32, #tpu.memory_space<vmem>>, vector<1x32x34xf32>
    %424 = vector.shape_cast %423 : vector<1x32x34xf32> to vector<32x34xf32>
    %425 = vector.extract_strided_slice %424 {offsets = [0, 0], sizes = [32, 32], strides = [1, 1]} : vector<32x34xf32> to vector<32x32xf32>
    %cst_167 = arith.constant dense<0.000000e+00> : vector<1x32xf32>
    %426 = tpu.matmul %422, %425, %cst_167 {dimension_numbers = #tpu.dot_dimension_numbers<[1], [0], [0], [1], [0, 0, 1, 1], [], []>} : vector<1x32xf32>, vector<32x32xf32>, vector<1x32xf32> -> vector<1x32xf32>
    %c16 = arith.constant 16 : index
    %c0_168 = arith.constant 0 : index
    %c0_169 = arith.constant 0 : index
    %427 = vector.load %arg3[%c16, %c0_168, %c0_169] : memref<18x1x32xf32, #tpu.memory_space<vmem>>, vector<1x1x32xf32>
    %428 = vector.shape_cast %427 : vector<1x1x32xf32> to vector<1x32xf32>
    %429 = arith.addf %426, %428 : vector<1x32xf32>
    %cst_170 = arith.constant 0.000000e+00 : f32
    %430 = vector.broadcast %cst_170 : f32 to vector<1x32xf32>
    %431 = arith.maximumf %429, %430 : vector<1x32xf32>
    %c11_171 = arith.constant 11 : index
    %c0_172 = arith.constant 0 : index
    %c0_173 = arith.constant 0 : index
    %432 = vector.load %arg2[%c11_171, %c0_172, %c0_173] : memref<12x32x34xf32, #tpu.memory_space<vmem>>, vector<1x32x34xf32>
    %433 = vector.shape_cast %432 : vector<1x32x34xf32> to vector<32x34xf32>
    %434 = vector.extract_strided_slice %433 {offsets = [0, 0], sizes = [32, 3], strides = [1, 1]} : vector<32x34xf32> to vector<32x3xf32>
    %cst_174 = arith.constant dense<0.000000e+00> : vector<1x3xf32>
    %435 = tpu.matmul %431, %434, %cst_174 {dimension_numbers = #tpu.dot_dimension_numbers<[1], [0], [0], [1], [0, 0, 1, 1], [], []>} : vector<1x32xf32>, vector<32x3xf32>, vector<1x3xf32> -> vector<1x3xf32>
    %c17 = arith.constant 17 : index
    %c0_175 = arith.constant 0 : index
    %c0_176 = arith.constant 0 : index
    %436 = vector.load %arg3[%c17, %c0_175, %c0_176] : memref<18x1x32xf32, #tpu.memory_space<vmem>>, vector<1x1x32xf32>
    %437 = vector.shape_cast %436 : vector<1x1x32xf32> to vector<1x32xf32>
    %438 = vector.extract_strided_slice %437 {offsets = [0, 0], sizes = [1, 3], strides = [1, 1]} : vector<1x32xf32> to vector<1x3xf32>
    %439 = arith.addf %435, %438 : vector<1x3xf32>
    %c0_177 = arith.constant 0 : index
    %c0_178 = arith.constant 0 : index
    %440 = vector.load %arg4[%c0_177, %c0_178] : memref<1x3xf32, #tpu.memory_space<vmem>>, vector<1x3xf32>
    tpu.vector_store %arg4[%c0_177, %c0_178], %439 {strides = array<i32>} : memref<1x3xf32, #tpu.memory_space<vmem>>, vector<1x3xf32>,
    return
  }
}

</mosaic_0001>

<llo_original>
// kernel: _forward_impl.1
$region0: #{_forward_impl.1}
  #allocation0 [shape = 'u32[]', space=smem, size = 0x4, offset = 0x4, fixed_abs, tag = 'smem constant byte address 0x4 - core index']
  #allocation1 [shape = 'u32[144,128]{1,0:T(1,128)}', space=vmem, size = 0x12000, scoped, tag = 'internal scratch']
  %s0 = inlined_call_operand.vmem [shape: f32[16,8], index: 0, kind: input, shape index: {}]
  %s1 = inlined_call_operand.vmem [shape: f32[16,16], index: 1, kind: input, shape index: {}]
  %s2 = inlined_call_operand.hbm [shape: f32[12,32,34], index: 2, kind: input, shape index: {}]
  %s3 = inlined_call_operand.vmem [shape: f32[18,1,32], index: 3, kind: input, shape index: {}]
  %s4 = inlined_call_operand.hbm [shape: f32[1,3], index: 4, kind: output, shape index: {}]
  %s5 = sld [smem:[#allocation0]]
  $region30: #{_forward_impl.1} parent=0
    _
  %s7 = ssub.s32 1, %s5
  %s8 = scalar_select 0, %s7, %s5
  $region1: #{_forward_impl.1} parent=0
    #allocation2 [shape = 'u8[196608]{0}', space=vmem, size = 0x30000, scoped, tag = 'input window, operand 2, single buffered']
    #allocation3 [shape = 's32[1]{0}', space=sflag, size = 0x4, scoped, tag = 'scoped memory for _forward_impl.1']
    #allocation4 [shape = 's32[1]{0}', space=sflag, size = 0x4, scoped, tag = 'scoped memory for _forward_impl.1']
    #allocation5 [shape = 'u8[512]{0}', space=vmem, size = 0x400, scoped, tag = 'output window, operand 0, single buffered']
    %9 = vsyncpa [#allocation3], 0
    %10 = vsyncpa [#allocation4], 0
    // Predicated region
    $region2: #{_forward_impl.1} parent=1 // pred_check
      _
    $region3: #{_forward_impl.1} parent=1 // pred_check_branch
      %12 = sbr.rel (0) target = $region5
    $region4: #{_forward_impl.1} parent=1 // pred_region
      _
    $region5: #{_forward_impl.1} parent=1 // pred_fallthru
      _
    // Predicated region
    $region6: #{_forward_impl.1} parent=1 // pred_check
      _
    $region7: #{_forward_impl.1} parent=1 // pred_check_branch
      %14 = sbr.rel (0) target = $region9
    $region8: #{_forward_impl.1} parent=1 // pred_region
      _
    $region9: #{_forward_impl.1} parent=1 // pred_fallthru
      _
    // Predicated region
    $region10: #{_forward_impl.1} parent=1 // pred_check
      _
    $region11: #{_forward_impl.1} parent=1 // pred_check_branch
      %16 = sbr.rel (0) target = $region13
    $region12: #{_forward_impl.1} parent=1 // pred_region
      %s18 = ssub.s32 6144, 6144
      %19 = vsyncadd [#allocation3], %s18
      %s20 = sshll.u32 [#allocation2], 4
      %s21 = int_to_ptr.vmem [resolvable:$true] %s20
      %26 = dma.hbm_to_vmem [thread:$0]  %s2, 6144, %s21, [#allocation3], 128, 128, 8
    $region13: #{_forward_impl.1} parent=1 // pred_fallthru
      _
    // Predicated region
    $region14: #{_forward_impl.1} parent=1 // pred_check
      _
    $region15: #{_forward_impl.1} parent=1 // pred_check_branch
      %28 = sbr.rel (0) target = $region17
    $region16: #{_forward_impl.1} parent=1 // pred_region
      _
    $region17: #{_forward_impl.1} parent=1 // pred_fallthru
      _
    // Predicated region
    $region18: #{_forward_impl.1} parent=1 // pred_check
      _
    $region19: #{_forward_impl.1} parent=1 // pred_check_branch
      %30 = sbr.rel (0) target = $region21
    $region20: #{_forward_impl.1} parent=1 // pred_region
      %31 = dma.done [#allocation3], 6144
    $region21: #{_forward_impl.1} parent=1 // pred_fallthru
      _
    %v32 = vld [vmem:[%s1] sm:$0xff]
    %v33 = vld [vmem:[%s1 + $0x8] sm:$0xff]
    %vm34 = vcmp.gt.f32.partialorder %v32, 0.0
    %vm35 = vcmp.gt.f32.partialorder %v33, 0.0
    %v36 = vsel %vm34, 0.0, -1e+30
    %v37 = vsel %vm35, 0.0, -1e+30
    %v38 = vlaneseq
    %v39 = vshrl.u32 %v38, 7
    %v40 = vadd.s32 %v39, 8
    %v41 = vlaneseq
    %v42 = vand.u32 %v41, 127
    %vm43 = vcmp.eq.s32.totalorder %v39, %v42
    %vm44 = vcmp.eq.s32.totalorder %v40, %v42
    %v45 = vsel %vm43, 1.0, 0.0
    %v46 = vsel %vm44, 1.0, 0.0
    %vm47 = vcmp.eq.s32.totalorder %v42, 32
    %v48 = vsel %vm47, 1.0, 0.0
    %vm49 = vcmp.eq.s32.totalorder %v42, 33
    %v50 = vsel %vm49, 1.0, 0.0
    %s51 = scalar_lea.vmem [#allocation2], 288
    %v52 = vld [vmem:[%s51] sm:$0xff]
    %v53 = vld [vmem:[%s0] sm:$0xff]
    %v54 = vld [vmem:[%s0 + $0x8] sm:$0xff]
    %s55 = scalar_lea.vmem %s3, 15
    %v56 = vld [vmem:[%s55] sm:$0x1]
    %v58 = vlaneseq
    %v59 = vshrl.u32 %v58, 7
    %v60 = vsub.s32 0, %v59
    %v61 = vrot.slane %v56, %v60
    %vm63 = vcmask 64512
    %v65 = vsel %vm63, %v53, 0
    %v68 = vsel %vm63, %v54, 0
    %70 = vmatprep.subr.mxu0 0.0
    %71 = vmatpush1.msra.mxu0 %v52
    %72 = vmatprep.subr.mxu0 0.0
    %73 = vmatpush1.msra.mxu0 0.0
    %74 = vmatprep.subr.mxu0 0.0
    %75 = vmatpush1.msra.mxu0 0.0
    %76 = vmatprep.subr.mxu0 0.0
    %77 = vmatpush1.msra.mxu0 0.0
    %78 = vmatprep.subr.mxu0 0.0
    %79 = vmatpush1.msra.mxu0 0.0
    %80 = vmatprep.subr.mxu0 0.0
    %81 = vmatpush1.msra.mxu0 0.0
    %82 = vmatprep.subr.mxu0 0.0
    %83 = vmatpush1.msra.mxu0 0.0
    %84 = vmatprep.subr.mxu0 0.0
    %85 = vmatpush1.msra.mxu0 0.0
    %86 = vmatprep.subr.mxu0 0.0
    %87 = vmatpush1.msra.mxu0 0.0
    %88 = vmatprep.subr.mxu0 0.0
    %89 = vmatpush1.msra.mxu0 0.0
    %90 = vmatprep.subr.mxu0 0.0
    %91 = vmatpush1.msra.mxu0 0.0
    %92 = vmatprep.subr.mxu0 0.0
    %93 = vmatpush1.msra.mxu0 0.0
    %94 = vmatprep.subr.mxu0 0.0
    %95 = vmatpush1.msra.mxu0 0.0
    %96 = vmatprep.subr.mxu0 0.0
    %97 = vmatpush1.msra.mxu0 0.0
    %98 = vmatprep.subr.mxu0 0.0
    %99 = vmatpush1.msra.mxu0 0.0
    %100 = vmatprep.subr.mxu0 0.0
    %101 = vmatpush1.msra.mxu0 0.0
    %102 = vmatprep.subr.mxu0 0.0
    %103 = vmatpush1.msra.mxu0 0.0
    %104 = vmatprep.subr.mxu0 0.0
    %105 = vmatpush1.msra.mxu0 0.0
    %106 = vmatprep.subr.mxu0 0.0
    %107 = vmatpush1.msra.mxu0 0.0
    %108 = vmatprep.subr.mxu0 0.0
    %109 = vmatpush1.msra.mxu0 0.0
    %110 = vmatprep.subr.mxu0 0.0
    %111 = vmatpush1.msra.mxu0 0.0
    %112 = vmatprep.subr.mxu0 0.0
    %113 = vmatpush1.msra.mxu0 0.0
    %114 = vmatprep.subr.mxu0 0.0
    %115 = vmatpush1.msra.mxu0 0.0
    %116 = vmatprep.subr.mxu0 0.0
    %117 = vmatpush1.msra.mxu0 0.0
    %118 = vmatprep.subr.mxu0 0.0
    %119 = vmatpush1.msra.mxu0 0.0
    %120 = vmatprep.subr.mxu0 0.0
    %121 = vmatpush1.msra.mxu0 0.0
    %122 = vmatprep.subr.mxu0 0.0
    %123 = vmatpush1.msra.mxu0 0.0
    %124 = vmatprep.subr.mxu0 0.0
    %125 = vmatpush1.msra.mxu0 0.0
    %126 = vmatprep.subr.mxu0 0.0
    %127 = vmatpush1.msra.mxu0 0.0
    %128 = vmatprep.subr.mxu0 0.0
    %129 = vmatpush1.msra.mxu0 0.0
    %130 = vmatprep.subr.mxu0 0.0
    %131 = vmatpush1.msra.mxu0 0.0
    %132 = vmatprep.subr.mxu0 0.0
    %133 = vmatpush1.msra.mxu0 0.0
    %134 = vmatprep.mubr.f32.mxu0 0.0
    %135 = vmatmul.mubr.f32.gmra.mrb[0].mxu0 %v65
    %v136 = vpop.f32.mrb[0].mxu0
    %v137 = vadd.f32 %v61, %v136
    %v138 = vpop.f32.mrb[0].mxu0
    %139 = vmatprep.mubr.f32.mxu0 0.0
    %140 = vmatmul.mubr.f32.gmra.mrb[0].mxu0 %v68
    %v141 = vpop.f32.mrb[0].mxu0
    %v142 = vadd.f32 %v61, %v141
    %v143 = vpop.f32.mrb[0].mxu0
    %144 = vdwg.mxu0
    %v145 = vld [vmem:[#allocation2] sm:$0xff]
    %v146 = vld [vmem:[#allocation2 + $0x8] sm:$0xff]
    %v147 = vld [vmem:[#allocation2 + $0x10] sm:$0xff]
    %v148 = vld [vmem:[#allocation2 + $0x18] sm:$0xff]
    %v149 = vld [vmem:[%s3] sm:$0x1]
    %vm150 = vcmask 261120
    %v152 = vsel %vm150, %v137, 0
    %v155 = vsel %vm150, %v142, 0
    %157 = vmatprep.subr.mxu0 0.0
    %158 = vmatpush1.msra.mxu0 %v145
    %159 = vmatprep.subr.mxu0 0.0
    %160 = vmatpush1.msra.mxu0 %v146
    %161 = vmatprep.subr.mxu0 0.0
    %162 = vmatpush1.msra.mxu0 %v147
    %163 = vmatprep.subr.mxu0 0.0
    %164 = vmatpush1.msra.mxu0 %v148
    %165 = vmatprep.subr.mxu0 0.0
    %166 = vmatpush1.msra.mxu0 0.0
    %167 = vmatprep.subr.mxu0 0.0
    %168 = vmatpush1.msra.mxu0 0.0
    %169 = vmatprep.subr.mxu0 0.0
    %170 = vmatpush1.msra.mxu0 0.0
    %171 = vmatprep.subr.mxu0 0.0
    %172 = vmatpush1.msra.mxu0 0.0
    %173 = vmatprep.subr.mxu0 0.0
    %174 = vmatpush1.msra.mxu0 0.0
    %175 = vmatprep.subr.mxu0 0.0
    %176 = vmatpush1.msra.mxu0 0.0
    %177 = vmatprep.subr.mxu0 0.0
    %178 = vmatpush1.msra.mxu0 0.0
    %179 = vmatprep.subr.mxu0 0.0
    %180 = vmatpush1.msra.mxu0 0.0
    %181 = vmatprep.subr.mxu0 0.0
    %182 = vmatpush1.msra.mxu0 0.0
    %183 = vmatprep.subr.mxu0 0.0
    %184 = vmatpush1.msra.mxu0 0.0
    %185 = vmatprep.subr.mxu0 0.0
    %186 = vmatpush1.msra.mxu0 0.0
    %187 = vmatprep.subr.mxu0 0.0
    %188 = vmatpush1.msra.mxu0 0.0
    %189 = vmatprep.subr.mxu0 0.0
    %190 = vmatpush1.msra.mxu0 0.0
    %191 = vmatprep.subr.mxu0 0.0
    %192 = vmatpush1.msra.mxu0 0.0
    %193 = vmatprep.subr.mxu0 0.0
    %194 = vmatpush1.msra.mxu0 0.0
    %195 = vmatprep.subr.mxu0 0.0
    %196 = vmatpush1.msra.mxu0 0.0
    %197 = vmatprep.subr.mxu0 0.0
    %198 = vmatpush1.msra.mxu0 0.0
    %199 = vmatprep.subr.mxu0 0.0
    %200 = vmatpush1.msra.mxu0 0.0
    %201 = vmatprep.subr.mxu0 0.0
    %202 = vmatpush1.msra.mxu0 0.0
    %203 = vmatprep.subr.mxu0 0.0
    %204 = vmatpush1.msra.mxu0 0.0
    %205 = vmatprep.subr.mxu0 0.0
    %206 = vmatpush1.msra.mxu0 0.0
    %207 = vmatprep.subr.mxu0 0.0
    %208 = vmatpush1.msra.mxu0 0.0
    %209 = vmatprep.subr.mxu0 0.0
    %210 = vmatpush1.msra.mxu0 0.0
    %211 = vmatprep.subr.mxu0 0.0
    %212 = vmatpush1.msra.mxu0 0.0
    %213 = vmatprep.subr.mxu0 0.0
    %214 = vmatpush1.msra.mxu0 0.0
    %215 = vmatprep.subr.mxu0 0.0
    %216 = vmatpush1.msra.mxu0 0.0
    %217 = vmatprep.subr.mxu0 0.0
    %218 = vmatpush1.msra.mxu0 0.0
    %219 = vmatprep.subr.mxu0 0.0
    %220 = vmatpush1.msra.mxu0 0.0
    %221 = vmatprep.mubr.f32.mxu0 0.0
    %222 = vmatmul.mubr.f32.gmra.mrb[0].mxu0 %v152
    %v223 = vpop.f32.mrb[0].mxu0
    %v224 = vadd.f32 0.0, %v223
    %v225 = vpop.f32.mrb[0].mxu0
    %226 = vmatprep.mubr.f32.mxu0 0.0
    %227 = vmatmul.mubr.f32.gmra.mrb[0].mxu0 %v155
    %v228 = vpop.f32.mrb[0].mxu0
    %v229 = vadd.f32 0.0, %v228
    %v230 = vpop.f32.mrb[0].mxu0
    %231 = vdwg.mxu0
    %v232 = vmul.f32 %v224, %v48
    %v233 = vmul.f32 %v229, %v48
    %vm234 = vcmask 277504
    %v235 = vsel %vm234, %v232, 0.0
    %236 = vadd.xlane.f32.xlu0 %v235
    %v237 = vpop.xlane.xlu0 %236
    %v238 = vsel %vm234, %v233, 0.0
    %239 = vadd.xlane.f32.xlu0 %v238
    %v240 = vpop.xlane.xlu0 %239
    %v241 = vmul.f32 %v224, %v50
    %v242 = vmul.f32 %v229, %v50
    %v243 = vsel %vm234, %v241, 0.0
    %244 = vadd.xlane.f32.xlu0 %v243
    %v245 = vpop.xlane.xlu0 %244
    %v246 = vsel %vm234, %v242, 0.0
    %247 = vadd.xlane.f32.xlu0 %v246
    %v248 = vpop.xlane.xlu0 %247
    %v249 = vmul.f32 %v245, %v45
    %v250 = vmul.f32 %v248, %v46
    %vm251 = vcmask 130048
    %v252 = vsel %vm251, %v249, 0.0
    %v253 = vsel %vm251, %v250, 0.0
    %v254 = vadd.f32 %v252, %v253
    %v255 = vrot.slane %v254, 4
    %v256 = vadd.f32 %v254, %v255
    %v257 = vrot.slane %v256, 2
    %v258 = vadd.f32 %v256, %v257
    %v259 = vrot.slane %v258, 1
    %v260 = vadd.f32 %v258, %v259
    %v261 = vadd.f32 %v237, %v260
    %v262 = vadd.f32 %v240, %v260
    %vm263 = vcmp.gt.f32.partialorder %v261, 0.0
    %vm264 = vcmp.gt.f32.partialorder %v262, 0.0
    %v265 = vmul.f32 %v261, 0.2
    %v266 = vmul.f32 %v262, 0.2
    %v267 = vsel %vm263, %v261, %v265
    %v268 = vsel %vm264, %v262, %v266
    %v269 = vadd.f32 %v267, %v36
    %v270 = vadd.f32 %v268, %v37
    %v271 = vsel %vm251, %v269, -inf
    %272 = vmax.xlane.f32.xlu0 %v271
    %v273 = vpop.xlane.xlu0 %272
    %v274 = vsel %vm251, %v270, -inf
    %275 = vmax.xlane.f32.xlu0 %v274
    %v276 = vpop.xlane.xlu0 %275
    %v277 = vsub.f32 %v269, %v273
    %v278 = vsub.f32 %v270, %v276
    %v279 = vmul.f32 %v277, 1.442695
    %v280 = vpow.pop %v279
    %v281 = vmul.f32 %v278, 1.442695
    %v282 = vpow.pop %v281
    %v283 = vsel %vm251, %v280, 0.0
    %284 = vadd.xlane.f32.xlu0 %v283
    %v285 = vpop.xlane.xlu0 %284
    %v286 = vsel %vm251, %v282, 0.0
    %287 = vadd.xlane.f32.xlu0 %v286
    %v288 = vpop.xlane.xlu0 %287
    %v289 = vrcp.pop %v285
    %v290 = vrcp.pop %v288
    %v291 = vmul.f32 %v280, %v289
    %v292 = vmul.f32 %v282, %v290
    %v294 = vlaneseq
    %v295 = vshrl.u32 %v294, 7
    %v296 = vsub.s32 0, %v295
    %v297 = vrot.slane %v149, %v296
    %v300 = vsel %vm251, %v291, 0
    %v303 = vsel %vm251, %v292, 0
    %305 = vmatprep.subr.mxu0 0.0
    %306 = vmatpush1.msra.mxu0 %v224
    %307 = vmatprep.subr.mxu0 0.0
    %308 = vmatpush1.msra.mxu0 %v229
    %309 = vmatprep.subr.mxu0 0.0
    %310 = vmatpush1.msra.mxu0 0.0
    %311 = vmatprep.subr.mxu0 0.0
    %312 = vmatpush1.msra.mxu0 0.0
    %313 = vmatprep.subr.mxu0 0.0
    %314 = vmatpush1.msra.mxu0 0.0
    %315 = vmatprep.subr.mxu0 0.0
    %316 = vmatpush1.msra.mxu0 0.0
    %317 = vmatprep.subr.mxu0 0.0
    %318 = vmatpush1.msra.mxu0 0.0
    %319 = vmatprep.subr.mxu0 0.0
    %320 = vmatpush1.msra.mxu0 0.0
    %321 = vmatprep.subr.mxu0 0.0
    %322 = vmatpush1.msra.mxu0 0.0
    %323 = vmatprep.subr.mxu0 0.0
    %324 = vmatpush1.msra.mxu0 0.0
    %325 = vmatprep.subr.mxu0 0.0
    %326 = vmatpush1.msra.mxu0 0.0
    %327 = vmatprep.subr.mxu0 0.0
    %328 = vmatpush1.msra.mxu0 0.0
    %329 = vmatprep.subr.mxu0 0.0
    %330 = vmatpush1.msra.mxu0 0.0
    %331 = vmatprep.subr.mxu0 0.0
    %332 = vmatpush1.msra.mxu0 0.0
    %333 = vmatprep.subr.mxu0 0.0
    %334 = vmatpush1.msra.mxu0 0.0
    %335 = vmatprep.subr.mxu0 0.0
    %336 = vmatpush1.msra.mxu0 0.0
    %337 = vmatprep.subr.mxu0 0.0
    %338 = vmatpush1.msra.mxu0 0.0
    %339 = vmatprep.subr.mxu0 0.0
    %340 = vmatpush1.msra.mxu0 0.0
    %341 = vmatprep.subr.mxu0 0.0
    %342 = vmatpush1.msra.mxu0 0.0
    %343 = vmatprep.subr.mxu0 0.0
    %344 = vmatpush1.msra.mxu0 0.0
    %345 = vmatprep.subr.mxu0 0.0
    %346 = vmatpush1.msra.mxu0 0.0
    %347 = vmatprep.subr.mxu0 0.0
    %348 = vmatpush1.msra.mxu0 0.0
    %349 = vmatprep.subr.mxu0 0.0
    %350 = vmatpush1.msra.mxu0 0.0
    %351 = vmatprep.subr.mxu0 0.0
    %352 = vmatpush1.msra.mxu0 0.0
    %353 = vmatprep.subr.mxu0 0.0
    %354 = vmatpush1.msra.mxu0 0.0
    %355 = vmatprep.subr.mxu0 0.0
    %356 = vmatpush1.msra.mxu0 0.0
    %357 = vmatprep.subr.mxu0 0.0
    %358 = vmatpush1.msra.mxu0 0.0
    %359 = vmatprep.subr.mxu0 0.0
    %360 = vmatpush1.msra.mxu0 0.0
    %361 = vmatprep.subr.mxu0 0.0
    %362 = vmatpush1.msra.mxu0 0.0
    %363 = vmatprep.subr.mxu0 0.0
    %364 = vmatpush1.msra.mxu0 0.0
    %365 = vmatprep.subr.mxu0 0.0
    %366 = vmatpush1.msra.mxu0 0.0
    %367 = vmatprep.subr.mxu0 0.0
    %368 = vmatpush1.msra.mxu0 0.0
    %369 = vmatprep.mubr.f32.mxu0 0.0
    %370 = vmatmul.mubr.f32.gmra.mrb[0].mxu0 %v300
    %v371 = vpop.f32.mrb[0].mxu0
    %v372 = vadd.f32 %v297, %v371
    %v373 = vpop.f32.mrb[0].mxu0
    %374 = vmatprep.mubr.f32.mxu0 0.0
    %375 = vmatmul.mubr.f32.gmra.mrb[0].mxu0 %v303
    %v376 = vpop.f32.mrb[0].mxu0
    %v377 = vadd.f32 %v297, %v376
    %v378 = vpop.f32.mrb[0].mxu0
    %379 = vdwg.mxu0
    %v380 = vmax.f32 %v372, 0.0
    %v381 = vmax.f32 %v377, 0.0
    %s382 = scalar_lea.vmem [#allocation2], 32
    %v383 = vld [vmem:[%s382] sm:$0xff]
    %v384 = vld [vmem:[%s382 + $0x8] sm:$0xff]
    %v385 = vld [vmem:[%s382 + $0x10] sm:$0xff]
    %v386 = vld [vmem:[%s382 + $0x18] sm:$0xff]
    %s387 = scalar_lea.vmem %s3, 1
    %v388 = vld [vmem:[%s387] sm:$0x1]
    %v390 = vsel %vm150, %v380, 0
    %v393 = vsel %vm150, %v381, 0
    %395 = vmatprep.subr.mxu0 0.0
    %396 = vmatpush1.msra.mxu0 %v383
    %397 = vmatprep.subr.mxu0 0.0
    %398 = vmatpush1.msra.mxu0 %v384
    %399 = vmatprep.subr.mxu0 0.0
    %400 = vmatpush1.msra.mxu0 %v385
    %401 = vmatprep.subr.mxu0 0.0
    %402 = vmatpush1.msra.mxu0 %v386
    %403 = vmatprep.subr.mxu0 0.0
    %404 = vmatpush1.msra.mxu0 0.0
    %405 = vmatprep.subr.mxu0 0.0
    %406 = vmatpush1.msra.mxu0 0.0
    %407 = vmatprep.subr.mxu0 0.0
    %408 = vmatpush1.msra.mxu0 0.0
    %409 = vmatprep.subr.mxu0 0.0
    %410 = vmatpush1.msra.mxu0 0.0
    %411 = vmatprep.subr.mxu0 0.0
    %412 = vmatpush1.msra.mxu0 0.0
    %413 = vmatprep.subr.mxu0 0.0
    %414 = vmatpush1.msra.mxu0 0.0
    %415 = vmatprep.subr.mxu0 0.0
    %416 = vmatpush1.msra.mxu0 0.0
    %417 = vmatprep.subr.mxu0 0.0
    %418 = vmatpush1.msra.mxu0 0.0
    %419 = vmatprep.subr.mxu0 0.0
    %420 = vmatpush1.msra.mxu0 0.0
    %421 = vmatprep.subr.mxu0 0.0
    %422 = vmatpush1.msra.mxu0 0.0
    %423 = vmatprep.subr.mxu0 0.0
    %424 = vmatpush1.msra.mxu0 0.0
    %425 = vmatprep.subr.mxu0 0.0
    %426 = vmatpush1.msra.mxu0 0.0
    %427 = vmatprep.subr.mxu0 0.0
    %428 = vmatpush1.msra.mxu0 0.0
    %429 = vmatprep.subr.mxu0 0.0
    %430 = vmatpush1.msra.mxu0 0.0
    %431 = vmatprep.subr.mxu0 0.0
    %432 = vmatpush1.msra.mxu0 0.0
    %433 = vmatprep.subr.mxu0 0.0
    %434 = vmatpush1.msra.mxu0 0.0
    %435 = vmatprep.subr.mxu0 0.0
    %436 = vmatpush1.msra.mxu0 0.0
    %437 = vmatprep.subr.mxu0 0.0
    %438 = vmatpush1.msra.mxu0 0.0
    %439 = vmatprep.subr.mxu0 0.0
    %440 = vmatpush1.msra.mxu0 0.0
    %441 = vmatprep.subr.mxu0 0.0
    %442 = vmatpush1.msra.mxu0 0.0
    %443 = vmatprep.subr.mxu0 0.0
    %444 = vmatpush1.msra.mxu0 0.0
    %445 = vmatprep.subr.mxu0 0.0
    %446 = vmatpush1.msra.mxu0 0.0
    %447 = vmatprep.subr.mxu0 0.0
    %448 = vmatpush1.msra.mxu0 0.0
    %449 = vmatprep.subr.mxu0 0.0
    %450 = vmatpush1.msra.mxu0 0.0
    %451 = vmatprep.subr.mxu0 0.0
    %452 = vmatpush1.msra.mxu0 0.0
    %453 = vmatprep.subr.mxu0 0.0
    %454 = vmatpush1.msra.mxu0 0.0
    %455 = vmatprep.subr.mxu0 0.0
    %456 = vmatpush1.msra.mxu0 0.0
    %457 = vmatprep.subr.mxu0 0.0
    %458 = vmatpush1.msra.mxu0 0.0
    %459 = vmatprep.mubr.f32.mxu0 0.0
    %460 = vmatmul.mubr.f32.gmra.mrb[0].mxu0 %v390
    %v461 = vpop.f32.mrb[0].mxu0
    %v462 = vadd.f32 0.0, %v461
    %v463 = vpop.f32.mrb[0].mxu0
    %464 = vmatprep.mubr.f32.mxu0 0.0
    %465 = vmatmul.mubr.f32.gmra.mrb[0].mxu0 %v393
    %v466 = vpop.f32.mrb[0].mxu0
    %v467 = vadd.f32 0.0, %v466
    %v468 = vpop.f32.mrb[0].mxu0
    %469 = vdwg.mxu0
    %v470 = vmul.f32 %v462, %v48
    %v471 = vmul.f32 %v467, %v48
    %v472 = vsel %vm234, %v470, 0.0
    %473 = vadd.xlane.f32.xlu0 %v472
    %v474 = vpop.xlane.xlu0 %473
    %v475 = vsel %vm234, %v471, 0.0
    %476 = vadd.xlane.f32.xlu0 %v475
    %v477 = vpop.xlane.xlu0 %476
    %v478 = vmul.f32 %v462, %v50
    %v479 = vmul.f32 %v467, %v50
    %v480 = vsel %vm234, %v478, 0.0
    %481 = vadd.xlane.f32.xlu0 %v480
    %v482 = vpop.xlane.xlu0 %481
    %v483 = vsel %vm234, %v479, 0.0
    %484 = vadd.xlane.f32.xlu0 %v483
    %v485 = vpop.xlane.xlu0 %484
    %v486 = vmul.f32 %v482, %v45
    %v487 = vmul.f32 %v485, %v46
    %v488 = vsel %vm251, %v486, 0.0
    %v489 = vsel %vm251, %v487, 0.0
    %v490 = vadd.f32 %v488, %v489
    %v491 = vrot.slane %v490, 4
    %v492 = vadd.f32 %v490, %v491
    %v493 = vrot.slane %v492, 2
    %v494 = vadd.f32 %v492, %v493
    %v495 = vrot.slane %v494, 1
    %v496 = vadd.f32 %v494, %v495
    %v497 = vadd.f32 %v474, %v496
    %v498 = vadd.f32 %v477, %v496
    %vm499 = vcmp.gt.f32.partialorder %v497, 0.0
    %vm500 = vcmp.gt.f32.partialorder %v498, 0.0
    %v501 = vmul.f32 %v497, 0.2
    %v502 = vmul.f32 %v498, 0.2
    %v503 = vsel %vm499, %v497, %v501
    %v504 = vsel %vm500, %v498, %v502
    %v505 = vadd.f32 %v503, %v36
    %v506 = vadd.f32 %v504, %v37
    %v507 = vsel %vm251, %v505, -inf
    %508 = vmax.xlane.f32.xlu0 %v507
    %v509 = vpop.xlane.xlu0 %508
    %v510 = vsel %vm251, %v506, -inf
    %511 = vmax.xlane.f32.xlu0 %v510
    %v512 = vpop.xlane.xlu0 %511
    %v513 = vsub.f32 %v505, %v509
    %v514 = vsub.f32 %v506, %v512
    %v515 = vmul.f32 %v513, 1.442695
    %v516 = vpow.pop %v515
    %v517 = vmul.f32 %v514, 1.442695
    %v518 = vpow.pop %v517
    %v519 = vsel %vm251, %v516, 0.0
    %520 = vadd.xlane.f32.xlu0 %v519
    %v521 = vpop.xlane.xlu0 %520
    %v522 = vsel %vm251, %v518, 0.0
    %523 = vadd.xlane.f32.xlu0 %v522
    %v524 = vpop.xlane.xlu0 %523
    %v525 = vrcp.pop %v521
    %v526 = vrcp.pop %v524
    %v527 = vmul.f32 %v516, %v525
    %v528 = vmul.f32 %v518, %v526
    %v530 = vlaneseq
    %v531 = vshrl.u32 %v530, 7
    %v532 = vsub.s32 0, %v531
    %v533 = vrot.slane %v388, %v532
    %v536 = vsel %vm251, %v527, 0
    %v539 = vsel %vm251, %v528, 0
    %541 = vmatprep.subr.mxu0 0.0
    %542 = vmatpush1.msra.mxu0 %v462
    %543 = vmatprep.subr.mxu0 0.0
    %544 = vmatpush1.msra.mxu0 %v467
    %545 = vmatprep.subr.mxu0 0.0
    %546 = vmatpush1.msra.mxu0 0.0
    %547 = vmatprep.subr.mxu0 0.0
    %548 = vmatpush1.msra.mxu0 0.0
    %549 = vmatprep.subr.mxu0 0.0
    %550 = vmatpush1.msra.mxu0 0.0
    %551 = vmatprep.subr.mxu0 0.0
    %552 = vmatpush1.msra.mxu0 0.0
    %553 = vmatprep.subr.mxu0 0.0
    %554 = vmatpush1.msra.mxu0 0.0
    %555 = vmatprep.subr.mxu0 0.0
    %556 = vmatpush1.msra.mxu0 0.0
    %557 = vmatprep.subr.mxu0 0.0
    %558 = vmatpush1.msra.mxu0 0.0
    %559 = vmatprep.subr.mxu0 0.0
    %560 = vmatpush1.msra.mxu0 0.0
    %561 = vmatprep.subr.mxu0 0.0
    %562 = vmatpush1.msra.mxu0 0.0
    %563 = vmatprep.subr.mxu0 0.0
    %564 = vmatpush1.msra.mxu0 0.0
    %565 = vmatprep.subr.mxu0 0.0
    %566 = vmatpush1.msra.mxu0 0.0
    %567 = vmatprep.subr.mxu0 0.0
    %568 = vmatpush1.msra.mxu0 0.0
    %569 = vmatprep.subr.mxu0 0.0
    %570 = vmatpush1.msra.mxu0 0.0
    %571 = vmatprep.subr.mxu0 0.0
    %572 = vmatpush1.msra.mxu0 0.0
    %573 = vmatprep.subr.mxu0 0.0
    %574 = vmatpush1.msra.mxu0 0.0
    %575 = vmatprep.subr.mxu0 0.0
    %576 = vmatpush1.msra.mxu0 0.0
    %577 = vmatprep.subr.mxu0 0.0
    %578 = vmatpush1.msra.mxu0 0.0
    %579 = vmatprep.subr.mxu0 0.0
    %580 = vmatpush1.msra.mxu0 0.0
    %581 = vmatprep.subr.mxu0 0.0
    %582 = vmatpush1.msra.mxu0 0.0
    %583 = vmatprep.subr.mxu0 0.0
    %584 = vmatpush1.msra.mxu0 0.0
    %585 = vmatprep.subr.mxu0 0.0
    %586 = vmatpush1.msra.mxu0 0.0
    %587 = vmatprep.subr.mxu0 0.0
    %588 = vmatpush1.msra.mxu0 0.0
    %589 = vmatprep.subr.mxu0 0.0
    %590 = vmatpush1.msra.mxu0 0.0
    %591 = vmatprep.subr.mxu0 0.0
    %592 = vmatpush1.msra.mxu0 0.0
    %593 = vmatprep.subr.mxu0 0.0
    %594 = vmatpush1.msra.mxu0 0.0
    %595 = vmatprep.subr.mxu0 0.0
    %596 = vmatpush1.msra.mxu0 0.0
    %597 = vmatprep.subr.mxu0 0.0
    %598 = vmatpush1.msra.mxu0 0.0
    %599 = vmatprep.subr.mxu0 0.0
    %600 = vmatpush1.msra.mxu0 0.0
    %601 = vmatprep.subr.mxu0 0.0
    %602 = vmatpush1.msra.mxu0 0.0
    %603 = vmatprep.subr.mxu0 0.0
    %604 = vmatpush1.msra.mxu0 0.0
    %605 = vmatprep.mubr.f32.mxu0 0.0
    %606 = vmatmul.mubr.f32.gmra.mrb[0].mxu0 %v536
    %v607 = vpop.f32.mrb[0].mxu0
    %v608 = vadd.f32 %v533, %v607
    %v609 = vpop.f32.mrb[0].mxu0
    %610 = vmatprep.mubr.f32.mxu0 0.0
    %611 = vmatmul.mubr.f32.gmra.mrb[0].mxu0 %v539
    %v612 = vpop.f32.mrb[0].mxu0
    %v613 = vadd.f32 %v533, %v612
    %v614 = vpop.f32.mrb[0].mxu0
    %615 = vdwg.mxu0
    %s616 = scalar_lea.vmem [#allocation2], 64
    %v617 = vld [vmem:[%s616] sm:$0xff]
    %v618 = vld [vmem:[%s616 + $0x8] sm:$0xff]
    %v619 = vld [vmem:[%s616 + $0x10] sm:$0xff]
    %v620 = vld [vmem:[%s616 + $0x18] sm:$0xff]
    %s621 = scalar_lea.vmem %s3, 2
    %v622 = vld [vmem:[%s621] sm:$0x1]
    %v624 = vsel %vm150, %v608, 0
    %v627 = vsel %vm150, %v613, 0
    %629 = vmatprep.subr.mxu0 0.0
    %630 = vmatpush1.msra.mxu0 %v617
    %631 = vmatprep.subr.mxu0 0.0
    %632 = vmatpush1.msra.mxu0 %v618
    %633 = vmatprep.subr.mxu0 0.0
    %634 = vmatpush1.msra.mxu0 %v619
    %635 = vmatprep.subr.mxu0 0.0
    %636 = vmatpush1.msra.mxu0 %v620
    %637 = vmatprep.subr.mxu0 0.0
    %638 = vmatpush1.msra.mxu0 0.0
    %639 = vmatprep.subr.mxu0 0.0
    %640 = vmatpush1.msra.mxu0 0.0
    %641 = vmatprep.subr.mxu0 0.0
    %642 = vmatpush1.msra.mxu0 0.0
    %643 = vmatprep.subr.mxu0 0.0
    %644 = vmatpush1.msra.mxu0 0.0
    %645 = vmatprep.subr.mxu0 0.0
    %646 = vmatpush1.msra.mxu0 0.0
    %647 = vmatprep.subr.mxu0 0.0
    %648 = vmatpush1.msra.mxu0 0.0
    %649 = vmatprep.subr.mxu0 0.0
    %650 = vmatpush1.msra.mxu0 0.0
    %651 = vmatprep.subr.mxu0 0.0
    %652 = vmatpush1.msra.mxu0 0.0
    %653 = vmatprep.subr.mxu0 0.0
    %654 = vmatpush1.msra.mxu0 0.0
    %655 = vmatprep.subr.mxu0 0.0
    %656 = vmatpush1.msra.mxu0 0.0
    %657 = vmatprep.subr.mxu0 0.0
    %658 = vmatpush1.msra.mxu0 0.0
    %659 = vmatprep.subr.mxu0 0.0
    %660 = vmatpush1.msra.mxu0 0.0
    %661 = vmatprep.subr.mxu0 0.0
    %662 = vmatpush1.msra.mxu0 0.0
    %663 = vmatprep.subr.mxu0 0.0
    %664 = vmatpush1.msra.mxu0 0.0
    %665 = vmatprep.subr.mxu0 0.0
    %666 = vmatpush1.msra.mxu0 0.0
    %667 = vmatprep.subr.mxu0 0.0
    %668 = vmatpush1.msra.mxu0 0.0
    %669 = vmatprep.subr.mxu0 0.0
    %670 = vmatpush1.msra.mxu0 0.0
    %671 = vmatprep.subr.mxu0 0.0
    %672 = vmatpush1.msra.mxu0 0.0
    %673 = vmatprep.subr.mxu0 0.0
    %674 = vmatpush1.msra.mxu0 0.0
    %675 = vmatprep.subr.mxu0 0.0
    %676 = vmatpush1.msra.mxu0 0.0
    %677 = vmatprep.subr.mxu0 0.0
    %678 = vmatpush1.msra.mxu0 0.0
    %679 = vmatprep.subr.mxu0 0.0
    %680 = vmatpush1.msra.mxu0 0.0
    %681 = vmatprep.subr.mxu0 0.0
    %682 = vmatpush1.msra.mxu0 0.0
    %683 = vmatprep.subr.mxu0 0.0
    %684 = vmatpush1.msra.mxu0 0.0
    %685 = vmatprep.subr.mxu0 0.0
    %686 = vmatpush1.msra.mxu0 0.0
    %687 = vmatprep.subr.mxu0 0.0
    %688 = vmatpush1.msra.mxu0 0.0
    %689 = vmatprep.subr.mxu0 0.0
    %690 = vmatpush1.msra.mxu0 0.0
    %691 = vmatprep.subr.mxu0 0.0
    %692 = vmatpush1.msra.mxu0 0.0
    %693 = vmatprep.mubr.f32.mxu0 0.0
    %694 = vmatmul.mubr.f32.gmra.mrb[0].mxu0 %v624
    %v695 = vpop.f32.mrb[0].mxu0
    %v696 = vadd.f32 0.0, %v695
    %v697 = vpop.f32.mrb[0].mxu0
    %698 = vmatprep.mubr.f32.mxu0 0.0
    %699 = vmatmul.mubr.f32.gmra.mrb[0].mxu0 %v627
    %v700 = vpop.f32.mrb[0].mxu0
    %v701 = vadd.f32 0.0, %v700
    %v702 = vpop.f32.mrb[0].mxu0
    %703 = vdwg.mxu0
    %v705 = vsel %vm150, %v696, 0
    %v708 = vsel %vm150, %v701, 0
    %710 = vmatprep.subr.mxu0 0.0
    %711 = vmatpush1.xpose.msra.mxu0 %v624
    %712 = vmatprep.subr.mxu0 0.0
    %713 = vmatpush1.xpose.msra.mxu0 %v627
    %714 = vmatprep.subr.mxu0 0.0
    %715 = vmatpush1.xpose.msra.mxu0 0.0
    %716 = vmatprep.subr.mxu0 0.0
    %717 = vmatpush1.xpose.msra.mxu0 0.0
    %718 = vmatprep.subr.mxu0 0.0
    %719 = vmatpush1.xpose.msra.mxu0 0.0
    %720 = vmatprep.subr.mxu0 0.0
    %721 = vmatpush1.xpose.msra.mxu0 0.0
    %722 = vmatprep.subr.mxu0 0.0
    %723 = vmatpush1.xpose.msra.mxu0 0.0
    %724 = vmatprep.subr.mxu0 0.0
    %725 = vmatpush1.xpose.msra.mxu0 0.0
    %726 = vmatprep.subr.mxu0 0.0
    %727 = vmatpush1.xpose.msra.mxu0 0.0
    %728 = vmatprep.subr.mxu0 0.0
    %729 = vmatpush1.xpose.msra.mxu0 0.0
    %730 = vmatprep.subr.mxu0 0.0
    %731 = vmatpush1.xpose.msra.mxu0 0.0
    %732 = vmatprep.subr.mxu0 0.0
    %733 = vmatpush1.xpose.msra.mxu0 0.0
    %734 = vmatprep.subr.mxu0 0.0
    %735 = vmatpush1.xpose.msra.mxu0 0.0
    %736 = vmatprep.subr.mxu0 0.0
    %737 = vmatpush1.xpose.msra.mxu0 0.0
    %738 = vmatprep.subr.mxu0 0.0
    %739 = vmatpush1.xpose.msra.mxu0 0.0
    %740 = vmatprep.subr.mxu0 0.0
    %741 = vmatpush1.xpose.msra.mxu0 0.0
    %742 = vmatprep.subr.mxu0 0.0
    %743 = vmatpush1.xpose.msra.mxu0 0.0
    %744 = vmatprep.subr.mxu0 0.0
    %745 = vmatpush1.xpose.msra.mxu0 0.0
    %746 = vmatprep.subr.mxu0 0.0
    %747 = vmatpush1.xpose.msra.mxu0 0.0
    %748 = vmatprep.subr.mxu0 0.0
    %749 = vmatpush1.xpose.msra.mxu0 0.0
    %750 = vmatprep.subr.mxu0 0.0
    %751 = vmatpush1.xpose.msra.mxu0 0.0
    %752 = vmatprep.subr.mxu0 0.0
    %753 = vmatpush1.xpose.msra.mxu0 0.0
    %754 = vmatprep.subr.mxu0 0.0
    %755 = vmatpush1.xpose.msra.mxu0 0.0
    %756 = vmatprep.subr.mxu0 0.0
    %757 = vmatpush1.xpose.msra.mxu0 0.0
    %758 = vmatprep.subr.mxu0 0.0
    %759 = vmatpush1.xpose.msra.mxu0 0.0
    %760 = vmatprep.subr.mxu0 0.0
    %761 = vmatpush1.xpose.msra.mxu0 0.0
    %762 = vmatprep.subr.mxu0 0.0
    %763 = vmatpush1.xpose.msra.mxu0 0.0
    %764 = vmatprep.subr.mxu0 0.0
    %765 = vmatpush1.xpose.msra.mxu0 0.0
    %766 = vmatprep.subr.mxu0 0.0
    %767 = vmatpush1.xpose.msra.mxu0 0.0
    %768 = vmatprep.subr.mxu0 0.0
    %769 = vmatpush1.xpose.msra.mxu0 0.0
    %770 = vmatprep.subr.mxu0 0.0
    %771 = vmatpush1.xpose.msra.mxu0 0.0
    %772 = vmatprep.subr.mxu0 0.0
    %773 = vmatpush1.xpose.msra.mxu0 0.0
    %774 = vmatprep.mubr.f32.mxu0 0.0
    %775 = vmatmul.mubr.f32.gmra.mrb[0].mxu0 %v705
    %v776 = vpop.f32.mrb[0].mxu0
    %v777 = vadd.f32 0.0, %v776
    %v778 = vpop.f32.mrb[0].mxu0
    %779 = vmatprep.mubr.f32.mxu0 0.0
    %780 = vmatmul.mubr.f32.gmra.mrb[0].mxu0 %v708
    %v781 = vpop.f32.mrb[0].mxu0
    %v782 = vadd.f32 0.0, %v781
    %v783 = vpop.f32.mrb[0].mxu0
    %784 = vdwg.mxu0
    %v785 = vsel %vm251, %v777, -inf
    %786 = vmax.xlane.f32.xlu0 %v785
    %v787 = vpop.xlane.xlu0 %786
    %v788 = vsel %vm251, %v782, -inf
    %789 = vmax.xlane.f32.xlu0 %v788
    %v790 = vpop.xlane.xlu0 %789
    %v791 = vsub.f32 %v777, %v787
    %v792 = vsub.f32 %v782, %v790
    %v793 = vmul.f32 %v791, 1.442695
    %v794 = vpow.pop %v793
    %v795 = vmul.f32 %v792, 1.442695
    %v796 = vpow.pop %v795
    %v797 = vsel %vm251, %v794, 0.0
    %798 = vadd.xlane.f32.xlu0 %v797
    %v799 = vpop.xlane.xlu0 %798
    %v800 = vsel %vm251, %v796, 0.0
    %801 = vadd.xlane.f32.xlu0 %v800
    %v802 = vpop.xlane.xlu0 %801
    %v803 = vrcp.pop %v799
    %v804 = vrcp.pop %v802
    %v805 = vmul.f32 %v794, %v803
    %v806 = vmul.f32 %v796, %v804
    %v808 = vlaneseq
    %v809 = vshrl.u32 %v808, 7
    %v810 = vsub.s32 0, %v809
    %v811 = vrot.slane %v622, %v810
    %v814 = vsel %vm251, %v805, 0
    %v817 = vsel %vm251, %v806, 0
    %819 = vmatprep.subr.mxu0 0.0
    %820 = vmatpush1.msra.mxu0 %v608
    %821 = vmatprep.subr.mxu0 0.0
    %822 = vmatpush1.msra.mxu0 %v613
    %823 = vmatprep.subr.mxu0 0.0
    %824 = vmatpush1.msra.mxu0 0.0
    %825 = vmatprep.subr.mxu0 0.0
    %826 = vmatpush1.msra.mxu0 0.0
    %827 = vmatprep.subr.mxu0 0.0
    %828 = vmatpush1.msra.mxu0 0.0
    %829 = vmatprep.subr.mxu0 0.0
    %830 = vmatpush1.msra.mxu0 0.0
    %831 = vmatprep.subr.mxu0 0.0
    %832 = vmatpush1.msra.mxu0 0.0
    %833 = vmatprep.subr.mxu0 0.0
    %834 = vmatpush1.msra.mxu0 0.0
    %835 = vmatprep.subr.mxu0 0.0
    %836 = vmatpush1.msra.mxu0 0.0
    %837 = vmatprep.subr.mxu0 0.0
    %838 = vmatpush1.msra.mxu0 0.0
    %839 = vmatprep.subr.mxu0 0.0
    %840 = vmatpush1.msra.mxu0 0.0
    %841 = vmatprep.subr.mxu0 0.0
    %842 = vmatpush1.msra.mxu0 0.0
    %843 = vmatprep.subr.mxu0 0.0
    %844 = vmatpush1.msra.mxu0 0.0
    %845 = vmatprep.subr.mxu0 0.0
    %846 = vmatpush1.msra.mxu0 0.0
    %847 = vmatprep.subr.mxu0 0.0
    %848 = vmatpush1.msra.mxu0 0.0
    %849 = vmatprep.subr.mxu0 0.0
    %850 = vmatpush1.msra.mxu0 0.0
    %851 = vmatprep.subr.mxu0 0.0
    %852 = vmatpush1.msra.mxu0 0.0
    %853 = vmatprep.subr.mxu0 0.0
    %854 = vmatpush1.msra.mxu0 0.0
    %855 = vmatprep.subr.mxu0 0.0
    %856 = vmatpush1.msra.mxu0 0.0
    %857 = vmatprep.subr.mxu0 0.0
    %858 = vmatpush1.msra.mxu0 0.0
    %859 = vmatprep.subr.mxu0 0.0
    %860 = vmatpush1.msra.mxu0 0.0
    %861 = vmatprep.subr.mxu0 0.0
    %862 = vmatpush1.msra.mxu0 0.0
    %863 = vmatprep.subr.mxu0 0.0
    %864 = vmatpush1.msra.mxu0 0.0
    %865 = vmatprep.subr.mxu0 0.0
    %866 = vmatpush1.msra.mxu0 0.0
    %867 = vmatprep.subr.mxu0 0.0
    %868 = vmatpush1.msra.mxu0 0.0
    %869 = vmatprep.subr.mxu0 0.0
    %870 = vmatpush1.msra.mxu0 0.0
    %871 = vmatprep.subr.mxu0 0.0
    %872 = vmatpush1.msra.mxu0 0.0
    %873 = vmatprep.subr.mxu0 0.0
    %874 = vmatpush1.msra.mxu0 0.0
    %875 = vmatprep.subr.mxu0 0.0
    %876 = vmatpush1.msra.mxu0 0.0
    %877 = vmatprep.subr.mxu0 0.0
    %878 = vmatpush1.msra.mxu0 0.0
    %879 = vmatprep.subr.mxu0 0.0
    %880 = vmatpush1.msra.mxu0 0.0
    %881 = vmatprep.subr.mxu0 0.0
    %882 = vmatpush1.msra.mxu0 0.0
    %883 = vmatprep.mubr.f32.mxu0 0.0
    %884 = vmatmul.mubr.f32.gmra.mrb[0].mxu0 %v814
    %v885 = vpop.f32.mrb[0].mxu0
    %v886 = vadd.f32 %v811, %v885
    %v887 = vpop.f32.mrb[0].mxu0
    %888 = vmatprep.mubr.f32.mxu0 0.0
    %889 = vmatmul.mubr.f32.gmra.mrb[0].mxu0 %v817
    %v890 = vpop.f32.mrb[0].mxu0
    %v891 = vadd.f32 %v811, %v890
    %v892 = vpop.f32.mrb[0].mxu0
    %893 = vdwg.mxu0
    %s894 = scalar_lea.vmem %s3, 3
    %v895 = vld [vmem:[%s894] sm:$0x1]
    %s896 = scalar_lea.vmem %s3, 4
    %v897 = vld [vmem:[%s896] sm:$0x1]
    %v898 = vadd.f32 %v886, %v137
    %v899 = vadd.f32 %v891, %v142
    %v900 = vsel %vm150, %v898, 0.0
    %901 = vadd.xlane.f32.xlu0 %v900
    %v902 = vpop.xlane.xlu0 %901
    %v903 = vsel %vm150, %v899, 0.0
    %904 = vadd.xlane.f32.xlu0 %v903
    %v905 = vpop.xlane.xlu0 %904
    %v906 = vrcp.pop 32.0
    %v907 = vmul.f32 %v902, %v906
    %v908 = vmul.f32 %v905, %v906
    %v909 = vsub.f32 %v898, %v907
    %v910 = vsub.f32 %v899, %v908
    %v911 = vmul.f32 %v909, %v909
    %v912 = vmul.f32 %v910, %v910
    %v913 = vsel %vm150, %v911, 0.0
    %914 = vadd.xlane.f32.xlu0 %v913
    %v915 = vpop.xlane.xlu0 %914
    %v916 = vsel %vm150, %v912, 0.0
    %917 = vadd.xlane.f32.xlu0 %v916
    %v918 = vpop.xlane.xlu0 %917
    %v919 = vmul.f32 %v915, %v906
    %v920 = vmul.f32 %v918, %v906
    %v921 = vadd.f32 %v919, 1e-05
    %v922 = vadd.f32 %v920, 1e-05
    %v923 = vrsqrt.pop %v921
    %v924 = vrsqrt.pop %v922
    %v925 = vmul.f32 %v909, %v923
    %v926 = vmul.f32 %v910, %v924
    %v928 = vlaneseq
    %v929 = vshrl.u32 %v928, 7
    %v930 = vsub.s32 0, %v929
    %v931 = vrot.slane %v895, %v930
    %v933 = vmul.f32 %v925, %v931
    %v934 = vmul.f32 %v926, %v931
    %v936 = vlaneseq
    %v937 = vshrl.u32 %v936, 7
    %v938 = vsub.s32 0, %v937
    %v939 = vrot.slane %v897, %v938
    %v941 = vadd.f32 %v933, %v939
    %v942 = vadd.f32 %v934, %v939
    %s943 = scalar_lea.vmem [#allocation2], 96
    %v944 = vld [vmem:[%s943] sm:$0xff]
    %v945 = vld [vmem:[%s943 + $0x8] sm:$0xff]
    %v946 = vld [vmem:[%s943 + $0x10] sm:$0xff]
    %v947 = vld [vmem:[%s943 + $0x18] sm:$0xff]
    %s948 = scalar_lea.vmem %s3, 5
    %v949 = vld [vmem:[%s948] sm:$0x1]
    %v951 = vsel %vm150, %v941, 0
    %v954 = vsel %vm150, %v942, 0
    %956 = vmatprep.subr.mxu0 0.0
    %957 = vmatpush1.msra.mxu0 %v944
    %958 = vmatprep.subr.mxu0 0.0
    %959 = vmatpush1.msra.mxu0 %v945
    %960 = vmatprep.subr.mxu0 0.0
    %961 = vmatpush1.msra.mxu0 %v946
    %962 = vmatprep.subr.mxu0 0.0
    %963 = vmatpush1.msra.mxu0 %v947
    %964 = vmatprep.subr.mxu0 0.0
    %965 = vmatpush1.msra.mxu0 0.0
    %966 = vmatprep.subr.mxu0 0.0
    %967 = vmatpush1.msra.mxu0 0.0
    %968 = vmatprep.subr.mxu0 0.0
    %969 = vmatpush1.msra.mxu0 0.0
    %970 = vmatprep.subr.mxu0 0.0
    %971 = vmatpush1.msra.mxu0 0.0
    %972 = vmatprep.subr.mxu0 0.0
    %973 = vmatpush1.msra.mxu0 0.0
    %974 = vmatprep.subr.mxu0 0.0
    %975 = vmatpush1.msra.mxu0 0.0
    %976 = vmatprep.subr.mxu0 0.0
    %977 = vmatpush1.msra.mxu0 0.0
    %978 = vmatprep.subr.mxu0 0.0
    %979 = vmatpush1.msra.mxu0 0.0
    %980 = vmatprep.subr.mxu0 0.0
    %981 = vmatpush1.msra.mxu0 0.0
    %982 = vmatprep.subr.mxu0 0.0
    %983 = vmatpush1.msra.mxu0 0.0
    %984 = vmatprep.subr.mxu0 0.0
    %985 = vmatpush1.msra.mxu0 0.0
    %986 = vmatprep.subr.mxu0 0.0
    %987 = vmatpush1.msra.mxu0 0.0
    %988 = vmatprep.subr.mxu0 0.0
    %989 = vmatpush1.msra.mxu0 0.0
    %990 = vmatprep.subr.mxu0 0.0
    %991 = vmatpush1.msra.mxu0 0.0
    %992 = vmatprep.subr.mxu0 0.0
    %993 = vmatpush1.msra.mxu0 0.0
    %994 = vmatprep.subr.mxu0 0.0
    %995 = vmatpush1.msra.mxu0 0.0
    %996 = vmatprep.subr.mxu0 0.0
    %997 = vmatpush1.msra.mxu0 0.0
    %998 = vmatprep.subr.mxu0 0.0
    %999 = vmatpush1.msra.mxu0 0.0
    %1000 = vmatprep.subr.mxu0 0.0
    %1001 = vmatpush1.msra.mxu0 0.0
    %1002 = vmatprep.subr.mxu0 0.0
    %1003 = vmatpush1.msra.mxu0 0.0
    %1004 = vmatprep.subr.mxu0 0.0
    %1005 = vmatpush1.msra.mxu0 0.0
    %1006 = vmatprep.subr.mxu0 0.0
    %1007 = vmatpush1.msra.mxu0 0.0
    %1008 = vmatprep.subr.mxu0 0.0
    %1009 = vmatpush1.msra.mxu0 0.0
    %1010 = vmatprep.subr.mxu0 0.0
    %1011 = vmatpush1.msra.mxu0 0.0
    %1012 = vmatprep.subr.mxu0 0.0
    %1013 = vmatpush1.msra.mxu0 0.0
    %1014 = vmatprep.subr.mxu0 0.0
    %1015 = vmatpush1.msra.mxu0 0.0
    %1016 = vmatprep.subr.mxu0 0.0
    %1017 = vmatpush1.msra.mxu0 0.0
    %1018 = vmatprep.subr.mxu0 0.0
    %1019 = vmatpush1.msra.mxu0 0.0
    %1020 = vmatprep.mubr.f32.mxu0 0.0
    %1021 = vmatmul.mubr.f32.gmra.mrb[0].mxu0 %v951
    %v1022 = vpop.f32.mrb[0].mxu0
    %v1023 = vadd.f32 0.0, %v1022
    %v1024 = vpop.f32.mrb[0].mxu0
    %1025 = vmatprep.mubr.f32.mxu0 0.0
    %1026 = vmatmul.mubr.f32.gmra.mrb[0].mxu0 %v954
    %v1027 = vpop.f32.mrb[0].mxu0
    %v1028 = vadd.f32 0.0, %v1027
    %v1029 = vpop.f32.mrb[0].mxu0
    %1030 = vdwg.mxu0
    %v1031 = vmul.f32 %v1023, %v48
    %v1032 = vmul.f32 %v1028, %v48
    %v1033 = vsel %vm234, %v1031, 0.0
    %1034 = vadd.xlane.f32.xlu0 %v1033
    %v1035 = vpop.xlane.xlu0 %1034
    %v1036 = vsel %vm234, %v1032, 0.0
    %1037 = vadd.xlane.f32.xlu0 %v1036
    %v1038 = vpop.xlane.xlu0 %1037
    %v1039 = vmul.f32 %v1023, %v50
    %v1040 = vmul.f32 %v1028, %v50
    %v1041 = vsel %vm234, %v1039, 0.0
    %1042 = vadd.xlane.f32.xlu0 %v1041
    %v1043 = vpop.xlane.xlu0 %1042
    %v1044 = vsel %vm234, %v1040, 0.0
    %1045 = vadd.xlane.f32.xlu0 %v1044
    %v1046 = vpop.xlane.xlu0 %1045
    %v1047 = vmul.f32 %v1043, %v45
    %v1048 = vmul.f32 %v1046, %v46
    %v1049 = vsel %vm251, %v1047, 0.0
    %v1050 = vsel %vm251, %v1048, 0.0
    %v1051 = vadd.f32 %v1049, %v1050
    %v1052 = vrot.slane %v1051, 4
    %v1053 = vadd.f32 %v1051, %v1052
    %v1054 = vrot.slane %v1053, 2
    %v1055 = vadd.f32 %v1053, %v1054
    %v1056 = vrot.slane %v1055, 1
    %v1057 = vadd.f32 %v1055, %v1056
    %v1058 = vadd.f32 %v1035, %v1057
    %v1059 = vadd.f32 %v1038, %v1057
    %vm1060 = vcmp.gt.f32.partialorder %v1058, 0.0
    %vm1061 = vcmp.gt.f32.partialorder %v1059, 0.0
    %v1062 = vmul.f32 %v1058, 0.2
    %v1063 = vmul.f32 %v1059, 0.2
    %v1064 = vsel %vm1060, %v1058, %v1062
    %v1065 = vsel %vm1061, %v1059, %v1063
    %v1066 = vadd.f32 %v1064, %v36
    %v1067 = vadd.f32 %v1065, %v37
    %v1068 = vsel %vm251, %v1066, -inf
    %1069 = vmax.xlane.f32.xlu0 %v1068
    %v1070 = vpop.xlane.xlu0 %1069
    %v1071 = vsel %vm251, %v1067, -inf
    %1072 = vmax.xlane.f32.xlu0 %v1071
    %v1073 = vpop.xlane.xlu0 %1072
    %v1074 = vsub.f32 %v1066, %v1070
    %v1075 = vsub.f32 %v1067, %v1073
    %v1076 = vmul.f32 %v1074, 1.442695
    %v1077 = vpow.pop %v1076
    %v1078 = vmul.f32 %v1075, 1.442695
    %v1079 = vpow.pop %v1078
    %v1080 = vsel %vm251, %v1077, 0.0
    %1081 = vadd.xlane.f32.xlu0 %v1080
    %v1082 = vpop.xlane.xlu0 %1081
    %v1083 = vsel %vm251, %v1079, 0.0
    %1084 = vadd.xlane.f32.xlu0 %v1083
    %v1085 = vpop.xlane.xlu0 %1084
    %v1086 = vrcp.pop %v1082
    %v1087 = vrcp.pop %v1085
    %v1088 = vmul.f32 %v1077, %v1086
    %v1089 = vmul.f32 %v1079, %v1087
    %v1091 = vlaneseq
    %v1092 = vshrl.u32 %v1091, 7
    %v1093 = vsub.s32 0, %v1092
    %v1094 = vrot.slane %v949, %v1093
    %v1097 = vsel %vm251, %v1088, 0
    %v1100 = vsel %vm251, %v1089, 0
    %1102 = vmatprep.subr.mxu0 0.0
    %1103 = vmatpush1.msra.mxu0 %v1023
    %1104 = vmatprep.subr.mxu0 0.0
    %1105 = vmatpush1.msra.mxu0 %v1028
    %1106 = vmatprep.subr.mxu0 0.0
    %1107 = vmatpush1.msra.mxu0 0.0
    %1108 = vmatprep.subr.mxu0 0.0
    %1109 = vmatpush1.msra.mxu0 0.0
    %1110 = vmatprep.subr.mxu0 0.0
    %1111 = vmatpush1.msra.mxu0 0.0
    %1112 = vmatprep.subr.mxu0 0.0
    %1113 = vmatpush1.msra.mxu0 0.0
    %1114 = vmatprep.subr.mxu0 0.0
    %1115 = vmatpush1.msra.mxu0 0.0
    %1116 = vmatprep.subr.mxu0 0.0
    %1117 = vmatpush1.msra.mxu0 0.0
    %1118 = vmatprep.subr.mxu0 0.0
    %1119 = vmatpush1.msra.mxu0 0.0
    %1120 = vmatprep.subr.mxu0 0.0
    %1121 = vmatpush1.msra.mxu0 0.0
    %1122 = vmatprep.subr.mxu0 0.0
    %1123 = vmatpush1.msra.mxu0 0.0
    %1124 = vmatprep.subr.mxu0 0.0
    %1125 = vmatpush1.msra.mxu0 0.0
    %1126 = vmatprep.subr.mxu0 0.0
    %1127 = vmatpush1.msra.mxu0 0.0
    %1128 = vmatprep.subr.mxu0 0.0
    %1129 = vmatpush1.msra.mxu0 0.0
    %1130 = vmatprep.subr.mxu0 0.0
    %1131 = vmatpush1.msra.mxu0 0.0
    %1132 = vmatprep.subr.mxu0 0.0
    %1133 = vmatpush1.msra.mxu0 0.0
    %1134 = vmatprep.subr.mxu0 0.0
    %1135 = vmatpush1.msra.mxu0 0.0
    %1136 = vmatprep.subr.mxu0 0.0
    %1137 = vmatpush1.msra.mxu0 0.0
    %1138 = vmatprep.subr.mxu0 0.0
    %1139 = vmatpush1.msra.mxu0 0.0
    %1140 = vmatprep.subr.mxu0 0.0
    %1141 = vmatpush1.msra.mxu0 0.0
    %1142 = vmatprep.subr.mxu0 0.0
    %1143 = vmatpush1.msra.mxu0 0.0
    %1144 = vmatprep.subr.mxu0 0.0
    %1145 = vmatpush1.msra.mxu0 0.0
    %1146 = vmatprep.subr.mxu0 0.0
    %1147 = vmatpush1.msra.mxu0 0.0
    %1148 = vmatprep.subr.mxu0 0.0
    %1149 = vmatpush1.msra.mxu0 0.0
    %1150 = vmatprep.subr.mxu0 0.0
    %1151 = vmatpush1.msra.mxu0 0.0
    %1152 = vmatprep.subr.mxu0 0.0
    %1153 = vmatpush1.msra.mxu0 0.0
    %1154 = vmatprep.subr.mxu0 0.0
    %1155 = vmatpush1.msra.mxu0 0.0
    %1156 = vmatprep.subr.mxu0 0.0
    %1157 = vmatpush1.msra.mxu0 0.0
    %1158 = vmatprep.subr.mxu0 0.0
    %1159 = vmatpush1.msra.mxu0 0.0
    %1160 = vmatprep.subr.mxu0 0.0
    %1161 = vmatpush1.msra.mxu0 0.0
    %1162 = vmatprep.subr.mxu0 0.0
    %1163 = vmatpush1.msra.mxu0 0.0
    %1164 = vmatprep.subr.mxu0 0.0
    %1165 = vmatpush1.msra.mxu0 0.0
    %1166 = vmatprep.mubr.f32.mxu0 0.0
    %1167 = vmatmul.mubr.f32.gmra.mrb[0].mxu0 %v1097
    %v1168 = vpop.f32.mrb[0].mxu0
    %v1169 = vadd.f32 %v1094, %v1168
    %v1170 = vpop.f32.mrb[0].mxu0
    %1171 = vmatprep.mubr.f32.mxu0 0.0
    %1172 = vmatmul.mubr.f32.gmra.mrb[0].mxu0 %v1100
    %v1173 = vpop.f32.mrb[0].mxu0
    %v1174 = vadd.f32 %v1094, %v1173
    %v1175 = vpop.f32.mrb[0].mxu0
    %1176 = vdwg.mxu0
    %v1177 = vmax.f32 %v1169, 0.0
    %v1178 = vmax.f32 %v1174, 0.0
    %s1179 = scalar_lea.vmem [#allocation2], 128
    %v1180 = vld [vmem:[%s1179] sm:$0xff]
    %v1181 = vld [vmem:[%s1179 + $0x8] sm:$0xff]
    %v1182 = vld [vmem:[%s1179 + $0x10] sm:$0xff]
    %v1183 = vld [vmem:[%s1179 + $0x18] sm:$0xff]
    %s1184 = scalar_lea.vmem %s3, 6
    %v1185 = vld [vmem:[%s1184] sm:$0x1]
    %v1187 = vsel %vm150, %v1177, 0
    %v1190 = vsel %vm150, %v1178, 0
    %1192 = vmatprep.subr.mxu0 0.0
    %1193 = vmatpush1.msra.mxu0 %v1180
    %1194 = vmatprep.subr.mxu0 0.0
    %1195 = vmatpush1.msra.mxu0 %v1181
    %1196 = vmatprep.subr.mxu0 0.0
    %1197 = vmatpush1.msra.mxu0 %v1182
    %1198 = vmatprep.subr.mxu0 0.0
    %1199 = vmatpush1.msra.mxu0 %v1183
    %1200 = vmatprep.subr.mxu0 0.0
    %1201 = vmatpush1.msra.mxu0 0.0
    %1202 = vmatprep.subr.mxu0 0.0
    %1203 = vmatpush1.msra.mxu0 0.0
    %1204 = vmatprep.subr.mxu0 0.0
    %1205 = vmatpush1.msra.mxu0 0.0
    %1206 = vmatprep.subr.mxu0 0.0
    %1207 = vmatpush1.msra.mxu0 0.0
    %1208 = vmatprep.subr.mxu0 0.0
    %1209 = vmatpush1.msra.mxu0 0.0
    %1210 = vmatprep.subr.mxu0 0.0
    %1211 = vmatpush1.msra.mxu0 0.0
    %1212 = vmatprep.subr.mxu0 0.0
    %1213 = vmatpush1.msra.mxu0 0.0
    %1214 = vmatprep.subr.mxu0 0.0
    %1215 = vmatpush1.msra.mxu0 0.0
    %1216 = vmatprep.subr.mxu0 0.0
    %1217 = vmatpush1.msra.mxu0 0.0
    %1218 = vmatprep.subr.mxu0 0.0
    %1219 = vmatpush1.msra.mxu0 0.0
    %1220 = vmatprep.subr.mxu0 0.0
    %1221 = vmatpush1.msra.mxu0 0.0
    %1222 = vmatprep.subr.mxu0 0.0
    %1223 = vmatpush1.msra.mxu0 0.0
    %1224 = vmatprep.subr.mxu0 0.0
    %1225 = vmatpush1.msra.mxu0 0.0
    %1226 = vmatprep.subr.mxu0 0.0
    %1227 = vmatpush1.msra.mxu0 0.0
    %1228 = vmatprep.subr.mxu0 0.0
    %1229 = vmatpush1.msra.mxu0 0.0
    %1230 = vmatprep.subr.mxu0 0.0
    %1231 = vmatpush1.msra.mxu0 0.0
    %1232 = vmatprep.subr.mxu0 0.0
    %1233 = vmatpush1.msra.mxu0 0.0
    %1234 = vmatprep.subr.mxu0 0.0
    %1235 = vmatpush1.msra.mxu0 0.0
    %1236 = vmatprep.subr.mxu0 0.0
    %1237 = vmatpush1.msra.mxu0 0.0
    %1238 = vmatprep.subr.mxu0 0.0
    %1239 = vmatpush1.msra.mxu0 0.0
    %1240 = vmatprep.subr.mxu0 0.0
    %1241 = vmatpush1.msra.mxu0 0.0
    %1242 = vmatprep.subr.mxu0 0.0
    %1243 = vmatpush1.msra.mxu0 0.0
    %1244 = vmatprep.subr.mxu0 0.0
    %1245 = vmatpush1.msra.mxu0 0.0
    %1246 = vmatprep.subr.mxu0 0.0
    %1247 = vmatpush1.msra.mxu0 0.0
    %1248 = vmatprep.subr.mxu0 0.0
    %1249 = vmatpush1.msra.mxu0 0.0
    %1250 = vmatprep.subr.mxu0 0.0
    %1251 = vmatpush1.msra.mxu0 0.0
    %1252 = vmatprep.subr.mxu0 0.0
    %1253 = vmatpush1.msra.mxu0 0.0
    %1254 = vmatprep.subr.mxu0 0.0
    %1255 = vmatpush1.msra.mxu0 0.0
    %1256 = vmatprep.mubr.f32.mxu0 0.0
    %1257 = vmatmul.mubr.f32.gmra.mrb[0].mxu0 %v1187
    %v1258 = vpop.f32.mrb[0].mxu0
    %v1259 = vadd.f32 0.0, %v1258
    %v1260 = vpop.f32.mrb[0].mxu0
    %1261 = vmatprep.mubr.f32.mxu0 0.0
    %1262 = vmatmul.mubr.f32.gmra.mrb[0].mxu0 %v1190
    %v1263 = vpop.f32.mrb[0].mxu0
    %v1264 = vadd.f32 0.0, %v1263
    %v1265 = vpop.f32.mrb[0].mxu0
    %1266 = vdwg.mxu0
    %v1267 = vmul.f32 %v1259, %v48
    %v1268 = vmul.f32 %v1264, %v48
    %v1269 = vsel %vm234, %v1267, 0.0
    %1270 = vadd.xlane.f32.xlu0 %v1269
    %v1271 = vpop.xlane.xlu0 %1270
    %v1272 = vsel %vm234, %v1268, 0.0
    %1273 = vadd.xlane.f32.xlu0 %v1272
    %v1274 = vpop.xlane.xlu0 %1273
    %v1275 = vmul.f32 %v1259, %v50
    %v1276 = vmul.f32 %v1264, %v50
    %v1277 = vsel %vm234, %v1275, 0.0
    %1278 = vadd.xlane.f32.xlu0 %v1277
    %v1279 = vpop.xlane.xlu0 %1278
    %v1280 = vsel %vm234, %v1276, 0.0
    %1281 = vadd.xlane.f32.xlu0 %v1280
    %v1282 = vpop.xlane.xlu0 %1281
    %v1283 = vmul.f32 %v1279, %v45
    %v1284 = vmul.f32 %v1282, %v46
    %v1285 = vsel %vm251, %v1283, 0.0
    %v1286 = vsel %vm251, %v1284, 0.0
    %v1287 = vadd.f32 %v1285, %v1286
    %v1288 = vrot.slane %v1287, 4
    %v1289 = vadd.f32 %v1287, %v1288
    %v1290 = vrot.slane %v1289, 2
    %v1291 = vadd.f32 %v1289, %v1290
    %v1292 = vrot.slane %v1291, 1
    %v1293 = vadd.f32 %v1291, %v1292
    %v1294 = vadd.f32 %v1271, %v1293
    %v1295 = vadd.f32 %v1274, %v1293
    %vm1296 = vcmp.gt.f32.partialorder %v1294, 0.0
    %vm1297 = vcmp.gt.f32.partialorder %v1295, 0.0
    %v1298 = vmul.f32 %v1294, 0.2
    %v1299 = vmul.f32 %v1295, 0.2
    %v1300 = vsel %vm1296, %v1294, %v1298
    %v1301 = vsel %vm1297, %v1295, %v1299
    %v1302 = vadd.f32 %v1300, %v36
    %v1303 = vadd.f32 %v1301, %v37
    %v1304 = vsel %vm251, %v1302, -inf
    %1305 = vmax.xlane.f32.xlu0 %v1304
    %v1306 = vpop.xlane.xlu0 %1305
    %v1307 = vsel %vm251, %v1303, -inf
    %1308 = vmax.xlane.f32.xlu0 %v1307
    %v1309 = vpop.xlane.xlu0 %1308
    %v1310 = vsub.f32 %v1302, %v1306
    %v1311 = vsub.f32 %v1303, %v1309
    %v1312 = vmul.f32 %v1310, 1.442695
    %v1313 = vpow.pop %v1312
    %v1314 = vmul.f32 %v1311, 1.442695
    %v1315 = vpow.pop %v1314
    %v1316 = vsel %vm251, %v1313, 0.0
    %1317 = vadd.xlane.f32.xlu0 %v1316
    %v1318 = vpop.xlane.xlu0 %1317
    %v1319 = vsel %vm251, %v1315, 0.0
    %1320 = vadd.xlane.f32.xlu0 %v1319
    %v1321 = vpop.xlane.xlu0 %1320
    %v1322 = vrcp.pop %v1318
    %v1323 = vrcp.pop %v1321
    %v1324 = vmul.f32 %v1313, %v1322
    %v1325 = vmul.f32 %v1315, %v1323
    %v1327 = vlaneseq
    %v1328 = vshrl.u32 %v1327, 7
    %v1329 = vsub.s32 0, %v1328
    %v1330 = vrot.slane %v1185, %v1329
    %v1333 = vsel %vm251, %v1324, 0
    %v1336 = vsel %vm251, %v1325, 0
    %1338 = vmatprep.subr.mxu0 0.0
    %1339 = vmatpush1.msra.mxu0 %v1259
    %1340 = vmatprep.subr.mxu0 0.0
    %1341 = vmatpush1.msra.mxu0 %v1264
    %1342 = vmatprep.subr.mxu0 0.0
    %1343 = vmatpush1.msra.mxu0 0.0
    %1344 = vmatprep.subr.mxu0 0.0
    %1345 = vmatpush1.msra.mxu0 0.0
    %1346 = vmatprep.subr.mxu0 0.0
    %1347 = vmatpush1.msra.mxu0 0.0
    %1348 = vmatprep.subr.mxu0 0.0
    %1349 = vmatpush1.msra.mxu0 0.0
    %1350 = vmatprep.subr.mxu0 0.0
    %1351 = vmatpush1.msra.mxu0 0.0
    %1352 = vmatprep.subr.mxu0 0.0
    %1353 = vmatpush1.msra.mxu0 0.0
    %1354 = vmatprep.subr.mxu0 0.0
    %1355 = vmatpush1.msra.mxu0 0.0
    %1356 = vmatprep.subr.mxu0 0.0
    %1357 = vmatpush1.msra.mxu0 0.0
    %1358 = vmatprep.subr.mxu0 0.0
    %1359 = vmatpush1.msra.mxu0 0.0
    %1360 = vmatprep.subr.mxu0 0.0
    %1361 = vmatpush1.msra.mxu0 0.0
    %1362 = vmatprep.subr.mxu0 0.0
    %1363 = vmatpush1.msra.mxu0 0.0
    %1364 = vmatprep.subr.mxu0 0.0
    %1365 = vmatpush1.msra.mxu0 0.0
    %1366 = vmatprep.subr.mxu0 0.0
    %1367 = vmatpush1.msra.mxu0 0.0
    %1368 = vmatprep.subr.mxu0 0.0
    %1369 = vmatpush1.msra.mxu0 0.0
    %1370 = vmatprep.subr.mxu0 0.0
    %1371 = vmatpush1.msra.mxu0 0.0
    %1372 = vmatprep.subr.mxu0 0.0
    %1373 = vmatpush1.msra.mxu0 0.0
    %1374 = vmatprep.subr.mxu0 0.0
    %1375 = vmatpush1.msra.mxu0 0.0
    %1376 = vmatprep.subr.mxu0 0.0
    %1377 = vmatpush1.msra.mxu0 0.0
    %1378 = vmatprep.subr.mxu0 0.0
    %1379 = vmatpush1.msra.mxu0 0.0
    %1380 = vmatprep.subr.mxu0 0.0
    %1381 = vmatpush1.msra.mxu0 0.0
    %1382 = vmatprep.subr.mxu0 0.0
    %1383 = vmatpush1.msra.mxu0 0.0
    %1384 = vmatprep.subr.mxu0 0.0
    %1385 = vmatpush1.msra.mxu0 0.0
    %1386 = vmatprep.subr.mxu0 0.0
    %1387 = vmatpush1.msra.mxu0 0.0
    %1388 = vmatprep.subr.mxu0 0.0
    %1389 = vmatpush1.msra.mxu0 0.0
    %1390 = vmatprep.subr.mxu0 0.0
    %1391 = vmatpush1.msra.mxu0 0.0
    %1392 = vmatprep.subr.mxu0 0.0
    %1393 = vmatpush1.msra.mxu0 0.0
    %1394 = vmatprep.subr.mxu0 0.0
    %1395 = vmatpush1.msra.mxu0 0.0
    %1396 = vmatprep.subr.mxu0 0.0
    %1397 = vmatpush1.msra.mxu0 0.0
    %1398 = vmatprep.subr.mxu0 0.0
    %1399 = vmatpush1.msra.mxu0 0.0
    %1400 = vmatprep.subr.mxu0 0.0
    %1401 = vmatpush1.msra.mxu0 0.0
    %1402 = vmatprep.mubr.f32.mxu0 0.0
    %1403 = vmatmul.mubr.f32.gmra.mrb[0].mxu0 %v1333
    %v1404 = vpop.f32.mrb[0].mxu0
    %v1405 = vadd.f32 %v1330, %v1404
    %v1406 = vpop.f32.mrb[0].mxu0
    %1407 = vmatprep.mubr.f32.mxu0 0.0
    %1408 = vmatmul.mubr.f32.gmra.mrb[0].mxu0 %v1336
    %v1409 = vpop.f32.mrb[0].mxu0
    %v1410 = vadd.f32 %v1330, %v1409
    %v1411 = vpop.f32.mrb[0].mxu0
    %1412 = vdwg.mxu0
    %s1413 = scalar_lea.vmem [#allocation2], 160
    %v1414 = vld [vmem:[%s1413] sm:$0xff]
    %v1415 = vld [vmem:[%s1413 + $0x8] sm:$0xff]
    %v1416 = vld [vmem:[%s1413 + $0x10] sm:$0xff]
    %v1417 = vld [vmem:[%s1413 + $0x18] sm:$0xff]
    %s1418 = scalar_lea.vmem %s3, 7
    %v1419 = vld [vmem:[%s1418] sm:$0x1]
    %v1421 = vsel %vm150, %v1405, 0
    %v1424 = vsel %vm150, %v1410, 0
    %1426 = vmatprep.subr.mxu0 0.0
    %1427 = vmatpush1.msra.mxu0 %v1414
    %1428 = vmatprep.subr.mxu0 0.0
    %1429 = vmatpush1.msra.mxu0 %v1415
    %1430 = vmatprep.subr.mxu0 0.0
    %1431 = vmatpush1.msra.mxu0 %v1416
    %1432 = vmatprep.subr.mxu0 0.0
    %1433 = vmatpush1.msra.mxu0 %v1417
    %1434 = vmatprep.subr.mxu0 0.0
    %1435 = vmatpush1.msra.mxu0 0.0
    %1436 = vmatprep.subr.mxu0 0.0
    %1437 = vmatpush1.msra.mxu0 0.0
    %1438 = vmatprep.subr.mxu0 0.0
    %1439 = vmatpush1.msra.mxu0 0.0
    %1440 = vmatprep.subr.mxu0 0.0
    %1441 = vmatpush1.msra.mxu0 0.0
    %1442 = vmatprep.subr.mxu0 0.0
    %1443 = vmatpush1.msra.mxu0 0.0
    %1444 = vmatprep.subr.mxu0 0.0
    %1445 = vmatpush1.msra.mxu0 0.0
    %1446 = vmatprep.subr.mxu0 0.0
    %1447 = vmatpush1.msra.mxu0 0.0
    %1448 = vmatprep.subr.mxu0 0.0
    %1449 = vmatpush1.msra.mxu0 0.0
    %1450 = vmatprep.subr.mxu0 0.0
    %1451 = vmatpush1.msra.mxu0 0.0
    %1452 = vmatprep.subr.mxu0 0.0
    %1453 = vmatpush1.msra.mxu0 0.0
    %1454 = vmatprep.subr.mxu0 0.0
    %1455 = vmatpush1.msra.mxu0 0.0
    %1456 = vmatprep.subr.mxu0 0.0
    %1457 = vmatpush1.msra.mxu0 0.0
    %1458 = vmatprep.subr.mxu0 0.0
    %1459 = vmatpush1.msra.mxu0 0.0
    %1460 = vmatprep.subr.mxu0 0.0
    %1461 = vmatpush1.msra.mxu0 0.0
    %1462 = vmatprep.subr.mxu0 0.0
    %1463 = vmatpush1.msra.mxu0 0.0
    %1464 = vmatprep.subr.mxu0 0.0
    %1465 = vmatpush1.msra.mxu0 0.0
    %1466 = vmatprep.subr.mxu0 0.0
    %1467 = vmatpush1.msra.mxu0 0.0
    %1468 = vmatprep.subr.mxu0 0.0
    %1469 = vmatpush1.msra.mxu0 0.0
    %1470 = vmatprep.subr.mxu0 0.0
    %1471 = vmatpush1.msra.mxu0 0.0
    %1472 = vmatprep.subr.mxu0 0.0
    %1473 = vmatpush1.msra.mxu0 0.0
    %1474 = vmatprep.subr.mxu0 0.0
    %1475 = vmatpush1.msra.mxu0 0.0
    %1476 = vmatprep.subr.mxu0 0.0
    %1477 = vmatpush1.msra.mxu0 0.0
    %1478 = vmatprep.subr.mxu0 0.0
    %1479 = vmatpush1.msra.mxu0 0.0
    %1480 = vmatprep.subr.mxu0 0.0
    %1481 = vmatpush1.msra.mxu0 0.0
    %1482 = vmatprep.subr.mxu0 0.0
    %1483 = vmatpush1.msra.mxu0 0.0
    %1484 = vmatprep.subr.mxu0 0.0
    %1485 = vmatpush1.msra.mxu0 0.0
    %1486 = vmatprep.subr.mxu0 0.0
    %1487 = vmatpush1.msra.mxu0 0.0
    %1488 = vmatprep.subr.mxu0 0.0
    %1489 = vmatpush1.msra.mxu0 0.0
    %1490 = vmatprep.mubr.f32.mxu0 0.0
    %1491 = vmatmul.mubr.f32.gmra.mrb[0].mxu0 %v1421
    %v1492 = vpop.f32.mrb[0].mxu0
    %v1493 = vadd.f32 0.0, %v1492
    %v1494 = vpop.f32.mrb[0].mxu0
    %1495 = vmatprep.mubr.f32.mxu0 0.0
    %1496 = vmatmul.mubr.f32.gmra.mrb[0].mxu0 %v1424
    %v1497 = vpop.f32.mrb[0].mxu0
    %v1498 = vadd.f32 0.0, %v1497
    %v1499 = vpop.f32.mrb[0].mxu0
    %1500 = vdwg.mxu0
    %v1502 = vsel %vm150, %v1493, 0
    %v1505 = vsel %vm150, %v1498, 0
    %1507 = vmatprep.subr.mxu0 0.0
    %1508 = vmatpush1.xpose.msra.mxu0 %v1421
    %1509 = vmatprep.subr.mxu0 0.0
    %1510 = vmatpush1.xpose.msra.mxu0 %v1424
    %1511 = vmatprep.subr.mxu0 0.0
    %1512 = vmatpush1.xpose.msra.mxu0 0.0
    %1513 = vmatprep.subr.mxu0 0.0
    %1514 = vmatpush1.xpose.msra.mxu0 0.0
    %1515 = vmatprep.subr.mxu0 0.0
    %1516 = vmatpush1.xpose.msra.mxu0 0.0
    %1517 = vmatprep.subr.mxu0 0.0
    %1518 = vmatpush1.xpose.msra.mxu0 0.0
    %1519 = vmatprep.subr.mxu0 0.0
    %1520 = vmatpush1.xpose.msra.mxu0 0.0
    %1521 = vmatprep.subr.mxu0 0.0
    %1522 = vmatpush1.xpose.msra.mxu0 0.0
    %1523 = vmatprep.subr.mxu0 0.0
    %1524 = vmatpush1.xpose.msra.mxu0 0.0
    %1525 = vmatprep.subr.mxu0 0.0
    %1526 = vmatpush1.xpose.msra.mxu0 0.0
    %1527 = vmatprep.subr.mxu0 0.0
    %1528 = vmatpush1.xpose.msra.mxu0 0.0
    %1529 = vmatprep.subr.mxu0 0.0
    %1530 = vmatpush1.xpose.msra.mxu0 0.0
    %1531 = vmatprep.subr.mxu0 0.0
    %1532 = vmatpush1.xpose.msra.mxu0 0.0
    %1533 = vmatprep.subr.mxu0 0.0
    %1534 = vmatpush1.xpose.msra.mxu0 0.0
    %1535 = vmatprep.subr.mxu0 0.0
    %1536 = vmatpush1.xpose.msra.mxu0 0.0
    %1537 = vmatprep.subr.mxu0 0.0
    %1538 = vmatpush1.xpose.msra.mxu0 0.0
    %1539 = vmatprep.subr.mxu0 0.0
    %1540 = vmatpush1.xpose.msra.mxu0 0.0
    %1541 = vmatprep.subr.mxu0 0.0
    %1542 = vmatpush1.xpose.msra.mxu0 0.0
    %1543 = vmatprep.subr.mxu0 0.0
    %1544 = vmatpush1.xpose.msra.mxu0 0.0
    %1545 = vmatprep.subr.mxu0 0.0
    %1546 = vmatpush1.xpose.msra.mxu0 0.0
    %1547 = vmatprep.subr.mxu0 0.0
    %1548 = vmatpush1.xpose.msra.mxu0 0.0
    %1549 = vmatprep.subr.mxu0 0.0
    %1550 = vmatpush1.xpose.msra.mxu0 0.0
    %1551 = vmatprep.subr.mxu0 0.0
    %1552 = vmatpush1.xpose.msra.mxu0 0.0
    %1553 = vmatprep.subr.mxu0 0.0
    %1554 = vmatpush1.xpose.msra.mxu0 0.0
    %1555 = vmatprep.subr.mxu0 0.0
    %1556 = vmatpush1.xpose.msra.mxu0 0.0
    %1557 = vmatprep.subr.mxu0 0.0
    %1558 = vmatpush1.xpose.msra.mxu0 0.0
    %1559 = vmatprep.subr.mxu0 0.0
    %1560 = vmatpush1.xpose.msra.mxu0 0.0
    %1561 = vmatprep.subr.mxu0 0.0
    %1562 = vmatpush1.xpose.msra.mxu0 0.0
    %1563 = vmatprep.subr.mxu0 0.0
    %1564 = vmatpush1.xpose.msra.mxu0 0.0
    %1565 = vmatprep.subr.mxu0 0.0
    %1566 = vmatpush1.xpose.msra.mxu0 0.0
    %1567 = vmatprep.subr.mxu0 0.0
    %1568 = vmatpush1.xpose.msra.mxu0 0.0
    %1569 = vmatprep.subr.mxu0 0.0
    %1570 = vmatpush1.xpose.msra.mxu0 0.0
    %1571 = vmatprep.mubr.f32.mxu0 0.0
    %1572 = vmatmul.mubr.f32.gmra.mrb[0].mxu0 %v1502
    %v1573 = vpop.f32.mrb[0].mxu0
    %v1574 = vadd.f32 0.0, %v1573
    %v1575 = vpop.f32.mrb[0].mxu0
    %1576 = vmatprep.mubr.f32.mxu0 0.0
    %1577 = vmatmul.mubr.f32.gmra.mrb[0].mxu0 %v1505
    %v1578 = vpop.f32.mrb[0].mxu0
    %v1579 = vadd.f32 0.0, %v1578
    %v1580 = vpop.f32.mrb[0].mxu0
    %1581 = vdwg.mxu0
    %v1582 = vsel %vm251, %v1574, -inf
    %1583 = vmax.xlane.f32.xlu0 %v1582
    %v1584 = vpop.xlane.xlu0 %1583
    %v1585 = vsel %vm251, %v1579, -inf
    %1586 = vmax.xlane.f32.xlu0 %v1585
    %v1587 = vpop.xlane.xlu0 %1586
    %v1588 = vsub.f32 %v1574, %v1584
    %v1589 = vsub.f32 %v1579, %v1587
    %v1590 = vmul.f32 %v1588, 1.442695
    %v1591 = vpow.pop %v1590
    %v1592 = vmul.f32 %v1589, 1.442695
    %v1593 = vpow.pop %v1592
    %v1594 = vsel %vm251, %v1591, 0.0
    %1595 = vadd.xlane.f32.xlu0 %v1594
    %v1596 = vpop.xlane.xlu0 %1595
    %v1597 = vsel %vm251, %v1593, 0.0
    %1598 = vadd.xlane.f32.xlu0 %v1597
    %v1599 = vpop.xlane.xlu0 %1598
    %v1600 = vrcp.pop %v1596
    %v1601 = vrcp.pop %v1599
    %v1602 = vmul.f32 %v1591, %v1600
    %v1603 = vmul.f32 %v1593, %v1601
    %v1605 = vlaneseq
    %v1606 = vshrl.u32 %v1605, 7
    %v1607 = vsub.s32 0, %v1606
    %v1608 = vrot.slane %v1419, %v1607
    %v1611 = vsel %vm251, %v1602, 0
    %v1614 = vsel %vm251, %v1603, 0
    %1616 = vmatprep.subr.mxu0 0.0
    %1617 = vmatpush1.msra.mxu0 %v1405
    %1618 = vmatprep.subr.mxu0 0.0
    %1619 = vmatpush1.msra.mxu0 %v1410
    %1620 = vmatprep.subr.mxu0 0.0
    %1621 = vmatpush1.msra.mxu0 0.0
    %1622 = vmatprep.subr.mxu0 0.0
    %1623 = vmatpush1.msra.mxu0 0.0
    %1624 = vmatprep.subr.mxu0 0.0
    %1625 = vmatpush1.msra.mxu0 0.0
    %1626 = vmatprep.subr.mxu0 0.0
    %1627 = vmatpush1.msra.mxu0 0.0
    %1628 = vmatprep.subr.mxu0 0.0
    %1629 = vmatpush1.msra.mxu0 0.0
    %1630 = vmatprep.subr.mxu0 0.0
    %1631 = vmatpush1.msra.mxu0 0.0
    %1632 = vmatprep.subr.mxu0 0.0
    %1633 = vmatpush1.msra.mxu0 0.0
    %1634 = vmatprep.subr.mxu0 0.0
    %1635 = vmatpush1.msra.mxu0 0.0
    %1636 = vmatprep.subr.mxu0 0.0
    %1637 = vmatpush1.msra.mxu0 0.0
    %1638 = vmatprep.subr.mxu0 0.0
    %1639 = vmatpush1.msra.mxu0 0.0
    %1640 = vmatprep.subr.mxu0 0.0
    %1641 = vmatpush1.msra.mxu0 0.0
    %1642 = vmatprep.subr.mxu0 0.0
    %1643 = vmatpush1.msra.mxu0 0.0
    %1644 = vmatprep.subr.mxu0 0.0
    %1645 = vmatpush1.msra.mxu0 0.0
    %1646 = vmatprep.subr.mxu0 0.0
    %1647 = vmatpush1.msra.mxu0 0.0
    %1648 = vmatprep.subr.mxu0 0.0
    %1649 = vmatpush1.msra.mxu0 0.0
    %1650 = vmatprep.subr.mxu0 0.0
    %1651 = vmatpush1.msra.mxu0 0.0
    %1652 = vmatprep.subr.mxu0 0.0
    %1653 = vmatpush1.msra.mxu0 0.0
    %1654 = vmatprep.subr.mxu0 0.0
    %1655 = vmatpush1.msra.mxu0 0.0
    %1656 = vmatprep.subr.mxu0 0.0
    %1657 = vmatpush1.msra.mxu0 0.0
    %1658 = vmatprep.subr.mxu0 0.0
    %1659 = vmatpush1.msra.mxu0 0.0
    %1660 = vmatprep.subr.mxu0 0.0
    %1661 = vmatpush1.msra.mxu0 0.0
    %1662 = vmatprep.subr.mxu0 0.0
    %1663 = vmatpush1.msra.mxu0 0.0
    %1664 = vmatprep.subr.mxu0 0.0
    %1665 = vmatpush1.msra.mxu0 0.0
    %1666 = vmatprep.subr.mxu0 0.0
    %1667 = vmatpush1.msra.mxu0 0.0
    %1668 = vmatprep.subr.mxu0 0.0
    %1669 = vmatpush1.msra.mxu0 0.0
    %1670 = vmatprep.subr.mxu0 0.0
    %1671 = vmatpush1.msra.mxu0 0.0
    %1672 = vmatprep.subr.mxu0 0.0
    %1673 = vmatpush1.msra.mxu0 0.0
    %1674 = vmatprep.subr.mxu0 0.0
    %1675 = vmatpush1.msra.mxu0 0.0
    %1676 = vmatprep.subr.mxu0 0.0
    %1677 = vmatpush1.msra.mxu0 0.0
    %1678 = vmatprep.subr.mxu0 0.0
    %1679 = vmatpush1.msra.mxu0 0.0
    %1680 = vmatprep.mubr.f32.mxu0 0.0
    %1681 = vmatmul.mubr.f32.gmra.mrb[0].mxu0 %v1611
    %v1682 = vpop.f32.mrb[0].mxu0
    %v1683 = vadd.f32 %v1608, %v1682
    %v1684 = vpop.f32.mrb[0].mxu0
    %1685 = vmatprep.mubr.f32.mxu0 0.0
    %1686 = vmatmul.mubr.f32.gmra.mrb[0].mxu0 %v1614
    %v1687 = vpop.f32.mrb[0].mxu0
    %v1688 = vadd.f32 %v1608, %v1687
    %v1689 = vpop.f32.mrb[0].mxu0
    %1690 = vdwg.mxu0
    %s1691 = scalar_lea.vmem %s3, 8
    %v1692 = vld [vmem:[%s1691] sm:$0x1]
    %s1693 = scalar_lea.vmem %s3, 9
    %v1694 = vld [vmem:[%s1693] sm:$0x1]
    %v1695 = vadd.f32 %v1683, %v941
    %v1696 = vadd.f32 %v1688, %v942
    %v1697 = vsel %vm150, %v1695, 0.0
    %1698 = vadd.xlane.f32.xlu0 %v1697
    %v1699 = vpop.xlane.xlu0 %1698
    %v1700 = vsel %vm150, %v1696, 0.0
    %1701 = vadd.xlane.f32.xlu0 %v1700
    %v1702 = vpop.xlane.xlu0 %1701
    %v1703 = vmul.f32 %v1699, %v906
    %v1704 = vmul.f32 %v1702, %v906
    %v1705 = vsub.f32 %v1695, %v1703
    %v1706 = vsub.f32 %v1696, %v1704
    %v1707 = vmul.f32 %v1705, %v1705
    %v1708 = vmul.f32 %v1706, %v1706
    %v1709 = vsel %vm150, %v1707, 0.0
    %1710 = vadd.xlane.f32.xlu0 %v1709
    %v1711 = vpop.xlane.xlu0 %1710
    %v1712 = vsel %vm150, %v1708, 0.0
    %1713 = vadd.xlane.f32.xlu0 %v1712
    %v1714 = vpop.xlane.xlu0 %1713
    %v1715 = vmul.f32 %v1711, %v906
    %v1716 = vmul.f32 %v1714, %v906
    %v1717 = vadd.f32 %v1715, 1e-05
    %v1718 = vadd.f32 %v1716, 1e-05
    %v1719 = vrsqrt.pop %v1717
    %v1720 = vrsqrt.pop %v1718
    %v1721 = vmul.f32 %v1705, %v1719
    %v1722 = vmul.f32 %v1706, %v1720
    %v1724 = vlaneseq
    %v1725 = vshrl.u32 %v1724, 7
    %v1726 = vsub.s32 0, %v1725
    %v1727 = vrot.slane %v1692, %v1726
    %v1729 = vmul.f32 %v1721, %v1727
    %v1730 = vmul.f32 %v1722, %v1727
    %v1732 = vlaneseq
    %v1733 = vshrl.u32 %v1732, 7
    %v1734 = vsub.s32 0, %v1733
    %v1735 = vrot.slane %v1694, %v1734
    %v1737 = vadd.f32 %v1729, %v1735
    %v1738 = vadd.f32 %v1730, %v1735
    %s1739 = scalar_lea.vmem [#allocation2], 192
    %v1740 = vld [vmem:[%s1739] sm:$0xff]
    %v1741 = vld [vmem:[%s1739 + $0x8] sm:$0xff]
    %v1742 = vld [vmem:[%s1739 + $0x10] sm:$0xff]
    %v1743 = vld [vmem:[%s1739 + $0x18] sm:$0xff]
    %s1744 = scalar_lea.vmem %s3, 10
    %v1745 = vld [vmem:[%s1744] sm:$0x1]
    %v1747 = vsel %vm150, %v1737, 0
    %v1750 = vsel %vm150, %v1738, 0
    %1752 = vmatprep.subr.mxu0 0.0
    %1753 = vmatpush1.msra.mxu0 %v1740
    %1754 = vmatprep.subr.mxu0 0.0
    %1755 = vmatpush1.msra.mxu0 %v1741
    %1756 = vmatprep.subr.mxu0 0.0
    %1757 = vmatpush1.msra.mxu0 %v1742
    %1758 = vmatprep.subr.mxu0 0.0
    %1759 = vmatpush1.msra.mxu0 %v1743
    %1760 = vmatprep.subr.mxu0 0.0
    %1761 = vmatpush1.msra.mxu0 0.0
    %1762 = vmatprep.subr.mxu0 0.0
    %1763 = vmatpush1.msra.mxu0 0.0
    %1764 = vmatprep.subr.mxu0 0.0
    %1765 = vmatpush1.msra.mxu0 0.0
    %1766 = vmatprep.subr.mxu0 0.0
    %1767 = vmatpush1.msra.mxu0 0.0
    %1768 = vmatprep.subr.mxu0 0.0
    %1769 = vmatpush1.msra.mxu0 0.0
    %1770 = vmatprep.subr.mxu0 0.0
    %1771 = vmatpush1.msra.mxu0 0.0
    %1772 = vmatprep.subr.mxu0 0.0
    %1773 = vmatpush1.msra.mxu0 0.0
    %1774 = vmatprep.subr.mxu0 0.0
    %1775 = vmatpush1.msra.mxu0 0.0
    %1776 = vmatprep.subr.mxu0 0.0
    %1777 = vmatpush1.msra.mxu0 0.0
    %1778 = vmatprep.subr.mxu0 0.0
    %1779 = vmatpush1.msra.mxu0 0.0
    %1780 = vmatprep.subr.mxu0 0.0
    %1781 = vmatpush1.msra.mxu0 0.0
    %1782 = vmatprep.subr.mxu0 0.0
    %1783 = vmatpush1.msra.mxu0 0.0
    %1784 = vmatprep.subr.mxu0 0.0
    %1785 = vmatpush1.msra.mxu0 0.0
    %1786 = vmatprep.subr.mxu0 0.0
    %1787 = vmatpush1.msra.mxu0 0.0
    %1788 = vmatprep.subr.mxu0 0.0
    %1789 = vmatpush1.msra.mxu0 0.0
    %1790 = vmatprep.subr.mxu0 0.0
    %1791 = vmatpush1.msra.mxu0 0.0
    %1792 = vmatprep.subr.mxu0 0.0
    %1793 = vmatpush1.msra.mxu0 0.0
    %1794 = vmatprep.subr.mxu0 0.0
    %1795 = vmatpush1.msra.mxu0 0.0
    %1796 = vmatprep.subr.mxu0 0.0
    %1797 = vmatpush1.msra.mxu0 0.0
    %1798 = vmatprep.subr.mxu0 0.0
    %1799 = vmatpush1.msra.mxu0 0.0
    %1800 = vmatprep.subr.mxu0 0.0
    %1801 = vmatpush1.msra.mxu0 0.0
    %1802 = vmatprep.subr.mxu0 0.0
    %1803 = vmatpush1.msra.mxu0 0.0
    %1804 = vmatprep.subr.mxu0 0.0
    %1805 = vmatpush1.msra.mxu0 0.0
    %1806 = vmatprep.subr.mxu0 0.0
    %1807 = vmatpush1.msra.mxu0 0.0
    %1808 = vmatprep.subr.mxu0 0.0
    %1809 = vmatpush1.msra.mxu0 0.0
    %1810 = vmatprep.subr.mxu0 0.0
    %1811 = vmatpush1.msra.mxu0 0.0
    %1812 = vmatprep.subr.mxu0 0.0
    %1813 = vmatpush1.msra.mxu0 0.0
    %1814 = vmatprep.subr.mxu0 0.0
    %1815 = vmatpush1.msra.mxu0 0.0
    %1816 = vmatprep.mubr.f32.mxu0 0.0
    %1817 = vmatmul.mubr.f32.gmra.mrb[0].mxu0 %v1747
    %v1818 = vpop.f32.mrb[0].mxu0
    %v1819 = vadd.f32 0.0, %v1818
    %v1820 = vpop.f32.mrb[0].mxu0
    %1821 = vmatprep.mubr.f32.mxu0 0.0
    %1822 = vmatmul.mubr.f32.gmra.mrb[0].mxu0 %v1750
    %v1823 = vpop.f32.mrb[0].mxu0
    %v1824 = vadd.f32 0.0, %v1823
    %v1825 = vpop.f32.mrb[0].mxu0
    %1826 = vdwg.mxu0
    %v1827 = vmul.f32 %v1819, %v48
    %v1828 = vmul.f32 %v1824, %v48
    %v1829 = vsel %vm234, %v1827, 0.0
    %1830 = vadd.xlane.f32.xlu0 %v1829
    %v1831 = vpop.xlane.xlu0 %1830
    %v1832 = vsel %vm234, %v1828, 0.0
    %1833 = vadd.xlane.f32.xlu0 %v1832
    %v1834 = vpop.xlane.xlu0 %1833
    %v1835 = vmul.f32 %v1819, %v50
    %v1836 = vmul.f32 %v1824, %v50
    %v1837 = vsel %vm234, %v1835, 0.0
    %1838 = vadd.xlane.f32.xlu0 %v1837
    %v1839 = vpop.xlane.xlu0 %1838
    %v1840 = vsel %vm234, %v1836, 0.0
    %1841 = vadd.xlane.f32.xlu0 %v1840
    %v1842 = vpop.xlane.xlu0 %1841
    %v1843 = vmul.f32 %v1839, %v45
    %v1844 = vmul.f32 %v1842, %v46
    %v1845 = vsel %vm251, %v1843, 0.0
    %v1846 = vsel %vm251, %v1844, 0.0
    %v1847 = vadd.f32 %v1845, %v1846
    %v1848 = vrot.slane %v1847, 4
    %v1849 = vadd.f32 %v1847, %v1848
    %v1850 = vrot.slane %v1849, 2
    %v1851 = vadd.f32 %v1849, %v1850
    %v1852 = vrot.slane %v1851, 1
    %v1853 = vadd.f32 %v1851, %v1852
    %v1854 = vadd.f32 %v1831, %v1853
    %v1855 = vadd.f32 %v1834, %v1853
    %vm1856 = vcmp.gt.f32.partialorder %v1854, 0.0
    %vm1857 = vcmp.gt.f32.partialorder %v1855, 0.0
    %v1858 = vmul.f32 %v1854, 0.2
    %v1859 = vmul.f32 %v1855, 0.2
    %v1860 = vsel %vm1856, %v1854, %v1858
    %v1861 = vsel %vm1857, %v1855, %v1859
    %v1862 = vadd.f32 %v1860, %v36
    %v1863 = vadd.f32 %v1861, %v37
    %v1864 = vsel %vm251, %v1862, -inf
    %1865 = vmax.xlane.f32.xlu0 %v1864
    %v1866 = vpop.xlane.xlu0 %1865
    %v1867 = vsel %vm251, %v1863, -inf
    %1868 = vmax.xlane.f32.xlu0 %v1867
    %v1869 = vpop.xlane.xlu0 %1868
    %v1870 = vsub.f32 %v1862, %v1866
    %v1871 = vsub.f32 %v1863, %v1869
    %v1872 = vmul.f32 %v1870, 1.442695
    %v1873 = vpow.pop %v1872
    %v1874 = vmul.f32 %v1871, 1.442695
    %v1875 = vpow.pop %v1874
    %v1876 = vsel %vm251, %v1873, 0.0
    %1877 = vadd.xlane.f32.xlu0 %v1876
    %v1878 = vpop.xlane.xlu0 %1877
    %v1879 = vsel %vm251, %v1875, 0.0
    %1880 = vadd.xlane.f32.xlu0 %v1879
    %v1881 = vpop.xlane.xlu0 %1880
    %v1882 = vrcp.pop %v1878
    %v1883 = vrcp.pop %v1881
    %v1884 = vmul.f32 %v1873, %v1882
    %v1885 = vmul.f32 %v1875, %v1883
    %v1887 = vlaneseq
    %v1888 = vshrl.u32 %v1887, 7
    %v1889 = vsub.s32 0, %v1888
    %v1890 = vrot.slane %v1745, %v1889
    %v1893 = vsel %vm251, %v1884, 0
    %v1896 = vsel %vm251, %v1885, 0
    %1898 = vmatprep.subr.mxu0 0.0
    %1899 = vmatpush1.msra.mxu0 %v1819
    %1900 = vmatprep.subr.mxu0 0.0
    %1901 = vmatpush1.msra.mxu0 %v1824
    %1902 = vmatprep.subr.mxu0 0.0
    %1903 = vmatpush1.msra.mxu0 0.0
    %1904 = vmatprep.subr.mxu0 0.0
    %1905 = vmatpush1.msra.mxu0 0.0
    %1906 = vmatprep.subr.mxu0 0.0
    %1907 = vmatpush1.msra.mxu0 0.0
    %1908 = vmatprep.subr.mxu0 0.0
    %1909 = vmatpush1.msra.mxu0 0.0
    %1910 = vmatprep.subr.mxu0 0.0
    %1911 = vmatpush1.msra.mxu0 0.0
    %1912 = vmatprep.subr.mxu0 0.0
    %1913 = vmatpush1.msra.mxu0 0.0
    %1914 = vmatprep.subr.mxu0 0.0
    %1915 = vmatpush1.msra.mxu0 0.0
    %1916 = vmatprep.subr.mxu0 0.0
    %1917 = vmatpush1.msra.mxu0 0.0
    %1918 = vmatprep.subr.mxu0 0.0
    %1919 = vmatpush1.msra.mxu0 0.0
    %1920 = vmatprep.subr.mxu0 0.0
    %1921 = vmatpush1.msra.mxu0 0.0
    %1922 = vmatprep.subr.mxu0 0.0
    %1923 = vmatpush1.msra.mxu0 0.0
    %1924 = vmatprep.subr.mxu0 0.0
    %1925 = vmatpush1.msra.mxu0 0.0
    %1926 = vmatprep.subr.mxu0 0.0
    %1927 = vmatpush1.msra.mxu0 0.0
    %1928 = vmatprep.subr.mxu0 0.0
    %1929 = vmatpush1.msra.mxu0 0.0
    %1930 = vmatprep.subr.mxu0 0.0
    %1931 = vmatpush1.msra.mxu0 0.0
    %1932 = vmatprep.subr.mxu0 0.0
    %1933 = vmatpush1.msra.mxu0 0.0
    %1934 = vmatprep.subr.mxu0 0.0
    %1935 = vmatpush1.msra.mxu0 0.0
    %1936 = vmatprep.subr.mxu0 0.0
    %1937 = vmatpush1.msra.mxu0 0.0
    %1938 = vmatprep.subr.mxu0 0.0
    %1939 = vmatpush1.msra.mxu0 0.0
    %1940 = vmatprep.subr.mxu0 0.0
    %1941 = vmatpush1.msra.mxu0 0.0
    %1942 = vmatprep.subr.mxu0 0.0
    %1943 = vmatpush1.msra.mxu0 0.0
    %1944 = vmatprep.subr.mxu0 0.0
    %1945 = vmatpush1.msra.mxu0 0.0
    %1946 = vmatprep.subr.mxu0 0.0
    %1947 = vmatpush1.msra.mxu0 0.0
    %1948 = vmatprep.subr.mxu0 0.0
    %1949 = vmatpush1.msra.mxu0 0.0
    %1950 = vmatprep.subr.mxu0 0.0
    %1951 = vmatpush1.msra.mxu0 0.0
    %1952 = vmatprep.subr.mxu0 0.0
    %1953 = vmatpush1.msra.mxu0 0.0
    %1954 = vmatprep.subr.mxu0 0.0
    %1955 = vmatpush1.msra.mxu0 0.0
    %1956 = vmatprep.subr.mxu0 0.0
    %1957 = vmatpush1.msra.mxu0 0.0
    %1958 = vmatprep.subr.mxu0 0.0
    %1959 = vmatpush1.msra.mxu0 0.0
    %1960 = vmatprep.subr.mxu0 0.0
    %1961 = vmatpush1.msra.mxu0 0.0
    %1962 = vmatprep.mubr.f32.mxu0 0.0
    %1963 = vmatmul.mubr.f32.gmra.mrb[0].mxu0 %v1893
    %v1964 = vpop.f32.mrb[0].mxu0
    %v1965 = vadd.f32 %v1890, %v1964
    %v1966 = vpop.f32.mrb[0].mxu0
    %1967 = vmatprep.mubr.f32.mxu0 0.0
    %1968 = vmatmul.mubr.f32.gmra.mrb[0].mxu0 %v1896
    %v1969 = vpop.f32.mrb[0].mxu0
    %v1970 = vadd.f32 %v1890, %v1969
    %v1971 = vpop.f32.mrb[0].mxu0
    %1972 = vdwg.mxu0
    %v1973 = vmax.f32 %v1965, 0.0
    %v1974 = vmax.f32 %v1970, 0.0
    %s1975 = scalar_lea.vmem [#allocation2], 224
    %v1976 = vld [vmem:[%s1975] sm:$0xff]
    %v1977 = vld [vmem:[%s1975 + $0x8] sm:$0xff]
    %v1978 = vld [vmem:[%s1975 + $0x10] sm:$0xff]
    %v1979 = vld [vmem:[%s1975 + $0x18] sm:$0xff]
    %s1980 = scalar_lea.vmem %s3, 11
    %v1981 = vld [vmem:[%s1980] sm:$0x1]
    %v1983 = vsel %vm150, %v1973, 0
    %v1986 = vsel %vm150, %v1974, 0
    %1988 = vmatprep.subr.mxu0 0.0
    %1989 = vmatpush1.msra.mxu0 %v1976
    %1990 = vmatprep.subr.mxu0 0.0
    %1991 = vmatpush1.msra.mxu0 %v1977
    %1992 = vmatprep.subr.mxu0 0.0
    %1993 = vmatpush1.msra.mxu0 %v1978
    %1994 = vmatprep.subr.mxu0 0.0
    %1995 = vmatpush1.msra.mxu0 %v1979
    %1996 = vmatprep.subr.mxu0 0.0
    %1997 = vmatpush1.msra.mxu0 0.0
    %1998 = vmatprep.subr.mxu0 0.0
    %1999 = vmatpush1.msra.mxu0 0.0
    %2000 = vmatprep.subr.mxu0 0.0
    %2001 = vmatpush1.msra.mxu0 0.0
    %2002 = vmatprep.subr.mxu0 0.0
    %2003 = vmatpush1.msra.mxu0 0.0
    %2004 = vmatprep.subr.mxu0 0.0
    %2005 = vmatpush1.msra.mxu0 0.0
    %2006 = vmatprep.subr.mxu0 0.0
    %2007 = vmatpush1.msra.mxu0 0.0
    %2008 = vmatprep.subr.mxu0 0.0
    %2009 = vmatpush1.msra.mxu0 0.0
    %2010 = vmatprep.subr.mxu0 0.0
    %2011 = vmatpush1.msra.mxu0 0.0
    %2012 = vmatprep.subr.mxu0 0.0
    %2013 = vmatpush1.msra.mxu0 0.0
    %2014 = vmatprep.subr.mxu0 0.0
    %2015 = vmatpush1.msra.mxu0 0.0
    %2016 = vmatprep.subr.mxu0 0.0
    %2017 = vmatpush1.msra.mxu0 0.0
    %2018 = vmatprep.subr.mxu0 0.0
    %2019 = vmatpush1.msra.mxu0 0.0
    %2020 = vmatprep.subr.mxu0 0.0
    %2021 = vmatpush1.msra.mxu0 0.0
    %2022 = vmatprep.subr.mxu0 0.0
    %2023 = vmatpush1.msra.mxu0 0.0
    %2024 = vmatprep.subr.mxu0 0.0
    %2025 = vmatpush1.msra.mxu0 0.0
    %2026 = vmatprep.subr.mxu0 0.0
    %2027 = vmatpush1.msra.mxu0 0.0
    %2028 = vmatprep.subr.mxu0 0.0
    %2029 = vmatpush1.msra.mxu0 0.0
    %2030 = vmatprep.subr.mxu0 0.0
    %2031 = vmatpush1.msra.mxu0 0.0
    %2032 = vmatprep.subr.mxu0 0.0
    %2033 = vmatpush1.msra.mxu0 0.0
    %2034 = vmatprep.subr.mxu0 0.0
    %2035 = vmatpush1.msra.mxu0 0.0
    %2036 = vmatprep.subr.mxu0 0.0
    %2037 = vmatpush1.msra.mxu0 0.0
    %2038 = vmatprep.subr.mxu0 0.0
    %2039 = vmatpush1.msra.mxu0 0.0
    %2040 = vmatprep.subr.mxu0 0.0
    %2041 = vmatpush1.msra.mxu0 0.0
    %2042 = vmatprep.subr.mxu0 0.0
    %2043 = vmatpush1.msra.mxu0 0.0
    %2044 = vmatprep.subr.mxu0 0.0
    %2045 = vmatpush1.msra.mxu0 0.0
    %2046 = vmatprep.subr.mxu0 0.0
    %2047 = vmatpush1.msra.mxu0 0.0
    %2048 = vmatprep.subr.mxu0 0.0
    %2049 = vmatpush1.msra.mxu0 0.0
    %2050 = vmatprep.subr.mxu0 0.0
    %2051 = vmatpush1.msra.mxu0 0.0
    %2052 = vmatprep.mubr.f32.mxu0 0.0
    %2053 = vmatmul.mubr.f32.gmra.mrb[0].mxu0 %v1983
    %v2054 = vpop.f32.mrb[0].mxu0
    %v2055 = vadd.f32 0.0, %v2054
    %v2056 = vpop.f32.mrb[0].mxu0
    %2057 = vmatprep.mubr.f32.mxu0 0.0
    %2058 = vmatmul.mubr.f32.gmra.mrb[0].mxu0 %v1986
    %v2059 = vpop.f32.mrb[0].mxu0
    %v2060 = vadd.f32 0.0, %v2059
    %v2061 = vpop.f32.mrb[0].mxu0
    %2062 = vdwg.mxu0
    %v2063 = vmul.f32 %v2055, %v48
    %v2064 = vmul.f32 %v2060, %v48
    %v2065 = vsel %vm234, %v2063, 0.0
    %2066 = vadd.xlane.f32.xlu0 %v2065
    %v2067 = vpop.xlane.xlu0 %2066
    %v2068 = vsel %vm234, %v2064, 0.0
    %2069 = vadd.xlane.f32.xlu0 %v2068
    %v2070 = vpop.xlane.xlu0 %2069
    %v2071 = vmul.f32 %v2055, %v50
    %v2072 = vmul.f32 %v2060, %v50
    %v2073 = vsel %vm234, %v2071, 0.0
    %2074 = vadd.xlane.f32.xlu0 %v2073
    %v2075 = vpop.xlane.xlu0 %2074
    %v2076 = vsel %vm234, %v2072, 0.0
    %2077 = vadd.xlane.f32.xlu0 %v2076
    %v2078 = vpop.xlane.xlu0 %2077
    %v2079 = vmul.f32 %v2075, %v45
    %v2080 = vmul.f32 %v2078, %v46
    %v2081 = vsel %vm251, %v2079, 0.0
    %v2082 = vsel %vm251, %v2080, 0.0
    %v2083 = vadd.f32 %v2081, %v2082
    %v2084 = vrot.slane %v2083, 4
    %v2085 = vadd.f32 %v2083, %v2084
    %v2086 = vrot.slane %v2085, 2
    %v2087 = vadd.f32 %v2085, %v2086
    %v2088 = vrot.slane %v2087, 1
    %v2089 = vadd.f32 %v2087, %v2088
    %v2090 = vadd.f32 %v2067, %v2089
    %v2091 = vadd.f32 %v2070, %v2089
    %vm2092 = vcmp.gt.f32.partialorder %v2090, 0.0
    %vm2093 = vcmp.gt.f32.partialorder %v2091, 0.0
    %v2094 = vmul.f32 %v2090, 0.2
    %v2095 = vmul.f32 %v2091, 0.2
    %v2096 = vsel %vm2092, %v2090, %v2094
    %v2097 = vsel %vm2093, %v2091, %v2095
    %v2098 = vadd.f32 %v2096, %v36
    %v2099 = vadd.f32 %v2097, %v37
    %v2100 = vsel %vm251, %v2098, -inf
    %2101 = vmax.xlane.f32.xlu0 %v2100
    %v2102 = vpop.xlane.xlu0 %2101
    %v2103 = vsel %vm251, %v2099, -inf
    %2104 = vmax.xlane.f32.xlu0 %v2103
    %v2105 = vpop.xlane.xlu0 %2104
    %v2106 = vsub.f32 %v2098, %v2102
    %v2107 = vsub.f32 %v2099, %v2105
    %v2108 = vmul.f32 %v2106, 1.442695
    %v2109 = vpow.pop %v2108
    %v2110 = vmul.f32 %v2107, 1.442695
    %v2111 = vpow.pop %v2110
    %v2112 = vsel %vm251, %v2109, 0.0
    %2113 = vadd.xlane.f32.xlu0 %v2112
    %v2114 = vpop.xlane.xlu0 %2113
    %v2115 = vsel %vm251, %v2111, 0.0
    %2116 = vadd.xlane.f32.xlu0 %v2115
    %v2117 = vpop.xlane.xlu0 %2116
    %v2118 = vrcp.pop %v2114
    %v2119 = vrcp.pop %v2117
    %v2120 = vmul.f32 %v2109, %v2118
    %v2121 = vmul.f32 %v2111, %v2119
    %v2123 = vlaneseq
    %v2124 = vshrl.u32 %v2123, 7
    %v2125 = vsub.s32 0, %v2124
    %v2126 = vrot.slane %v1981, %v2125
    %v2129 = vsel %vm251, %v2120, 0
    %v2132 = vsel %vm251, %v2121, 0
    %2134 = vmatprep.subr.mxu0 0.0
    %2135 = vmatpush1.msra.mxu0 %v2055
    %2136 = vmatprep.subr.mxu0 0.0
    %2137 = vmatpush1.msra.mxu0 %v2060
    %2138 = vmatprep.subr.mxu0 0.0
    %2139 = vmatpush1.msra.mxu0 0.0
    %2140 = vmatprep.subr.mxu0 0.0
    %2141 = vmatpush1.msra.mxu0 0.0
    %2142 = vmatprep.subr.mxu0 0.0
    %2143 = vmatpush1.msra.mxu0 0.0
    %2144 = vmatprep.subr.mxu0 0.0
    %2145 = vmatpush1.msra.mxu0 0.0
    %2146 = vmatprep.subr.mxu0 0.0
    %2147 = vmatpush1.msra.mxu0 0.0
    %2148 = vmatprep.subr.mxu0 0.0
    %2149 = vmatpush1.msra.mxu0 0.0
    %2150 = vmatprep.subr.mxu0 0.0
    %2151 = vmatpush1.msra.mxu0 0.0
    %2152 = vmatprep.subr.mxu0 0.0
    %2153 = vmatpush1.msra.mxu0 0.0
    %2154 = vmatprep.subr.mxu0 0.0
    %2155 = vmatpush1.msra.mxu0 0.0
    %2156 = vmatprep.subr.mxu0 0.0
    %2157 = vmatpush1.msra.mxu0 0.0
    %2158 = vmatprep.subr.mxu0 0.0
    %2159 = vmatpush1.msra.mxu0 0.0
    %2160 = vmatprep.subr.mxu0 0.0
    %2161 = vmatpush1.msra.mxu0 0.0
    %2162 = vmatprep.subr.mxu0 0.0
    %2163 = vmatpush1.msra.mxu0 0.0
    %2164 = vmatprep.subr.mxu0 0.0
    %2165 = vmatpush1.msra.mxu0 0.0
    %2166 = vmatprep.subr.mxu0 0.0
    %2167 = vmatpush1.msra.mxu0 0.0
    %2168 = vmatprep.subr.mxu0 0.0
    %2169 = vmatpush1.msra.mxu0 0.0
    %2170 = vmatprep.subr.mxu0 0.0
    %2171 = vmatpush1.msra.mxu0 0.0
    %2172 = vmatprep.subr.mxu0 0.0
    %2173 = vmatpush1.msra.mxu0 0.0
    %2174 = vmatprep.subr.mxu0 0.0
    %2175 = vmatpush1.msra.mxu0 0.0
    %2176 = vmatprep.subr.mxu0 0.0
    %2177 = vmatpush1.msra.mxu0 0.0
    %2178 = vmatprep.subr.mxu0 0.0
    %2179 = vmatpush1.msra.mxu0 0.0
    %2180 = vmatprep.subr.mxu0 0.0
    %2181 = vmatpush1.msra.mxu0 0.0
    %2182 = vmatprep.subr.mxu0 0.0
    %2183 = vmatpush1.msra.mxu0 0.0
    %2184 = vmatprep.subr.mxu0 0.0
    %2185 = vmatpush1.msra.mxu0 0.0
    %2186 = vmatprep.subr.mxu0 0.0
    %2187 = vmatpush1.msra.mxu0 0.0
    %2188 = vmatprep.subr.mxu0 0.0
    %2189 = vmatpush1.msra.mxu0 0.0
    %2190 = vmatprep.subr.mxu0 0.0
    %2191 = vmatpush1.msra.mxu0 0.0
    %2192 = vmatprep.subr.mxu0 0.0
    %2193 = vmatpush1.msra.mxu0 0.0
    %2194 = vmatprep.subr.mxu0 0.0
    %2195 = vmatpush1.msra.mxu0 0.0
    %2196 = vmatprep.subr.mxu0 0.0
    %2197 = vmatpush1.msra.mxu0 0.0
    %2198 = vmatprep.mubr.f32.mxu0 0.0
    %2199 = vmatmul.mubr.f32.gmra.mrb[0].mxu0 %v2129
    %v2200 = vpop.f32.mrb[0].mxu0
    %v2201 = vadd.f32 %v2126, %v2200
    %v2202 = vpop.f32.mrb[0].mxu0
    %2203 = vmatprep.mubr.f32.mxu0 0.0
    %2204 = vmatmul.mubr.f32.gmra.mrb[0].mxu0 %v2132
    %v2205 = vpop.f32.mrb[0].mxu0
    %v2206 = vadd.f32 %v2126, %v2205
    %v2207 = vpop.f32.mrb[0].mxu0
    %2208 = vdwg.mxu0
    %s2209 = scalar_lea.vmem [#allocation2], 256
    %v2210 = vld [vmem:[%s2209] sm:$0xff]
    %v2211 = vld [vmem:[%s2209 + $0x8] sm:$0xff]
    %v2212 = vld [vmem:[%s2209 + $0x10] sm:$0xff]
    %v2213 = vld [vmem:[%s2209 + $0x18] sm:$0xff]
    %s2214 = scalar_lea.vmem %s3, 12
    %v2215 = vld [vmem:[%s2214] sm:$0x1]
    %v2217 = vsel %vm150, %v2201, 0
    %v2220 = vsel %vm150, %v2206, 0
    %2222 = vmatprep.subr.mxu0 0.0
    %2223 = vmatpush1.msra.mxu0 %v2210
    %2224 = vmatprep.subr.mxu0 0.0
    %2225 = vmatpush1.msra.mxu0 %v2211
    %2226 = vmatprep.subr.mxu0 0.0
    %2227 = vmatpush1.msra.mxu0 %v2212
    %2228 = vmatprep.subr.mxu0 0.0
    %2229 = vmatpush1.msra.mxu0 %v2213
    %2230 = vmatprep.subr.mxu0 0.0
    %2231 = vmatpush1.msra.mxu0 0.0
    %2232 = vmatprep.subr.mxu0 0.0
    %2233 = vmatpush1.msra.mxu0 0.0
    %2234 = vmatprep.subr.mxu0 0.0
    %2235 = vmatpush1.msra.mxu0 0.0
    %2236 = vmatprep.subr.mxu0 0.0
    %2237 = vmatpush1.msra.mxu0 0.0
    %2238 = vmatprep.subr.mxu0 0.0
    %2239 = vmatpush1.msra.mxu0 0.0
    %2240 = vmatprep.subr.mxu0 0.0
    %2241 = vmatpush1.msra.mxu0 0.0
    %2242 = vmatprep.subr.mxu0 0.0
    %2243 = vmatpush1.msra.mxu0 0.0
    %2244 = vmatprep.subr.mxu0 0.0
    %2245 = vmatpush1.msra.mxu0 0.0
    %2246 = vmatprep.subr.mxu0 0.0
    %2247 = vmatpush1.msra.mxu0 0.0
    %2248 = vmatprep.subr.mxu0 0.0
    %2249 = vmatpush1.msra.mxu0 0.0
    %2250 = vmatprep.subr.mxu0 0.0
    %2251 = vmatpush1.msra.mxu0 0.0
    %2252 = vmatprep.subr.mxu0 0.0
    %2253 = vmatpush1.msra.mxu0 0.0
    %2254 = vmatprep.subr.mxu0 0.0
    %2255 = vmatpush1.msra.mxu0 0.0
    %2256 = vmatprep.subr.mxu0 0.0
    %2257 = vmatpush1.msra.mxu0 0.0
    %2258 = vmatprep.subr.mxu0 0.0
    %2259 = vmatpush1.msra.mxu0 0.0
    %2260 = vmatprep.subr.mxu0 0.0
    %2261 = vmatpush1.msra.mxu0 0.0
    %2262 = vmatprep.subr.mxu0 0.0
    %2263 = vmatpush1.msra.mxu0 0.0
    %2264 = vmatprep.subr.mxu0 0.0
    %2265 = vmatpush1.msra.mxu0 0.0
    %2266 = vmatprep.subr.mxu0 0.0
    %2267 = vmatpush1.msra.mxu0 0.0
    %2268 = vmatprep.subr.mxu0 0.0
    %2269 = vmatpush1.msra.mxu0 0.0
    %2270 = vmatprep.subr.mxu0 0.0
    %2271 = vmatpush1.msra.mxu0 0.0
    %2272 = vmatprep.subr.mxu0 0.0
    %2273 = vmatpush1.msra.mxu0 0.0
    %2274 = vmatprep.subr.mxu0 0.0
    %2275 = vmatpush1.msra.mxu0 0.0
    %2276 = vmatprep.subr.mxu0 0.0
    %2277 = vmatpush1.msra.mxu0 0.0
    %2278 = vmatprep.subr.mxu0 0.0
    %2279 = vmatpush1.msra.mxu0 0.0
    %2280 = vmatprep.subr.mxu0 0.0
    %2281 = vmatpush1.msra.mxu0 0.0
    %2282 = vmatprep.subr.mxu0 0.0
    %2283 = vmatpush1.msra.mxu0 0.0
    %2284 = vmatprep.subr.mxu0 0.0
    %2285 = vmatpush1.msra.mxu0 0.0
    %2286 = vmatprep.mubr.f32.mxu0 0.0
    %2287 = vmatmul.mubr.f32.gmra.mrb[0].mxu0 %v2217
    %v2288 = vpop.f32.mrb[0].mxu0
    %v2289 = vadd.f32 0.0, %v2288
    %v2290 = vpop.f32.mrb[0].mxu0
    %2291 = vmatprep.mubr.f32.mxu0 0.0
    %2292 = vmatmul.mubr.f32.gmra.mrb[0].mxu0 %v2220
    %v2293 = vpop.f32.mrb[0].mxu0
    %v2294 = vadd.f32 0.0, %v2293
    %v2295 = vpop.f32.mrb[0].mxu0
    %2296 = vdwg.mxu0
    %v2298 = vsel %vm150, %v2289, 0
    %v2301 = vsel %vm150, %v2294, 0
    %2303 = vmatprep.subr.mxu0 0.0
    %2304 = vmatpush1.xpose.msra.mxu0 %v2217
    %2305 = vmatprep.subr.mxu0 0.0
    %2306 = vmatpush1.xpose.msra.mxu0 %v2220
    %2307 = vmatprep.subr.mxu0 0.0
    %2308 = vmatpush1.xpose.msra.mxu0 0.0
    %2309 = vmatprep.subr.mxu0 0.0
    %2310 = vmatpush1.xpose.msra.mxu0 0.0
    %2311 = vmatprep.subr.mxu0 0.0
    %2312 = vmatpush1.xpose.msra.mxu0 0.0
    %2313 = vmatprep.subr.mxu0 0.0
    %2314 = vmatpush1.xpose.msra.mxu0 0.0
    %2315 = vmatprep.subr.mxu0 0.0
    %2316 = vmatpush1.xpose.msra.mxu0 0.0
    %2317 = vmatprep.subr.mxu0 0.0
    %2318 = vmatpush1.xpose.msra.mxu0 0.0
    %2319 = vmatprep.subr.mxu0 0.0
    %2320 = vmatpush1.xpose.msra.mxu0 0.0
    %2321 = vmatprep.subr.mxu0 0.0
    %2322 = vmatpush1.xpose.msra.mxu0 0.0
    %2323 = vmatprep.subr.mxu0 0.0
    %2324 = vmatpush1.xpose.msra.mxu0 0.0
    %2325 = vmatprep.subr.mxu0 0.0
    %2326 = vmatpush1.xpose.msra.mxu0 0.0
    %2327 = vmatprep.subr.mxu0 0.0
    %2328 = vmatpush1.xpose.msra.mxu0 0.0
    %2329 = vmatprep.subr.mxu0 0.0
    %2330 = vmatpush1.xpose.msra.mxu0 0.0
    %2331 = vmatprep.subr.mxu0 0.0
    %2332 = vmatpush1.xpose.msra.mxu0 0.0
    %2333 = vmatprep.subr.mxu0 0.0
    %2334 = vmatpush1.xpose.msra.mxu0 0.0
    %2335 = vmatprep.subr.mxu0 0.0
    %2336 = vmatpush1.xpose.msra.mxu0 0.0
    %2337 = vmatprep.subr.mxu0 0.0
    %2338 = vmatpush1.xpose.msra.mxu0 0.0
    %2339 = vmatprep.subr.mxu0 0.0
    %2340 = vmatpush1.xpose.msra.mxu0 0.0
    %2341 = vmatprep.subr.mxu0 0.0
    %2342 = vmatpush1.xpose.msra.mxu0 0.0
    %2343 = vmatprep.subr.mxu0 0.0
    %2344 = vmatpush1.xpose.msra.mxu0 0.0
    %2345 = vmatprep.subr.mxu0 0.0
    %2346 = vmatpush1.xpose.msra.mxu0 0.0
    %2347 = vmatprep.subr.mxu0 0.0
    %2348 = vmatpush1.xpose.msra.mxu0 0.0
    %2349 = vmatprep.subr.mxu0 0.0
    %2350 = vmatpush1.xpose.msra.mxu0 0.0
    %2351 = vmatprep.subr.mxu0 0.0
    %2352 = vmatpush1.xpose.msra.mxu0 0.0
    %2353 = vmatprep.subr.mxu0 0.0
    %2354 = vmatpush1.xpose.msra.mxu0 0.0
    %2355 = vmatprep.subr.mxu0 0.0
    %2356 = vmatpush1.xpose.msra.mxu0 0.0
    %2357 = vmatprep.subr.mxu0 0.0
    %2358 = vmatpush1.xpose.msra.mxu0 0.0
    %2359 = vmatprep.subr.mxu0 0.0
    %2360 = vmatpush1.xpose.msra.mxu0 0.0
    %2361 = vmatprep.subr.mxu0 0.0
    %2362 = vmatpush1.xpose.msra.mxu0 0.0
    %2363 = vmatprep.subr.mxu0 0.0
    %2364 = vmatpush1.xpose.msra.mxu0 0.0
    %2365 = vmatprep.subr.mxu0 0.0
    %2366 = vmatpush1.xpose.msra.mxu0 0.0
    %2367 = vmatprep.mubr.f32.mxu0 0.0
    %2368 = vmatmul.mubr.f32.gmra.mrb[0].mxu0 %v2298
    %v2369 = vpop.f32.mrb[0].mxu0
    %v2370 = vadd.f32 0.0, %v2369
    %v2371 = vpop.f32.mrb[0].mxu0
    %2372 = vmatprep.mubr.f32.mxu0 0.0
    %2373 = vmatmul.mubr.f32.gmra.mrb[0].mxu0 %v2301
    %v2374 = vpop.f32.mrb[0].mxu0
    %v2375 = vadd.f32 0.0, %v2374
    %v2376 = vpop.f32.mrb[0].mxu0
    %2377 = vdwg.mxu0
    %v2378 = vsel %vm251, %v2370, -inf
    %2379 = vmax.xlane.f32.xlu0 %v2378
    %v2380 = vpop.xlane.xlu0 %2379
    %v2381 = vsel %vm251, %v2375, -inf
    %2382 = vmax.xlane.f32.xlu0 %v2381
    %v2383 = vpop.xlane.xlu0 %2382
    %v2384 = vsub.f32 %v2370, %v2380
    %v2385 = vsub.f32 %v2375, %v2383
    %v2386 = vmul.f32 %v2384, 1.442695
    %v2387 = vpow.pop %v2386
    %v2388 = vmul.f32 %v2385, 1.442695
    %v2389 = vpow.pop %v2388
    %v2390 = vsel %vm251, %v2387, 0.0
    %2391 = vadd.xlane.f32.xlu0 %v2390
    %v2392 = vpop.xlane.xlu0 %2391
    %v2393 = vsel %vm251, %v2389, 0.0
    %2394 = vadd.xlane.f32.xlu0 %v2393
    %v2395 = vpop.xlane.xlu0 %2394
    %v2396 = vrcp.pop %v2392
    %v2397 = vrcp.pop %v2395
    %v2398 = vmul.f32 %v2387, %v2396
    %v2399 = vmul.f32 %v2389, %v2397
    %v2401 = vlaneseq
    %v2402 = vshrl.u32 %v2401, 7
    %v2403 = vsub.s32 0, %v2402
    %v2404 = vrot.slane %v2215, %v2403
    %v2407 = vsel %vm251, %v2398, 0
    %v2410 = vsel %vm251, %v2399, 0
    %2412 = vmatprep.subr.mxu0 0.0
    %2413 = vmatpush1.msra.mxu0 %v2201
    %2414 = vmatprep.subr.mxu0 0.0
    %2415 = vmatpush1.msra.mxu0 %v2206
    %2416 = vmatprep.subr.mxu0 0.0
    %2417 = vmatpush1.msra.mxu0 0.0
    %2418 = vmatprep.subr.mxu0 0.0
    %2419 = vmatpush1.msra.mxu0 0.0
    %2420 = vmatprep.subr.mxu0 0.0
    %2421 = vmatpush1.msra.mxu0 0.0
    %2422 = vmatprep.subr.mxu0 0.0
    %2423 = vmatpush1.msra.mxu0 0.0
    %2424 = vmatprep.subr.mxu0 0.0
    %2425 = vmatpush1.msra.mxu0 0.0
    %2426 = vmatprep.subr.mxu0 0.0
    %2427 = vmatpush1.msra.mxu0 0.0
    %2428 = vmatprep.subr.mxu0 0.0
    %2429 = vmatpush1.msra.mxu0 0.0
    %2430 = vmatprep.subr.mxu0 0.0
    %2431 = vmatpush1.msra.mxu0 0.0
    %2432 = vmatprep.subr.mxu0 0.0
    %2433 = vmatpush1.msra.mxu0 0.0
    %2434 = vmatprep.subr.mxu0 0.0
    %2435 = vmatpush1.msra.mxu0 0.0
    %2436 = vmatprep.subr.mxu0 0.0
    %2437 = vmatpush1.msra.mxu0 0.0
    %2438 = vmatprep.subr.mxu0 0.0
    %2439 = vmatpush1.msra.mxu0 0.0
    %2440 = vmatprep.subr.mxu0 0.0
    %2441 = vmatpush1.msra.mxu0 0.0
    %2442 = vmatprep.subr.mxu0 0.0
    %2443 = vmatpush1.msra.mxu0 0.0
    %2444 = vmatprep.subr.mxu0 0.0
    %2445 = vmatpush1.msra.mxu0 0.0
    %2446 = vmatprep.subr.mxu0 0.0
    %2447 = vmatpush1.msra.mxu0 0.0
    %2448 = vmatprep.subr.mxu0 0.0
    %2449 = vmatpush1.msra.mxu0 0.0
    %2450 = vmatprep.subr.mxu0 0.0
    %2451 = vmatpush1.msra.mxu0 0.0
    %2452 = vmatprep.subr.mxu0 0.0
    %2453 = vmatpush1.msra.mxu0 0.0
    %2454 = vmatprep.subr.mxu0 0.0
    %2455 = vmatpush1.msra.mxu0 0.0
    %2456 = vmatprep.subr.mxu0 0.0
    %2457 = vmatpush1.msra.mxu0 0.0
    %2458 = vmatprep.subr.mxu0 0.0
    %2459 = vmatpush1.msra.mxu0 0.0
    %2460 = vmatprep.subr.mxu0 0.0
    %2461 = vmatpush1.msra.mxu0 0.0
    %2462 = vmatprep.subr.mxu0 0.0
    %2463 = vmatpush1.msra.mxu0 0.0
    %2464 = vmatprep.subr.mxu0 0.0
    %2465 = vmatpush1.msra.mxu0 0.0
    %2466 = vmatprep.subr.mxu0 0.0
    %2467 = vmatpush1.msra.mxu0 0.0
    %2468 = vmatprep.subr.mxu0 0.0
    %2469 = vmatpush1.msra.mxu0 0.0
    %2470 = vmatprep.subr.mxu0 0.0
    %2471 = vmatpush1.msra.mxu0 0.0
    %2472 = vmatprep.subr.mxu0 0.0
    %2473 = vmatpush1.msra.mxu0 0.0
    %2474 = vmatprep.subr.mxu0 0.0
    %2475 = vmatpush1.msra.mxu0 0.0
    %2476 = vmatprep.mubr.f32.mxu0 0.0
    %2477 = vmatmul.mubr.f32.gmra.mrb[0].mxu0 %v2407
    %v2478 = vpop.f32.mrb[0].mxu0
    %v2479 = vadd.f32 %v2404, %v2478
    %v2480 = vpop.f32.mrb[0].mxu0
    %2481 = vmatprep.mubr.f32.mxu0 0.0
    %2482 = vmatmul.mubr.f32.gmra.mrb[0].mxu0 %v2410
    %v2483 = vpop.f32.mrb[0].mxu0
    %v2484 = vadd.f32 %v2404, %v2483
    %v2485 = vpop.f32.mrb[0].mxu0
    %2486 = vdwg.mxu0
    %s2487 = scalar_lea.vmem %s3, 13
    %v2488 = vld [vmem:[%s2487] sm:$0x1]
    %s2489 = scalar_lea.vmem %s3, 14
    %v2490 = vld [vmem:[%s2489] sm:$0x1]
    %v2491 = vadd.f32 %v2479, %v1737
    %v2492 = vadd.f32 %v2484, %v1738
    %v2493 = vsel %vm150, %v2491, 0.0
    %2494 = vadd.xlane.f32.xlu0 %v2493
    %v2495 = vpop.xlane.xlu0 %2494
    %v2496 = vsel %vm150, %v2492, 0.0
    %2497 = vadd.xlane.f32.xlu0 %v2496
    %v2498 = vpop.xlane.xlu0 %2497
    %v2499 = vmul.f32 %v2495, %v906
    %v2500 = vmul.f32 %v2498, %v906
    %v2501 = vsub.f32 %v2491, %v2499
    %v2502 = vsub.f32 %v2492, %v2500
    %v2503 = vmul.f32 %v2501, %v2501
    %v2504 = vmul.f32 %v2502, %v2502
    %v2505 = vsel %vm150, %v2503, 0.0
    %2506 = vadd.xlane.f32.xlu0 %v2505
    %v2507 = vpop.xlane.xlu0 %2506
    %v2508 = vsel %vm150, %v2504, 0.0
    %2509 = vadd.xlane.f32.xlu0 %v2508
    %v2510 = vpop.xlane.xlu0 %2509
    %v2511 = vmul.f32 %v2507, %v906
    %v2512 = vmul.f32 %v2510, %v906
    %v2513 = vadd.f32 %v2511, 1e-05
    %v2514 = vadd.f32 %v2512, 1e-05
    %v2515 = vrsqrt.pop %v2513
    %v2516 = vrsqrt.pop %v2514
    %v2517 = vmul.f32 %v2501, %v2515
    %v2518 = vmul.f32 %v2502, %v2516
    %v2520 = vlaneseq
    %v2521 = vshrl.u32 %v2520, 7
    %v2522 = vsub.s32 0, %v2521
    %v2523 = vrot.slane %v2488, %v2522
    %v2525 = vmul.f32 %v2517, %v2523
    %v2526 = vmul.f32 %v2518, %v2523
    %v2528 = vlaneseq
    %v2529 = vshrl.u32 %v2528, 7
    %v2530 = vsub.s32 0, %v2529
    %v2531 = vrot.slane %v2490, %v2530
    %v2533 = vadd.f32 %v2525, %v2531
    %v2534 = vadd.f32 %v2526, %v2531
    %v2535 = vsel %vm150, %v2533, 0.0
    %v2536 = vsel %vm150, %v2534, 0.0
    %v2537 = vadd.f32 %v2535, %v2536
    %v2538 = vrot.slane %v2537, 4
    %v2539 = vadd.f32 %v2537, %v2538
    %v2540 = vrot.slane %v2539, 2
    %v2541 = vadd.f32 %v2539, %v2540
    %v2542 = vrot.slane %v2541, 1
    %v2543 = vadd.f32 %v2541, %v2542
    %v2544 = vrcp.pop 16.0
    %v2545 = vmul.f32 %v2543, %v2544
    %s2546 = scalar_lea.vmem [#allocation2], 320
    %v2547 = vld [vmem:[%s2546] sm:$0xff]
    %v2548 = vld [vmem:[%s2546 + $0x8] sm:$0xff]
    %v2549 = vld [vmem:[%s2546 + $0x10] sm:$0xff]
    %v2550 = vld [vmem:[%s2546 + $0x18] sm:$0xff]
    %s2551 = scalar_lea.vmem %s3, 16
    %v2552 = vld [vmem:[%s2551] sm:$0x1]
    %v2554 = vsel %vm150, %v2545, 0
    %2556 = vmatprep.subr.mxu0 0.0
    %2557 = vmatpush1.msra.mxu0 %v2547
    %2558 = vmatprep.subr.mxu0 0.0
    %2559 = vmatpush1.msra.mxu0 %v2548
    %2560 = vmatprep.subr.mxu0 0.0
    %2561 = vmatpush1.msra.mxu0 %v2549
    %2562 = vmatprep.subr.mxu0 0.0
    %2563 = vmatpush1.msra.mxu0 %v2550
    %2564 = vmatprep.subr.mxu0 0.0
    %2565 = vmatpush1.msra.mxu0 0.0
    %2566 = vmatprep.subr.mxu0 0.0
    %2567 = vmatpush1.msra.mxu0 0.0
    %2568 = vmatprep.subr.mxu0 0.0
    %2569 = vmatpush1.msra.mxu0 0.0
    %2570 = vmatprep.subr.mxu0 0.0
    %2571 = vmatpush1.msra.mxu0 0.0
    %2572 = vmatprep.subr.mxu0 0.0
    %2573 = vmatpush1.msra.mxu0 0.0
    %2574 = vmatprep.subr.mxu0 0.0
    %2575 = vmatpush1.msra.mxu0 0.0
    %2576 = vmatprep.subr.mxu0 0.0
    %2577 = vmatpush1.msra.mxu0 0.0
    %2578 = vmatprep.subr.mxu0 0.0
    %2579 = vmatpush1.msra.mxu0 0.0
    %2580 = vmatprep.subr.mxu0 0.0
    %2581 = vmatpush1.msra.mxu0 0.0
    %2582 = vmatprep.subr.mxu0 0.0
    %2583 = vmatpush1.msra.mxu0 0.0
    %2584 = vmatprep.subr.mxu0 0.0
    %2585 = vmatpush1.msra.mxu0 0.0
    %2586 = vmatprep.subr.mxu0 0.0
    %2587 = vmatpush1.msra.mxu0 0.0
    %2588 = vmatprep.subr.mxu0 0.0
    %2589 = vmatpush1.msra.mxu0 0.0
    %2590 = vmatprep.subr.mxu0 0.0
    %2591 = vmatpush1.msra.mxu0 0.0
    %2592 = vmatprep.subr.mxu0 0.0
    %2593 = vmatpush1.msra.mxu0 0.0
    %2594 = vmatprep.subr.mxu0 0.0
    %2595 = vmatpush1.msra.mxu0 0.0
    %2596 = vmatprep.subr.mxu0 0.0
    %2597 = vmatpush1.msra.mxu0 0.0
    %2598 = vmatprep.subr.mxu0 0.0
    %2599 = vmatpush1.msra.mxu0 0.0
    %2600 = vmatprep.subr.mxu0 0.0
    %2601 = vmatpush1.msra.mxu0 0.0
    %2602 = vmatprep.subr.mxu0 0.0
    %2603 = vmatpush1.msra.mxu0 0.0
    %2604 = vmatprep.subr.mxu0 0.0
    %2605 = vmatpush1.msra.mxu0 0.0
    %2606 = vmatprep.subr.mxu0 0.0
    %2607 = vmatpush1.msra.mxu0 0.0
    %2608 = vmatprep.subr.mxu0 0.0
    %2609 = vmatpush1.msra.mxu0 0.0
    %2610 = vmatprep.subr.mxu0 0.0
    %2611 = vmatpush1.msra.mxu0 0.0
    %2612 = vmatprep.subr.mxu0 0.0
    %2613 = vmatpush1.msra.mxu0 0.0
    %2614 = vmatprep.subr.mxu0 0.0
    %2615 = vmatpush1.msra.mxu0 0.0
    %2616 = vmatprep.subr.mxu0 0.0
    %2617 = vmatpush1.msra.mxu0 0.0
    %2618 = vmatprep.subr.mxu0 0.0
    %2619 = vmatpush1.msra.mxu0 0.0
    %2620 = vmatprep.mubr.f32.mxu0 0.0
    %2621 = vmatmul.mubr.f32.gmra.mrb[0].mxu0 %v2554
    %v2622 = vpop.f32.mrb[0].mxu0
    %v2623 = vadd.f32 %v2552, %v2622
    %v2624 = vpop.f32.mrb[0].mxu0
    %2625 = vdwg.mxu0
    %v2626 = vmax.f32 %v2623, 0.0
    %s2627 = scalar_lea.vmem [#allocation2], 352
    %v2628 = vld [vmem:[%s2627] sm:$0xff]
    %v2629 = vld [vmem:[%s2627 + $0x8] sm:$0xff]
    %v2630 = vld [vmem:[%s2627 + $0x10] sm:$0xff]
    %v2631 = vld [vmem:[%s2627 + $0x18] sm:$0xff]
    %s2632 = scalar_lea.vmem %s3, 17
    %v2633 = vld [vmem:[%s2632] sm:$0x1]
    %v2635 = vsel %vm150, %v2626, 0
    %2637 = vmatprep.subr.mxu0 0.0
    %2638 = vmatpush1.msra.mxu0 %v2628
    %2639 = vmatprep.subr.mxu0 0.0
    %2640 = vmatpush1.msra.mxu0 %v2629
    %2641 = vmatprep.subr.mxu0 0.0
    %2642 = vmatpush1.msra.mxu0 %v2630
    %2643 = vmatprep.subr.mxu0 0.0
    %2644 = vmatpush1.msra.mxu0 %v2631
    %2645 = vmatprep.subr.mxu0 0.0
    %2646 = vmatpush1.msra.mxu0 0.0
    %2647 = vmatprep.subr.mxu0 0.0
    %2648 = vmatpush1.msra.mxu0 0.0
    %2649 = vmatprep.subr.mxu0 0.0
    %2650 = vmatpush1.msra.mxu0 0.0
    %2651 = vmatprep.subr.mxu0 0.0
    %2652 = vmatpush1.msra.mxu0 0.0
    %2653 = vmatprep.subr.mxu0 0.0
    %2654 = vmatpush1.msra.mxu0 0.0
    %2655 = vmatprep.subr.mxu0 0.0
    %2656 = vmatpush1.msra.mxu0 0.0
    %2657 = vmatprep.subr.mxu0 0.0
    %2658 = vmatpush1.msra.mxu0 0.0
    %2659 = vmatprep.subr.mxu0 0.0
    %2660 = vmatpush1.msra.mxu0 0.0
    %2661 = vmatprep.subr.mxu0 0.0
    %2662 = vmatpush1.msra.mxu0 0.0
    %2663 = vmatprep.subr.mxu0 0.0
    %2664 = vmatpush1.msra.mxu0 0.0
    %2665 = vmatprep.subr.mxu0 0.0
    %2666 = vmatpush1.msra.mxu0 0.0
    %2667 = vmatprep.subr.mxu0 0.0
    %2668 = vmatpush1.msra.mxu0 0.0
    %2669 = vmatprep.subr.mxu0 0.0
    %2670 = vmatpush1.msra.mxu0 0.0
    %2671 = vmatprep.subr.mxu0 0.0
    %2672 = vmatpush1.msra.mxu0 0.0
    %2673 = vmatprep.subr.mxu0 0.0
    %2674 = vmatpush1.msra.mxu0 0.0
    %2675 = vmatprep.subr.mxu0 0.0
    %2676 = vmatpush1.msra.mxu0 0.0
    %2677 = vmatprep.subr.mxu0 0.0
    %2678 = vmatpush1.msra.mxu0 0.0
    %2679 = vmatprep.subr.mxu0 0.0
    %2680 = vmatpush1.msra.mxu0 0.0
    %2681 = vmatprep.subr.mxu0 0.0
    %2682 = vmatpush1.msra.mxu0 0.0
    %2683 = vmatprep.subr.mxu0 0.0
    %2684 = vmatpush1.msra.mxu0 0.0
    %2685 = vmatprep.subr.mxu0 0.0
    %2686 = vmatpush1.msra.mxu0 0.0
    %2687 = vmatprep.subr.mxu0 0.0
    %2688 = vmatpush1.msra.mxu0 0.0
    %2689 = vmatprep.subr.mxu0 0.0
    %2690 = vmatpush1.msra.mxu0 0.0
    %2691 = vmatprep.subr.mxu0 0.0
    %2692 = vmatpush1.msra.mxu0 0.0
    %2693 = vmatprep.subr.mxu0 0.0
    %2694 = vmatpush1.msra.mxu0 0.0
    %2695 = vmatprep.subr.mxu0 0.0
    %2696 = vmatpush1.msra.mxu0 0.0
    %2697 = vmatprep.subr.mxu0 0.0
    %2698 = vmatpush1.msra.mxu0 0.0
    %2699 = vmatprep.subr.mxu0 0.0
    %2700 = vmatpush1.msra.mxu0 0.0
    %2701 = vmatprep.mubr.f32.mxu0 0.0
    %2702 = vmatmul.mubr.f32.gmra.mrb[0].mxu0 %v2635
    %v2703 = vpop.f32.mrb[0].mxu0
    %v2704 = vadd.f32 %v2633, %v2703
    %v2705 = vpop.f32.mrb[0].mxu0
    %2706 = vdwg.mxu0
    %vm2707 = vcmask 16384
    %2708 = vst.msk [vmem:[#allocation5] sm:$0x1] %vm2707, %v2704
    // Predicated region
    $region22: #{_forward_impl.1} parent=1 // pred_check
      _
    $region23: #{_forward_impl.1} parent=1 // pred_check_branch
      %2710 = sbr.rel (0) target = $region25
    $region24: #{_forward_impl.1} parent=1 // pred_region
      %s2712 = ssub.s32 16, 16
      %2713 = vsyncadd [#allocation4], %s2712
      %s2715 = sshll.u32 [#allocation5], 4
      %s2716 = int_to_ptr.vmem [resolvable:$true] %s2715
      %2718 = dma.vmem_to_hbm [thread:$0]  %s2716, 16, %s4, [#allocation4]
    $region25: #{_forward_impl.1} parent=1 // pred_fallthru
      _
    // Predicated region
    $region26: #{_forward_impl.1} parent=1 // pred_check
      _
    $region27: #{_forward_impl.1} parent=1 // pred_check_branch
      %2720 = sbr.rel (0) target = $region29
    $region28: #{_forward_impl.1} parent=1 // pred_region
      %2721 = dma.done [#allocation4], 16
    $region29: #{_forward_impl.1} parent=1 // pred_fallthru
      _
    %2722 = vsyncpa [#allocation3], 1
    %2723 = vsyncpa [#allocation4], 1

</llo_original>
